<compile_context>
chip_gen: v7x
topology: tpu7x:2x2x1
jax: 0.10.0
libtpu: 0.0.40
codegen_flags: <defaults>
</compile_context>

<pallas_src>
import functools

import numpy as np
import jax
import jax.numpy as jnp
from jax import lax
from jax.experimental import pallas as pl
from jax.experimental.pallas import tpu as pltpu

# MXU operand dtype (accumulation is always f32).  Switch to jnp.bfloat16 for
# ~4x MXU throughput if ~1e-2 relative error is acceptable.
MM_DTYPE = jnp.float32

_LANE = 128


def _round_up(v, m):
    return (v + m - 1) // m * m


# ----------------------------------------------------------------------------- #
# Pallas kernel: one batch element per grid step, everything resident in VMEM.
# ----------------------------------------------------------------------------- #
def rga_kernel(x_ref,
               wps_ref, bps_ref,              # fused theta/phi/gx spatial proj
               was_ref, wbs_ref, bggs_ref,    # gg_spatial split  (gs | gs^T)
               w1as_ref, w1bs_ref, bs1_ref,   # W_spatial conv1 split (g_xs | gs_joint)
               ws2_ref, bs2_ref,              # W_spatial conv2
               wpc_ref, bpc_ref,              # fused theta/phi/gx channel proj
               wac_ref, wbc_ref, bggc_ref,    # gg_channel split  (gc | gc^T)
               w1ac_ref, w1bc_ref, bc1_ref,   # W_channel conv1 split
               wc2_ref, bc2_ref,              # W_channel conv2
               o_ref, *, ic, isp):
    f32 = jnp.float32

    def mm(a, b):      # a @ b
        return lax.dot_general(a.astype(MM_DTYPE), b.astype(MM_DTYPE),
                               (((1,), (0,)), ((), ())),
                               preferred_element_type=f32)

    def mm_tn(a, b):   # a^T @ b   (no materialized a.T)
        return lax.dot_general(a.astype(MM_DTYPE), b.astype(MM_DTYPE),
                               (((0,), (0,)), ((), ())),
                               preferred_element_type=f32)

    def mm_nt(a, b):   # a @ b^T   (no materialized b.T)
        return lax.dot_general(a.astype(MM_DTYPE), b.astype(MM_DTYPE),
                               (((1,), (1,)), ((), ())),
                               preferred_element_type=f32)

    relu = lambda v: jnp.maximum(v, 0.0)

    x = x_ref[0]                                                    # (HW, Cp)

    # ---------------------------- spatial attention ---------------------------- #
    # theta/phi/gx fused into a single (HW,Cp)x(Cp,3*IC) matmul, then lane-sliced.
    proj_s = relu(mm(x, wps_ref[...]) + bps_ref[...])               # (HW, 3*IC)
    theta = proj_s[:, :ic]
    phi = proj_s[:, ic:2 * ic]
    gs = mm_nt(theta, phi)                                          # (HW, HW)
    # gg_spatial(concat(Gs_in, Gs_out))  ==  gs @ Wa + gs^T @ Wb  (split weight)
    gs_joint = relu(mm(gs, was_ref[...]) + mm_tn(gs, wbs_ref[...])
                    + bggs_ref[...])                                # (HW, IS)
    g_xs = jnp.mean(proj_s[:, 2 * ic:], axis=-1, keepdims=True)     # (HW, 1)
    # W_spatial conv1 on concat([g_xs, gs_joint]) == split-weight sum (no concat)
    hid_s = relu(mm(gs_joint, w1bs_ref[...]) + g_xs * w1as_ref[...]
                 + bs1_ref[...])                                    # (HW, nh_s)
    w_ys = mm(hid_s, ws2_ref[...]) + bs2_ref[...]                   # (HW, 1)
    x2 = jax.nn.sigmoid(w_ys) * x                                   # (HW, Cp)

    # ---------------------------- channel attention ---------------------------- #
    # xc = x2^T is never materialized: contract the HW axis directly.
    proj_c = relu(mm_tn(x2, wpc_ref[...]) + bpc_ref[...])           # (Cp, 3*IS)
    theta_c = proj_c[:, :isp]
    phi_c = proj_c[:, isp:2 * isp]
    gc = mm_nt(theta_c, phi_c)                                      # (Cp, Cp)
    gc_joint = relu(mm(gc, wac_ref[...]) + mm_tn(gc, wbc_ref[...])
                    + bggc_ref[...])                                # (Cp, IC)
    g_xc = jnp.mean(proj_c[:, 2 * isp:], axis=-1, keepdims=True)    # (Cp, 1)
    hid_c = relu(mm(gc_joint, w1bc_ref[...]) + g_xc * w1ac_ref[...]
                 + bc1_ref[...])                                    # (Cp, nh_c)
    w_yc = mm(hid_c, wc2_ref[...]) + bc2_ref[...]                   # (Cp, 1)

    o_ref[0] = x2 * jax.nn.sigmoid(w_yc).T                          # (HW, Cp) dense store


# ----------------------------------------------------------------------------- #
# Host-side weight packing: transpose to (cin,cout), fuse, split, zero-pad.
# ----------------------------------------------------------------------------- #
def _pack_weights(params, in_channel, in_spatial, c_pad):
    (th_s, ph_s, gg_s, gx_s, ws1, ws2,
     th_c, ph_c, gg_c, gx_c, wc1, wc2) = params
    C, HW, Cp = in_channel, in_spatial, c_pad

    def t(wb):
        return wb[0].T, wb[1]          # conv weight -> (cin, cout)

    (th_s_w, th_s_b), (ph_s_w, ph_s_b), (gx_s_w, gx_s_b) = t(th_s), t(ph_s), t(gx_s)
    (th_c_w, th_c_b), (ph_c_w, ph_c_b), (gx_c_w, gx_c_b) = t(th_c), t(ph_c), t(gx_c)

    pad_c = ((0, Cp - C), (0, 0))

    # fused spatial projections (padded input channels of x are zero).
    w_proj_s = jnp.pad(jnp.concatenate([th_s_w, ph_s_w, gx_s_w], axis=1), pad_c)
    b_proj_s = jnp.concatenate([th_s_b, ph_s_b, gx_s_b], axis=1)

    # gg_spatial split: cols [0:HW] act on gs, [HW:2HW] act on gs^T.
    wa_s = gg_s[0][:, :HW].T                                   # (HW, IS)
    wb_s = gg_s[0][:, HW:].T
    b_gg_s = gg_s[1]

    # W_spatial conv1 split: row 0 acts on g_xs, rows 1: on gs_joint.
    ws1_t = ws1[0].T                                           # (1+IS, nh_s)
    w1a_s, w1b_s, b_ws1 = ws1_t[:1], ws1_t[1:], ws1[1]
    w_ws2, b_ws2 = ws2[0].T, ws2[1]

    # fused channel projections (contracted against the HW axis of x2).
    w_proj_c = jnp.concatenate([th_c_w, ph_c_w, gx_c_w], axis=1)   # (HW, 3*IS)
    b_proj_c = jnp.concatenate([th_c_b, ph_c_b, gx_c_b], axis=1)

    # gg_channel split; ZERO rows for padded channels keep padded rows/cols of gc
    # out of the real outputs (required for exactness under channel padding).
    wa_c = jnp.pad(gg_c[0][:, :C].T, pad_c)                    # (Cp, IC)
    wb_c = jnp.pad(gg_c[0][:, C:].T, pad_c)
    b_gg_c = gg_c[1]

    wc1_t = wc1[0].T                                           # (1+IC, nh_c)
    w1a_c, w1b_c, b_wc1 = wc1_t[:1], wc1_t[1:], wc1[1]
    w_wc2, b_wc2 = wc2[0].T, wc2[1]

    return [w_proj_s, b_proj_s, wa_s, wb_s, b_gg_s,
            w1a_s, w1b_s, b_ws1, w_ws2, b_ws2,
            w_proj_c, b_proj_c, wa_c, wb_c, b_gg_c,
            w1a_c, w1b_c, b_wc1, w_wc2, b_wc2]


# ----------------------------------------------------------------------------- #
# Wrapper: NCHW <-> lane-dense (B, HW, Cp), BlockSpecs, pallas_call.
# ----------------------------------------------------------------------------- #
def rga_forward(x_nchw, params):
    B, C, H, W = x_nchw.shape
    HW = H * W
    Cp = _round_up(C, _LANE)           # lane-dense channel axis for HBM traffic

    ic = params[0][0].shape[0]         # inter_channel
    isp = params[6][0].shape[0]        # inter_spatial

    x_pc = x_nchw.reshape(B, C, HW).transpose(0, 2, 1)             # (B, HW, C)
    if Cp != C:
        x_pc = jnp.pad(x_pc, ((0, 0), (0, 0), (0, Cp - C)))        # zero channels

    flat = _pack_weights(params, C, HW, Cp)

    in_specs = [pl.BlockSpec((1, HW, Cp), lambda i: (i, 0, 0))]
    for wgt in flat:
        # Constant index_map -> block stays resident across grid steps (no
        # per-step DMA).  TODO(synk): pipeline_mode=pl.Buffered(1) would also
        # drop the second buffer for these grid-invariant weights.
        in_specs.append(pl.BlockSpec(wgt.shape, lambda i, nd=wgt.ndim: (0,) * nd))

    kernel = functools.partial(rga_kernel, ic=ic, isp=isp)

    out = pl.pallas_call(
        kernel,
        out_shape=jax.ShapeDtypeStruct((B, HW, Cp), jnp.float32),
        grid_spec=pltpu.PrefetchScalarGridSpec(
            num_scalar_prefetch=0,
            grid=(B,),
            in_specs=in_specs,
            out_specs=pl.BlockSpec((1, HW, Cp), lambda i: (i, 0, 0)),
        ),
        compiler_params=pltpu.CompilerParams(
            dimension_semantics=("parallel",),     # B>=2 -> both v7x TCs busy
            vmem_limit_bytes=64 * 1024 * 1024,     # within v7x physical VMEM
        ),
    )(x_pc, *flat)

    out = out[:, :, :C]                            # drop channel padding
    return out.transpose(0, 2, 1).reshape(B, C, H, W)


# ----------------------------------------------------------------------------- #
# Deterministic parameter construction (Conv2d 1x1 weight + inference-mode BN).
# ----------------------------------------------------------------------------- #
def make_conv_bn(key, cout, cin):
    k1, k2, k3 = jax.random.split(key, 3)
    w = jax.random.normal(k1, (cout, cin), jnp.float32) / np.sqrt(cin)
    gamma = 1.0 + 0.1 * jax.random.normal(k2, (cout,), jnp.float32)
    beta = 0.1 * jax.random.normal(k3, (cout,), jnp.float32)
    running_mean = jnp.zeros((cout,), jnp.float32)
    running_var = jnp.ones((cout,), jnp.float32)
    eps = 1e-5
    scale = gamma / jnp.sqrt(running_var + eps)
    bias = beta - running_mean * scale
    w_eff = w * scale[:, None]          # fold BN scale into the conv weight
    return w_eff, bias.reshape(1, cout)


def build_params(key, in_channel, in_spatial, cha_ratio=8, spa_ratio=8, down_ratio=8):
    ic = in_channel // cha_ratio
    isp = in_spatial // spa_ratio
    ns = 1 + isp
    nc = 1 + ic
    shapes = [
        (ic, in_channel),          # theta_spatial
        (ic, in_channel),          # phi_spatial
        (isp, in_spatial * 2),     # gg_spatial
        (ic, in_channel),          # gx_spatial
        (ns // down_ratio, ns),    # W_spatial conv1
        (1, ns // down_ratio),     # W_spatial conv2
        (isp, in_spatial),         # theta_channel
        (isp, in_spatial),         # phi_channel
        (ic, in_channel * 2),      # gg_channel
        (isp, in_spatial),         # gx_channel
        (nc // down_ratio, nc),    # W_channel conv1
        (1, nc // down_ratio),     # W_channel conv2
    ]
    params = []
    for i, (co, ci) in enumerate(shapes):
        params.append(make_conv_bn(jax.random.fold_in(key, i), co, ci))
    return params


# ----------------------------------------------------------------------------- #
# Pure-JAX NCHW reference (mirrors the PyTorch forward exactly).
# ----------------------------------------------------------------------------- #
def _conv1x1_bn(x, wb, relu=True):
    w_eff, bias = wb
    y = jnp.einsum('oi,bihw->bohw', w_eff, x,
                   precision=jax.lax.Precision.HIGHEST)
    y = y + bias.reshape(1, -1, 1, 1)
    return jnp.maximum(y, 0.0) if relu else y


def ref_forward(x, params):
    (th_s, ph_s, gg_s, gx_s, ws1, ws2,
     th_c, ph_c, gg_c, gx_c, wc1, wc2) = params
    b, c, h, w = x.shape
    hw = h * w
    hi = jax.lax.Precision.HIGHEST

    # spatial
    theta = _conv1x1_bn(x, th_s).reshape(b, -1, hw).transpose(0, 2, 1)
    phi = _conv1x1_bn(x, ph_s).reshape(b, -1, hw)
    Gs = jnp.einsum('bpk,bkq->bpq', theta, phi, precision=hi)
    Gs_in = Gs.transpose(0, 2, 1).reshape(b, hw, h, w)
    Gs_out = Gs.reshape(b, hw, h, w)
    Gs_joint = _conv1x1_bn(jnp.concatenate([Gs_in, Gs_out], axis=1), gg_s)
    g_xs = _conv1x1_bn(x, gx_s).mean(axis=1, keepdims=True)
    ys = jnp.concatenate([g_xs, Gs_joint], axis=1)
    W_ys = _conv1x1_bn(_conv1x1_bn(ys, ws1), ws2, relu=False)
    x = jax.nn.sigmoid(W_ys) * x

    # channel
    xc = x.reshape(b, c, hw).transpose(0, 2, 1)[..., None]        # (b, hw, c, 1)
    theta_c = _conv1x1_bn(xc, th_c)[..., 0].transpose(0, 2, 1)    # (b, c, is)
    phi_c = _conv1x1_bn(xc, ph_c)[..., 0]                         # (b, is, c)
    Gc = jnp.einsum('bco,boe->bce', theta_c, phi_c, precision=hi)
    Gc_in = Gc.transpose(0, 2, 1)[..., None]
    Gc_out = Gc[..., None]
    Gc_joint = _conv1x1_bn(jnp.concatenate([Gc_in, Gc_out], axis=1), gg_c)
    g_xc = _conv1x1_bn(xc, gx_c).mean(axis=1, keepdims=True)
    yc = jnp.concatenate([g_xc, Gc_joint], axis=1)
    W_yc = _conv1x1_bn(_conv1x1_bn(yc, wc1), wc2, relu=False)     # (b, 1, c, 1)
    W_yc = W_yc.transpose(0, 2, 1, 3)                             # (b, c, 1, 1)
    return jax.nn.sigmoid(W_yc) * x


# ----------------------------------------------------------------------------- #
if __name__ == "__main__":
    B, C, H, W = 2, 64, 8, 8          # in_channel=64, in_spatial=H*W=64
    HW = H * W

    key = jax.random.PRNGKey(0)
    kx, kp = jax.random.split(key)
    x = jax.random.normal(kx, (B, C, H, W), jnp.float32)
    params = build_params(kp, in_channel=C, in_spatial=HW)

    out = jax.block_until_ready(rga_forward(x, params))
    ref = jax.block_until_ready(ref_forward(x, params))
    np.testing.assert_allclose(np.asarray(out), np.asarray(ref),
                               rtol=1e-3, atol=1e-3)

    assert out.shape == (B, C, H, W)
    print("KERNEL_OK")
</pallas_src>

<mosaic_0001>
module attributes {stable_mosaic.version = 11 : i64} {
  func.func @rga_kernel(%arg0: i32, %arg1: memref<1x64x128xf32, #tpu.memory_space<vmem>>, %arg2: memref<128x24xf32, #tpu.memory_space<vmem>>, %arg3: memref<1x24xf32, #tpu.memory_space<vmem>>, %arg4: memref<64x8xf32, #tpu.memory_space<vmem>>, %arg5: memref<64x8xf32, #tpu.memory_space<vmem>>, %arg6: memref<1x8xf32, #tpu.memory_space<vmem>>, %arg7: memref<1x1xf32, #tpu.memory_space<vmem>>, %arg8: memref<8x1xf32, #tpu.memory_space<vmem>>, %arg9: memref<1x1xf32, #tpu.memory_space<vmem>>, %arg10: memref<1x1xf32, #tpu.memory_space<vmem>>, %arg11: memref<1x1xf32, #tpu.memory_space<vmem>>, %arg12: memref<64x24xf32, #tpu.memory_space<vmem>>, %arg13: memref<1x24xf32, #tpu.memory_space<vmem>>, %arg14: memref<128x8xf32, #tpu.memory_space<vmem>>, %arg15: memref<128x8xf32, #tpu.memory_space<vmem>>, %arg16: memref<1x8xf32, #tpu.memory_space<vmem>>, %arg17: memref<1x1xf32, #tpu.memory_space<vmem>>, %arg18: memref<8x1xf32, #tpu.memory_space<vmem>>, %arg19: memref<1x1xf32, #tpu.memory_space<vmem>>, %arg20: memref<1x1xf32, #tpu.memory_space<vmem>>, %arg21: memref<1x1xf32, #tpu.memory_space<vmem>>, %arg22: memref<1x64x128xf32, #tpu.memory_space<vmem>>) attributes {dimension_semantics = [#tpu.dimension_semantics<parallel>], iteration_bounds = array<i64: 2>, scalar_prefetch = 0 : i64, scratch_operands = 0 : i64, tpu.core_type = #tpu.core_type<tc>, window_params = [{transform_indices = @transform_0, window_bounds = array<i64: 1, 64, 128>}, {pipeline_mode = #tpu.pipeline_mode<synchronous>, transform_indices = @transform_1, window_bounds = array<i64: 128, 24>}, {pipeline_mode = #tpu.pipeline_mode<synchronous>, transform_indices = @transform_2, window_bounds = array<i64: 1, 24>}, {pipeline_mode = #tpu.pipeline_mode<synchronous>, transform_indices = @transform_3, window_bounds = array<i64: 64, 8>}, {pipeline_mode = #tpu.pipeline_mode<synchronous>, transform_indices = @transform_4, window_bounds = array<i64: 64, 8>}, {pipeline_mode = #tpu.pipeline_mode<synchronous>, transform_indices = @transform_5, window_bounds = array<i64: 1, 8>}, {pipeline_mode = #tpu.pipeline_mode<synchronous>, transform_indices = @transform_6, window_bounds = array<i64: 1, 1>}, {pipeline_mode = #tpu.pipeline_mode<synchronous>, transform_indices = @transform_7, window_bounds = array<i64: 8, 1>}, {pipeline_mode = #tpu.pipeline_mode<synchronous>, transform_indices = @transform_8, window_bounds = array<i64: 1, 1>}, {pipeline_mode = #tpu.pipeline_mode<synchronous>, transform_indices = @transform_9, window_bounds = array<i64: 1, 1>}, {pipeline_mode = #tpu.pipeline_mode<synchronous>, transform_indices = @transform_10, window_bounds = array<i64: 1, 1>}, {pipeline_mode = #tpu.pipeline_mode<synchronous>, transform_indices = @transform_11, window_bounds = array<i64: 64, 24>}, {pipeline_mode = #tpu.pipeline_mode<synchronous>, transform_indices = @transform_12, window_bounds = array<i64: 1, 24>}, {pipeline_mode = #tpu.pipeline_mode<synchronous>, transform_indices = @transform_13, window_bounds = array<i64: 128, 8>}, {pipeline_mode = #tpu.pipeline_mode<synchronous>, transform_indices = @transform_14, window_bounds = array<i64: 128, 8>}, {pipeline_mode = #tpu.pipeline_mode<synchronous>, transform_indices = @transform_15, window_bounds = array<i64: 1, 8>}, {pipeline_mode = #tpu.pipeline_mode<synchronous>, transform_indices = @transform_16, window_bounds = array<i64: 1, 1>}, {pipeline_mode = #tpu.pipeline_mode<synchronous>, transform_indices = @transform_17, window_bounds = array<i64: 8, 1>}, {pipeline_mode = #tpu.pipeline_mode<synchronous>, transform_indices = @transform_18, window_bounds = array<i64: 1, 1>}, {pipeline_mode = #tpu.pipeline_mode<synchronous>, transform_indices = @transform_19, window_bounds = array<i64: 1, 1>}, {pipeline_mode = #tpu.pipeline_mode<synchronous>, transform_indices = @transform_20, window_bounds = array<i64: 1, 1>}, {transform_indices = @transform_21, window_bounds = array<i64: 1, 64, 128>}]} {
    %c0 = arith.constant 0 : index
    %c0_0 = arith.constant 0 : index
    %c0_1 = arith.constant 0 : index
    %0 = vector.load %arg1[%c0, %c0_0, %c0_1] : memref<1x64x128xf32, #tpu.memory_space<vmem>>, vector<1x64x128xf32>
    %1 = vector.shape_cast %0 : vector<1x64x128xf32> to vector<64x128xf32>
    %c0_2 = arith.constant 0 : index
    %c0_3 = arith.constant 0 : index
    %2 = vector.load %arg2[%c0_2, %c0_3] : memref<128x24xf32, #tpu.memory_space<vmem>>, vector<128x24xf32>
    %cst = arith.constant dense<0.000000e+00> : vector<64x24xf32>
    %3 = tpu.matmul %1, %2, %cst {dimension_numbers = #tpu.dot_dimension_numbers<[1], [0], [0], [1], [0, 0, 1, 1], [], []>} : vector<64x128xf32>, vector<128x24xf32>, vector<64x24xf32> -> vector<64x24xf32>
    %c0_4 = arith.constant 0 : index
    %c0_5 = arith.constant 0 : index
    %4 = vector.load %arg3[%c0_4, %c0_5] : memref<1x24xf32, #tpu.memory_space<vmem>>, vector<1x24xf32>
    %5 = vector.broadcast %4 : vector<1x24xf32> to vector<64x24xf32>
    %6 = arith.addf %3, %5 : vector<64x24xf32>
    %cst_6 = arith.constant 0.000000e+00 : f32
    %7 = vector.broadcast %cst_6 : f32 to vector<64x24xf32>
    %8 = arith.maximumf %6, %7 : vector<64x24xf32>
    %9 = vector.extract_strided_slice %8 {offsets = [0, 0], sizes = [64, 8], strides = [1, 1]} : vector<64x24xf32> to vector<64x8xf32>
    %10 = vector.extract_strided_slice %8 {offsets = [0, 8], sizes = [64, 8], strides = [1, 1]} : vector<64x24xf32> to vector<64x8xf32>
    %cst_7 = arith.constant dense<0.000000e+00> : vector<64x64xf32>
    %11 = tpu.matmul %9, %10, %cst_7 {dimension_numbers = #tpu.dot_dimension_numbers<[1], [1], [0], [0], [0, 0, 1, 0], [], []>} : vector<64x8xf32>, vector<64x8xf32>, vector<64x64xf32> -> vector<64x64xf32>
    %c0_8 = arith.constant 0 : index
    %c0_9 = arith.constant 0 : index
    %12 = vector.load %arg4[%c0_8, %c0_9] : memref<64x8xf32, #tpu.memory_space<vmem>>, vector<64x8xf32>
    %cst_10 = arith.constant dense<0.000000e+00> : vector<64x8xf32>
    %13 = tpu.matmul %11, %12, %cst_10 {dimension_numbers = #tpu.dot_dimension_numbers<[1], [0], [0], [1], [0, 0, 1, 1], [], []>} : vector<64x64xf32>, vector<64x8xf32>, vector<64x8xf32> -> vector<64x8xf32>
    %c0_11 = arith.constant 0 : index
    %c0_12 = arith.constant 0 : index
    %14 = vector.load %arg5[%c0_11, %c0_12] : memref<64x8xf32, #tpu.memory_space<vmem>>, vector<64x8xf32>
    %cst_13 = arith.constant dense<0.000000e+00> : vector<64x8xf32>
    %15 = tpu.matmul %11, %14, %cst_13 {dimension_numbers = #tpu.dot_dimension_numbers<[0], [0], [1], [1], [0, 1, 1, 1], [], []>} : vector<64x64xf32>, vector<64x8xf32>, vector<64x8xf32> -> vector<64x8xf32>
    %16 = arith.addf %13, %15 : vector<64x8xf32>
    %c0_14 = arith.constant 0 : index
    %c0_15 = arith.constant 0 : index
    %17 = vector.load %arg6[%c0_14, %c0_15] : memref<1x8xf32, #tpu.memory_space<vmem>>, vector<1x8xf32>
    %18 = vector.broadcast %17 : vector<1x8xf32> to vector<64x8xf32>
    %19 = arith.addf %16, %18 : vector<64x8xf32>
    %cst_16 = arith.constant 0.000000e+00 : f32
    %20 = vector.broadcast %cst_16 : f32 to vector<64x8xf32>
    %21 = arith.maximumf %19, %20 : vector<64x8xf32>
    %22 = vector.extract_strided_slice %8 {offsets = [0, 16], sizes = [64, 8], strides = [1, 1]} : vector<64x24xf32> to vector<64x8xf32>
    %cst_17 = arith.constant dense<0.000000e+00> : vector<64xf32>
    %23 = vector.multi_reduction <add>, %22, %cst_17 [1] : vector<64x8xf32> to vector<64xf32>
    %24 = vector.shape_cast %23 : vector<64xf32> to vector<64x1xf32>
    %cst_18 = arith.constant 8.000000e+00 : f32
    %25 = vector.broadcast %cst_18 : f32 to vector<64x1xf32>
    %26 = arith.divf %24, %25 : vector<64x1xf32>
    %c0_19 = arith.constant 0 : index
    %c0_20 = arith.constant 0 : index
    %27 = vector.load %arg8[%c0_19, %c0_20] : memref<8x1xf32, #tpu.memory_space<vmem>>, vector<8x1xf32>
    %cst_21 = arith.constant dense<0.000000e+00> : vector<64x1xf32>
    %28 = tpu.matmul %21, %27, %cst_21 {dimension_numbers = #tpu.dot_dimension_numbers<[1], [0], [0], [1], [0, 0, 1, 1], [], []>} : vector<64x8xf32>, vector<8x1xf32>, vector<64x1xf32> -> vector<64x1xf32>
    %c0_22 = arith.constant 0 : index
    %c0_23 = arith.constant 0 : index
    %29 = vector.load %arg7[%c0_22, %c0_23] : memref<1x1xf32, #tpu.memory_space<vmem>>, vector<1x1xf32>
    %30 = vector.broadcast %29 : vector<1x1xf32> to vector<64x1xf32>
    %31 = arith.mulf %26, %30 : vector<64x1xf32>
    %32 = arith.addf %28, %31 : vector<64x1xf32>
    %c0_24 = arith.constant 0 : index
    %c0_25 = arith.constant 0 : index
    %33 = vector.load %arg9[%c0_24, %c0_25] : memref<1x1xf32, #tpu.memory_space<vmem>>, vector<1x1xf32>
    %34 = vector.broadcast %33 : vector<1x1xf32> to vector<64x1xf32>
    %35 = arith.addf %32, %34 : vector<64x1xf32>
    %cst_26 = arith.constant 0.000000e+00 : f32
    %36 = vector.broadcast %cst_26 : f32 to vector<64x1xf32>
    %37 = arith.maximumf %35, %36 : vector<64x1xf32>
    %c0_27 = arith.constant 0 : index
    %c0_28 = arith.constant 0 : index
    %38 = vector.load %arg10[%c0_27, %c0_28] : memref<1x1xf32, #tpu.memory_space<vmem>>, vector<1x1xf32>
    %cst_29 = arith.constant dense<0.000000e+00> : vector<64x1xf32>
    %39 = tpu.matmul %37, %38, %cst_29 {dimension_numbers = #tpu.dot_dimension_numbers<[1], [0], [0], [1], [0, 0, 1, 1], [], []>} : vector<64x1xf32>, vector<1x1xf32>, vector<64x1xf32> -> vector<64x1xf32>
    %c0_30 = arith.constant 0 : index
    %c0_31 = arith.constant 0 : index
    %40 = vector.load %arg11[%c0_30, %c0_31] : memref<1x1xf32, #tpu.memory_space<vmem>>, vector<1x1xf32>
    %41 = vector.broadcast %40 : vector<1x1xf32> to vector<64x1xf32>
    %42 = arith.addf %39, %41 : vector<64x1xf32>
    %43 = arith.negf %42 : vector<64x1xf32>
    %44 = math.exp %43 : vector<64x1xf32>
    %cst_32 = arith.constant 1.000000e+00 : f32
    %45 = vector.broadcast %cst_32 : f32 to vector<64x1xf32>
    %46 = arith.addf %45, %44 : vector<64x1xf32>
    %47 = arith.divf %45, %46 : vector<64x1xf32>
    %48 = vector.broadcast %47 : vector<64x1xf32> to vector<64x128xf32>
    %49 = arith.mulf %48, %1 : vector<64x128xf32>
    %c0_33 = arith.constant 0 : index
    %c0_34 = arith.constant 0 : index
    %50 = vector.load %arg12[%c0_33, %c0_34] : memref<64x24xf32, #tpu.memory_space<vmem>>, vector<64x24xf32>
    %cst_35 = arith.constant dense<0.000000e+00> : vector<128x24xf32>
    %51 = tpu.matmul %49, %50, %cst_35 {dimension_numbers = #tpu.dot_dimension_numbers<[0], [0], [1], [1], [0, 1, 1, 1], [], []>} : vector<64x128xf32>, vector<64x24xf32>, vector<128x24xf32> -> vector<128x24xf32>
    %c0_36 = arith.constant 0 : index
    %c0_37 = arith.constant 0 : index
    %52 = vector.load %arg13[%c0_36, %c0_37] : memref<1x24xf32, #tpu.memory_space<vmem>>, vector<1x24xf32>
    %53 = vector.broadcast %52 : vector<1x24xf32> to vector<128x24xf32>
    %54 = arith.addf %51, %53 : vector<128x24xf32>
    %cst_38 = arith.constant 0.000000e+00 : f32
    %55 = vector.broadcast %cst_38 : f32 to vector<128x24xf32>
    %56 = arith.maximumf %54, %55 : vector<128x24xf32>
    %57 = vector.extract_strided_slice %56 {offsets = [0, 0], sizes = [128, 8], strides = [1, 1]} : vector<128x24xf32> to vector<128x8xf32>
    %58 = vector.extract_strided_slice %56 {offsets = [0, 8], sizes = [128, 8], strides = [1, 1]} : vector<128x24xf32> to vector<128x8xf32>
    %cst_39 = arith.constant dense<0.000000e+00> : vector<128x128xf32>
    %59 = tpu.matmul %57, %58, %cst_39 {dimension_numbers = #tpu.dot_dimension_numbers<[1], [1], [0], [0], [0, 0, 1, 0], [], []>} : vector<128x8xf32>, vector<128x8xf32>, vector<128x128xf32> -> vector<128x128xf32>
    %c0_40 = arith.constant 0 : index
    %c0_41 = arith.constant 0 : index
    %60 = vector.load %arg14[%c0_40, %c0_41] : memref<128x8xf32, #tpu.memory_space<vmem>>, vector<128x8xf32>
    %cst_42 = arith.constant dense<0.000000e+00> : vector<128x8xf32>
    %61 = tpu.matmul %59, %60, %cst_42 {dimension_numbers = #tpu.dot_dimension_numbers<[1], [0], [0], [1], [0, 0, 1, 1], [], []>} : vector<128x128xf32>, vector<128x8xf32>, vector<128x8xf32> -> vector<128x8xf32>
    %c0_43 = arith.constant 0 : index
    %c0_44 = arith.constant 0 : index
    %62 = vector.load %arg15[%c0_43, %c0_44] : memref<128x8xf32, #tpu.memory_space<vmem>>, vector<128x8xf32>
    %cst_45 = arith.constant dense<0.000000e+00> : vector<128x8xf32>
    %63 = tpu.matmul %59, %62, %cst_45 {dimension_numbers = #tpu.dot_dimension_numbers<[0], [0], [1], [1], [0, 1, 1, 1], [], []>} : vector<128x128xf32>, vector<128x8xf32>, vector<128x8xf32> -> vector<128x8xf32>
    %64 = arith.addf %61, %63 : vector<128x8xf32>
    %c0_46 = arith.constant 0 : index
    %c0_47 = arith.constant 0 : index
    %65 = vector.load %arg16[%c0_46, %c0_47] : memref<1x8xf32, #tpu.memory_space<vmem>>, vector<1x8xf32>
    %66 = vector.broadcast %65 : vector<1x8xf32> to vector<128x8xf32>
    %67 = arith.addf %64, %66 : vector<128x8xf32>
    %cst_48 = arith.constant 0.000000e+00 : f32
    %68 = vector.broadcast %cst_48 : f32 to vector<128x8xf32>
    %69 = arith.maximumf %67, %68 : vector<128x8xf32>
    %70 = vector.extract_strided_slice %56 {offsets = [0, 16], sizes = [128, 8], strides = [1, 1]} : vector<128x24xf32> to vector<128x8xf32>
    %cst_49 = arith.constant dense<0.000000e+00> : vector<128xf32>
    %71 = vector.multi_reduction <add>, %70, %cst_49 [1] : vector<128x8xf32> to vector<128xf32>
    %72 = vector.shape_cast %71 : vector<128xf32> to vector<128x1xf32>
    %cst_50 = arith.constant 8.000000e+00 : f32
    %73 = vector.broadcast %cst_50 : f32 to vector<128x1xf32>
    %74 = arith.divf %72, %73 : vector<128x1xf32>
    %c0_51 = arith.constant 0 : index
    %c0_52 = arith.constant 0 : index
    %75 = vector.load %arg18[%c0_51, %c0_52] : memref<8x1xf32, #tpu.memory_space<vmem>>, vector<8x1xf32>
    %cst_53 = arith.constant dense<0.000000e+00> : vector<128x1xf32>
    %76 = tpu.matmul %69, %75, %cst_53 {dimension_numbers = #tpu.dot_dimension_numbers<[1], [0], [0], [1], [0, 0, 1, 1], [], []>} : vector<128x8xf32>, vector<8x1xf32>, vector<128x1xf32> -> vector<128x1xf32>
    %c0_54 = arith.constant 0 : index
    %c0_55 = arith.constant 0 : index
    %77 = vector.load %arg17[%c0_54, %c0_55] : memref<1x1xf32, #tpu.memory_space<vmem>>, vector<1x1xf32>
    %78 = vector.broadcast %77 : vector<1x1xf32> to vector<128x1xf32>
    %79 = arith.mulf %74, %78 : vector<128x1xf32>
    %80 = arith.addf %76, %79 : vector<128x1xf32>
    %c0_56 = arith.constant 0 : index
    %c0_57 = arith.constant 0 : index
    %81 = vector.load %arg19[%c0_56, %c0_57] : memref<1x1xf32, #tpu.memory_space<vmem>>, vector<1x1xf32>
    %82 = vector.broadcast %81 : vector<1x1xf32> to vector<128x1xf32>
    %83 = arith.addf %80, %82 : vector<128x1xf32>
    %cst_58 = arith.constant 0.000000e+00 : f32
    %84 = vector.broadcast %cst_58 : f32 to vector<128x1xf32>
    %85 = arith.maximumf %83, %84 : vector<128x1xf32>
    %c0_59 = arith.constant 0 : index
    %c0_60 = arith.constant 0 : index
    %86 = vector.load %arg20[%c0_59, %c0_60] : memref<1x1xf32, #tpu.memory_space<vmem>>, vector<1x1xf32>
    %cst_61 = arith.constant dense<0.000000e+00> : vector<128x1xf32>
    %87 = tpu.matmul %85, %86, %cst_61 {dimension_numbers = #tpu.dot_dimension_numbers<[1], [0], [0], [1], [0, 0, 1, 1], [], []>} : vector<128x1xf32>, vector<1x1xf32>, vector<128x1xf32> -> vector<128x1xf32>
    %c0_62 = arith.constant 0 : index
    %c0_63 = arith.constant 0 : index
    %88 = vector.load %arg21[%c0_62, %c0_63] : memref<1x1xf32, #tpu.memory_space<vmem>>, vector<1x1xf32>
    %89 = vector.broadcast %88 : vector<1x1xf32> to vector<128x1xf32>
    %90 = arith.addf %87, %89 : vector<128x1xf32>
    %91 = arith.negf %90 : vector<128x1xf32>
    %92 = math.exp %91 : vector<128x1xf32>
    %cst_64 = arith.constant 1.000000e+00 : f32
    %93 = vector.broadcast %cst_64 : f32 to vector<128x1xf32>
    %94 = arith.addf %93, %92 : vector<128x1xf32>
    %95 = arith.divf %93, %94 : vector<128x1xf32>
    %96 = tpu.transpose %95, [1, 0] : vector<128x1xf32> -> vector<1x128xf32>
    %97 = vector.broadcast %96 : vector<1x128xf32> to vector<64x128xf32>
    %98 = arith.mulf %49, %97 : vector<64x128xf32>
    %c0_65 = arith.constant 0 : index
    %c0_66 = arith.constant 0 : index
    %c0_67 = arith.constant 0 : index
    %99 = vector.load %arg22[%c0_65, %c0_66, %c0_67] : memref<1x64x128xf32, #tpu.memory_space<vmem>>, vector<1x64x128xf32>
    %100 = vector.shape_cast %99 : vector<1x64x128xf32> to vector<64x128xf32>
    %101 = vector.shape_cast %98 : vector<64x128xf32> to vector<1x64x128xf32>
    tpu.vector_store %arg22[%c0_65, %c0_66, %c0_67], %101 {strides = array<i32>} : memref<1x64x128xf32, #tpu.memory_space<vmem>>, vector<1x64x128xf32>,
    return
  }
  func.func @transform_0(%arg0: i32) -> (i32, i32, i32) {
    %c0_i32 = arith.constant 0 : i32
    %c0_i32_0 = arith.constant 0 : i32
    %c0_i32_1 = arith.constant 0 : i32
    return %arg0, %c0_i32, %c0_i32_0 : i32, i32, i32
  }
  func.func @transform_1(%arg0: i32) -> (i32, i32) {
    %c0_i32 = arith.constant 0 : i32
    %c0_i32_0 = arith.constant 0 : i32
    %c0_i32_1 = arith.constant 0 : i32
    return %c0_i32, %c0_i32_0 : i32, i32
  }
  func.func @transform_2(%arg0: i32) -> (i32, i32) {
    %c0_i32 = arith.constant 0 : i32
    %c0_i32_0 = arith.constant 0 : i32
    %c0_i32_1 = arith.constant 0 : i32
    return %c0_i32, %c0_i32_0 : i32, i32
  }
  func.func @transform_3(%arg0: i32) -> (i32, i32) {
    %c0_i32 = arith.constant 0 : i32
    %c0_i32_0 = arith.constant 0 : i32
    %c0_i32_1 = arith.constant 0 : i32
    return %c0_i32, %c0_i32_0 : i32, i32
  }
  func.func @transform_4(%arg0: i32) -> (i32, i32) {
    %c0_i32 = arith.constant 0 : i32
    %c0_i32_0 = arith.constant 0 : i32
    %c0_i32_1 = arith.constant 0 : i32
    return %c0_i32, %c0_i32_0 : i32, i32
  }
  func.func @transform_5(%arg0: i32) -> (i32, i32) {
    %c0_i32 = arith.constant 0 : i32
    %c0_i32_0 = arith.constant 0 : i32
    %c0_i32_1 = arith.constant 0 : i32
    return %c0_i32, %c0_i32_0 : i32, i32
  }
  func.func @transform_6(%arg0: i32) -> (i32, i32) {
    %c0_i32 = arith.constant 0 : i32
    %c0_i32_0 = arith.constant 0 : i32
    %c0_i32_1 = arith.constant 0 : i32
    return %c0_i32, %c0_i32_0 : i32, i32
  }
  func.func @transform_7(%arg0: i32) -> (i32, i32) {
    %c0_i32 = arith.constant 0 : i32
    %c0_i32_0 = arith.constant 0 : i32
    %c0_i32_1 = arith.constant 0 : i32
    return %c0_i32, %c0_i32_0 : i32, i32
  }
  func.func @transform_8(%arg0: i32) -> (i32, i32) {
    %c0_i32 = arith.constant 0 : i32
    %c0_i32_0 = arith.constant 0 : i32
    %c0_i32_1 = arith.constant 0 : i32
    return %c0_i32, %c0_i32_0 : i32, i32
  }
  func.func @transform_9(%arg0: i32) -> (i32, i32) {
    %c0_i32 = arith.constant 0 : i32
    %c0_i32_0 = arith.constant 0 : i32
    %c0_i32_1 = arith.constant 0 : i32
    return %c0_i32, %c0_i32_0 : i32, i32
  }
  func.func @transform_10(%arg0: i32) -> (i32, i32) {
    %c0_i32 = arith.constant 0 : i32
    %c0_i32_0 = arith.constant 0 : i32
    %c0_i32_1 = arith.constant 0 : i32
    return %c0_i32, %c0_i32_0 : i32, i32
  }
  func.func @transform_11(%arg0: i32) -> (i32, i32) {
    %c0_i32 = arith.constant 0 : i32
    %c0_i32_0 = arith.constant 0 : i32
    %c0_i32_1 = arith.constant 0 : i32
    return %c0_i32, %c0_i32_0 : i32, i32
  }
  func.func @transform_12(%arg0: i32) -> (i32, i32) {
    %c0_i32 = arith.constant 0 : i32
    %c0_i32_0 = arith.constant 0 : i32
    %c0_i32_1 = arith.constant 0 : i32
    return %c0_i32, %c0_i32_0 : i32, i32
  }
  func.func @transform_13(%arg0: i32) -> (i32, i32) {
    %c0_i32 = arith.constant 0 : i32
    %c0_i32_0 = arith.constant 0 : i32
    %c0_i32_1 = arith.constant 0 : i32
    return %c0_i32, %c0_i32_0 : i32, i32
  }
  func.func @transform_14(%arg0: i32) -> (i32, i32) {
    %c0_i32 = arith.constant 0 : i32
    %c0_i32_0 = arith.constant 0 : i32
    %c0_i32_1 = arith.constant 0 : i32
    return %c0_i32, %c0_i32_0 : i32, i32
  }
  func.func @transform_15(%arg0: i32) -> (i32, i32) {
    %c0_i32 = arith.constant 0 : i32
    %c0_i32_0 = arith.constant 0 : i32
    %c0_i32_1 = arith.constant 0 : i32
    return %c0_i32, %c0_i32_0 : i32, i32
  }
  func.func @transform_16(%arg0: i32) -> (i32, i32) {
    %c0_i32 = arith.constant 0 : i32
    %c0_i32_0 = arith.constant 0 : i32
    %c0_i32_1 = arith.constant 0 : i32
    return %c0_i32, %c0_i32_0 : i32, i32
  }
  func.func @transform_17(%arg0: i32) -> (i32, i32) {
    %c0_i32 = arith.constant 0 : i32
    %c0_i32_0 = arith.constant 0 : i32
    %c0_i32_1 = arith.constant 0 : i32
    return %c0_i32, %c0_i32_0 : i32, i32
  }
  func.func @transform_18(%arg0: i32) -> (i32, i32) {
    %c0_i32 = arith.constant 0 : i32
    %c0_i32_0 = arith.constant 0 : i32
    %c0_i32_1 = arith.constant 0 : i32
    return %c0_i32, %c0_i32_0 : i32, i32
  }
  func.func @transform_19(%arg0: i32) -> (i32, i32) {
    %c0_i32 = arith.constant 0 : i32
    %c0_i32_0 = arith.constant 0 : i32
    %c0_i32_1 = arith.constant 0 : i32
    return %c0_i32, %c0_i32_0 : i32, i32
  }
  func.func @transform_20(%arg0: i32) -> (i32, i32) {
    %c0_i32 = arith.constant 0 : i32
    %c0_i32_0 = arith.constant 0 : i32
    %c0_i32_1 = arith.constant 0 : i32
    return %c0_i32, %c0_i32_0 : i32, i32
  }
  func.func @transform_21(%arg0: i32) -> (i32, i32, i32) {
    %c0_i32 = arith.constant 0 : i32
    %c0_i32_0 = arith.constant 0 : i32
    %c0_i32_1 = arith.constant 0 : i32
    return %arg0, %c0_i32, %c0_i32_0 : i32, i32, i32
  }
}

</mosaic_0001>

<llo_original>
// kernel: tpu_custom_call.1
$region0: #{tpu_custom_call.1}
  #allocation0 [shape = 'u32[]', space=smem, size = 0x4, offset = 0x4, fixed_abs, tag = 'smem constant byte address 0x4 - core index']
  #allocation1 [shape = 'u32[144,128]{1,0:T(1,128)}', space=vmem, size = 0x12000, scoped, tag = 'internal scratch']
  #allocation2 [shape = 'f32[1,1]{1,0:T(1,128)S(1)}', space=vmem, size = 0x200, scoped, tag = 'scoped memory for tpu_custom_call.1']
  #allocation3 [shape = 'f32[1,1]{1,0:T(1,128)S(1)}', space=vmem, size = 0x200, scoped, tag = 'scoped memory for tpu_custom_call.1']
  #allocation4 [shape = 'f32[1,1]{1,0:T(1,128)S(1)}', space=vmem, size = 0x200, scoped, tag = 'scoped memory for tpu_custom_call.1']
  #allocation5 [shape = 'f32[1,1]{1,0:T(1,128)S(1)}', space=vmem, size = 0x200, scoped, tag = 'scoped memory for tpu_custom_call.1']
  #allocation6 [shape = 'f32[1,1]{1,0:T(1,128)S(1)}', space=vmem, size = 0x200, scoped, tag = 'scoped memory for tpu_custom_call.1']
  #allocation7 [shape = 'f32[1,1]{1,0:T(1,128)S(1)}', space=vmem, size = 0x200, scoped, tag = 'scoped memory for tpu_custom_call.1']
  #allocation8 [shape = 'f32[1,1]{1,0:T(1,128)S(1)}', space=vmem, size = 0x200, scoped, tag = 'scoped memory for tpu_custom_call.1']
  #allocation9 [shape = 'f32[1,1]{1,0:T(1,128)S(1)}', space=vmem, size = 0x200, scoped, tag = 'scoped memory for tpu_custom_call.1']
  %s0 = inlined_call_operand.hbm [shape: f32[2,64,128], index: 0, kind: input, shape index: {}]
  %s1 = inlined_call_operand.hbm [shape: f32[128,24], index: 1, kind: input, shape index: {}]
  %s2 = inlined_call_operand.hbm [shape: f32[1,24], index: 2, kind: input, shape index: {}]
  %s3 = inlined_call_operand.hbm [shape: f32[64,8], index: 3, kind: input, shape index: {}]
  %s4 = inlined_call_operand.hbm [shape: f32[64,8], index: 4, kind: input, shape index: {}]
  %s5 = inlined_call_operand.hbm [shape: f32[1,8], index: 5, kind: input, shape index: {}]
  %s6 = inlined_call_operand.<no memory space> [shape: f32[1,1], index: 6, kind: input, shape index: {}]
  %s7 = inlined_call_operand.hbm [shape: f32[8,1], index: 7, kind: input, shape index: {}]
  %s8 = inlined_call_operand.<no memory space> [shape: f32[1,1], index: 8, kind: input, shape index: {}]
  %s9 = inlined_call_operand.<no memory space> [shape: f32[1,1], index: 9, kind: input, shape index: {}]
  %s10 = inlined_call_operand.<no memory space> [shape: f32[1,1], index: 10, kind: input, shape index: {}]
  %s11 = inlined_call_operand.hbm [shape: f32[64,24], index: 11, kind: input, shape index: {}]
  %s12 = inlined_call_operand.hbm [shape: f32[1,24], index: 12, kind: input, shape index: {}]
  %s13 = inlined_call_operand.hbm [shape: f32[128,8], index: 13, kind: input, shape index: {}]
  %s14 = inlined_call_operand.hbm [shape: f32[128,8], index: 14, kind: input, shape index: {}]
  %s15 = inlined_call_operand.hbm [shape: f32[1,8], index: 15, kind: input, shape index: {}]
  %s16 = inlined_call_operand.<no memory space> [shape: f32[1,1], index: 16, kind: input, shape index: {}]
  %s17 = inlined_call_operand.hbm [shape: f32[8,1], index: 17, kind: input, shape index: {}]
  %s18 = inlined_call_operand.<no memory space> [shape: f32[1,1], index: 18, kind: input, shape index: {}]
  %s19 = inlined_call_operand.<no memory space> [shape: f32[1,1], index: 19, kind: input, shape index: {}]
  %s20 = inlined_call_operand.<no memory space> [shape: f32[1,1], index: 20, kind: input, shape index: {}]
  %s21 = inlined_call_operand.hbm [shape: f32[2,64,128], index: 21, kind: output, shape index: {}]
  %s22 = sld [smem:[#allocation0]]
  $region169: #{tpu_custom_call.1} parent=0
    _
  %s24 = ssub.s32 1, %s22
  %s25 = scalar_select 0, %s24, %s22
  %v26 = vstv %s6
  %27 = vst [vmem:[#allocation2] sm:$0x1] %v26
  %v28 = vstv %s8
  %29 = vst [vmem:[#allocation3] sm:$0x1] %v28
  %v30 = vstv %s9
  %31 = vst [vmem:[#allocation4] sm:$0x1] %v30
  %v32 = vstv %s10
  %33 = vst [vmem:[#allocation5] sm:$0x1] %v32
  %v34 = vstv %s16
  %35 = vst [vmem:[#allocation6] sm:$0x1] %v34
  %v36 = vstv %s18
  %37 = vst [vmem:[#allocation7] sm:$0x1] %v36
  %v38 = vstv %s19
  %39 = vst [vmem:[#allocation8] sm:$0x1] %v38
  %v40 = vstv %s20
  %41 = vst [vmem:[#allocation9] sm:$0x1] %v40
  $region1: #{tpu_custom_call.1} parent=0
    #allocation10 [shape = 'u8[65536]{0}', space=vmem, size = 0x10000, scoped, tag = 'input window, operand 0']
    #allocation11 [shape = 's32[2]{0}', space=sflag, size = 0x8, scoped, tag = 'scoped memory for tpu_custom_call.1']
    #allocation12 [shape = 's32[2]{0}', space=sflag, size = 0x8, scoped, tag = 'scoped memory for tpu_custom_call.1']
    #allocation13 [shape = 'u8[65536]{0}', space=vmem, size = 0x10000, scoped, tag = 'input window, operand 1, single buffered']
    #allocation14 [shape = 's32[1]{0}', space=sflag, size = 0x4, scoped, tag = 'scoped memory for tpu_custom_call.1']
    #allocation15 [shape = 'u8[512]{0}', space=vmem, size = 0x400, scoped, tag = 'input window, operand 2, single buffered']
    #allocation16 [shape = 'u8[32768]{0}', space=vmem, size = 0x8000, scoped, tag = 'input window, operand 3, single buffered']
    #allocation17 [shape = 's32[1]{0}', space=sflag, size = 0x4, scoped, tag = 'scoped memory for tpu_custom_call.1']
    #allocation18 [shape = 'u8[32768]{0}', space=vmem, size = 0x8000, scoped, tag = 'input window, operand 4, single buffered']
    #allocation19 [shape = 'u8[512]{0}', space=vmem, size = 0x400, scoped, tag = 'input window, operand 5, single buffered']
    #allocation20 [shape = 's32[1]{0}', space=sflag, size = 0x4, scoped, tag = 'scoped memory for tpu_custom_call.1']
    #allocation21 [shape = 'u8[4096]{0}', space=vmem, size = 0x1000, scoped, tag = 'input window, operand 7, single buffered']
    #allocation22 [shape = 'u8[32768]{0}', space=vmem, size = 0x8000, scoped, tag = 'input window, operand 11, single buffered']
    #allocation23 [shape = 's32[1]{0}', space=sflag, size = 0x4, scoped, tag = 'scoped memory for tpu_custom_call.1']
    #allocation24 [shape = 'u8[512]{0}', space=vmem, size = 0x400, scoped, tag = 'input window, operand 12, single buffered']
    #allocation25 [shape = 'u8[65536]{0}', space=vmem, size = 0x10000, scoped, tag = 'input window, operand 13, single buffered']
    #allocation26 [shape = 's32[1]{0}', space=sflag, size = 0x4, scoped, tag = 'scoped memory for tpu_custom_call.1']
    #allocation27 [shape = 'u8[65536]{0}', space=vmem, size = 0x10000, scoped, tag = 'input window, operand 14, single buffered']
    #allocation28 [shape = 'u8[512]{0}', space=vmem, size = 0x400, scoped, tag = 'input window, operand 15, single buffered']
    #allocation29 [shape = 's32[1]{0}', space=sflag, size = 0x4, scoped, tag = 'scoped memory for tpu_custom_call.1']
    #allocation30 [shape = 'u8[4096]{0}', space=vmem, size = 0x1000, scoped, tag = 'input window, operand 17, single buffered']
    #allocation31 [shape = 'u8[65536]{0}', space=vmem, size = 0x10000, scoped, tag = 'output window, operand 0']
    %42 = vsyncpa [#allocation11], 0
    %s43 = scalar_lea.sflag [#allocation11], 1
    %44 = vsyncpa %s43, 0
    %45 = vsyncpa [#allocation14], 0
    %46 = vsyncpa [#allocation17], 0
    %47 = vsyncpa [#allocation20], 0
    %48 = vsyncpa [#allocation23], 0
    %49 = vsyncpa [#allocation26], 0
    %50 = vsyncpa [#allocation29], 0
    %51 = vsyncpa [#allocation12], 0
    %s52 = scalar_lea.sflag [#allocation12], 1
    %53 = vsyncpa %s52, 0
    loop: start=0, step=1, limit=4
    $region2: #{tpu_custom_call.1} parent=1 // loop_pre_header
      _
    $region3: #{tpu_custom_call.1} parent=1 // loop_header
      %s55 = sphi 0, %s59
      %p56 = scmp.ge.s32.totalorder %s55, 4
      %s65 = sphi 0, %s67
      %s68 = sphi 0, %s65
      %s69 = sphi 0, %s68
      %s85 = sphi 0, %s69
      %s89 = sphi 0, %s89
      %s91 = sphi 0, %s89
      %s92 = sphi 0, %s91
      %s106 = sphi 0, %s92
      %s110 = sphi 0, %s110
      %s112 = sphi 0, %s110
      %s113 = sphi 0, %s112
      %s127 = sphi 0, %s113
      %s131 = sphi 0, %s131
      %s133 = sphi 0, %s131
      %s134 = sphi 0, %s133
      %s148 = sphi 0, %s134
      %s152 = sphi 0, %s152
      %s154 = sphi 0, %s152
      %s155 = sphi 0, %s154
      %s169 = sphi 0, %s155
      %s173 = sphi 0, %s173
      %s175 = sphi 0, %s173
      %s176 = sphi 0, %s175
      %s190 = sphi 0, %s176
      %s194 = sphi 0, %s194
      %s196 = sphi 0, %s194
      %s197 = sphi 0, %s196
      %s211 = sphi 0, %s197
      %s215 = sphi 0, %s215
      %s217 = sphi 0, %s215
      %s218 = sphi 0, %s217
      %s232 = sphi 0, %s218
      %s236 = sphi 0, %s236
      %s238 = sphi 0, %s236
      %s239 = sphi 0, %s238
      %s253 = sphi 0, %s239
      %s257 = sphi 0, %s257
      %s259 = sphi 0, %s257
      %s260 = sphi 0, %s259
      %s274 = sphi 0, %s260
      %s278 = sphi 0, %s278
      %s280 = sphi 0, %s278
      %s281 = sphi 0, %s280
      %s295 = sphi 0, %s281
      %s299 = sphi 0, %s299
      %s301 = sphi 0, %s299
      %s302 = sphi 0, %s301
      %s316 = sphi 0, %s302
      %s320 = sphi 0, %s320
      %s322 = sphi 0, %s320
      %s323 = sphi 0, %s322
      %s337 = sphi 0, %s323
      %s341 = sphi 0, %s341
      %s343 = sphi 0, %s341
      %s344 = sphi 0, %s343
      %s358 = sphi 0, %s344
      %s362 = sphi 0, %s362
      %s364 = sphi 0, %s362
      %s365 = sphi 0, %s364
      %s379 = sphi 0, %s365
      %s383 = sphi 0, %s383
      %s385 = sphi 0, %s383
      %s386 = sphi 0, %s385
      %s400 = sphi 0, %s386
      %s404 = sphi 0, %s404
      %s406 = sphi 0, %s404
      %s407 = sphi 0, %s406
      %s421 = sphi 0, %s407
      %s425 = sphi 0, %s425
      %s427 = sphi 0, %s425
      %s428 = sphi 0, %s427
      %s442 = sphi 0, %s428
      %s446 = sphi 0, %s446
      %s448 = sphi 0, %s446
      %s449 = sphi 0, %s448
      %s463 = sphi 0, %s449
      %s467 = sphi 0, %s467
      %s469 = sphi 0, %s467
      %s470 = sphi 0, %s469
      %s484 = sphi 0, %s470
      %s488 = sphi 0, %s488
      %s490 = sphi 0, %s488
      %s491 = sphi 0, %s490
      %s505 = sphi 0, %s491
      %s511 = sphi 0, %s513
      %s514 = sphi 0, %s511
      %s515 = sphi 0, %s514
      %s531 = sphi 0, %s515
    $region4: #{tpu_custom_call.1} parent=1 // loop_header_branch
      %58 = sbr.rel (%p56) target = $region8
    $region5: #{tpu_custom_call.1} parent=1 // loop_body
      %s60 = ssub.s32 %s55, 1
      %s61 = ssub.s32 %s55, 2
      %s62 = sadd.s32 %s55, 1
      %s63 = ssub.s32 %s55, %s62
      %p64 = scmp.eq.s32.totalorder %s63, 0
      %s66 = sadd.s32 %s65, 1
      %s67 = scalar_select %p64, %s65, %s66
      %p70 = pneg %p64
      %p71 = scmp.eq.s32.totalorder %s55, 1
      %p72 = por %p70, %p71
      %p73 = scmp.ne.s32.totalorder %s65, %s68
      %p74 = scmp.eq.s32.totalorder %s55, 0
      %p75 = por %p73, %p74
      %p76 = scmp.ne.s32.totalorder %s65, %s68
      %p77 = scmp.eq.s32.totalorder %s60, 1
      %p78 = por %p76, %p77
      %p79 = scmp.ne.s32.totalorder %s68, %s69
      %p80 = scmp.eq.s32.totalorder %s60, 0
      %p81 = por %p79, %p80
      %p82 = scmp.ne.s32.totalorder %s68, %s69
      %p83 = scmp.eq.s32.totalorder %s61, 1
      %p84 = por %p82, %p83
      %p86 = scmp.ne.s32.totalorder %s69, %s85
      %p87 = scmp.eq.s32.totalorder %s61, 0
      %p88 = por %p86, %p87
      %s90 = sadd.s32 %s89, 1
      %p93 = scmp.eq.s32.totalorder %s55, 1
      %p94 = scmp.ne.s32.totalorder %s89, %s91
      %p95 = scmp.eq.s32.totalorder %s55, 0
      %p96 = por %p94, %p95
      %p97 = scmp.ne.s32.totalorder %s89, %s91
      %p98 = scmp.eq.s32.totalorder %s60, 1
      %p99 = por %p97, %p98
      %p100 = scmp.ne.s32.totalorder %s91, %s92
      %p101 = scmp.eq.s32.totalorder %s60, 0
      %p102 = por %p100, %p101
      %p103 = scmp.ne.s32.totalorder %s91, %s92
      %p104 = scmp.eq.s32.totalorder %s61, 1
      %p105 = por %p103, %p104
      %p107 = scmp.ne.s32.totalorder %s92, %s106
      %p108 = scmp.eq.s32.totalorder %s61, 0
      %p109 = por %p107, %p108
      %s111 = sadd.s32 %s110, 1
      %p114 = scmp.eq.s32.totalorder %s55, 1
      %p115 = scmp.ne.s32.totalorder %s110, %s112
      %p116 = scmp.eq.s32.totalorder %s55, 0
      %p117 = por %p115, %p116
      %p118 = scmp.ne.s32.totalorder %s110, %s112
      %p119 = scmp.eq.s32.totalorder %s60, 1
      %p120 = por %p118, %p119
      %p121 = scmp.ne.s32.totalorder %s112, %s113
      %p122 = scmp.eq.s32.totalorder %s60, 0
      %p123 = por %p121, %p122
      %p124 = scmp.ne.s32.totalorder %s112, %s113
      %p125 = scmp.eq.s32.totalorder %s61, 1
      %p126 = por %p124, %p125
      %p128 = scmp.ne.s32.totalorder %s113, %s127
      %p129 = scmp.eq.s32.totalorder %s61, 0
      %p130 = por %p128, %p129
      %s132 = sadd.s32 %s131, 1
      %p135 = scmp.eq.s32.totalorder %s55, 1
      %p136 = scmp.ne.s32.totalorder %s131, %s133
      %p137 = scmp.eq.s32.totalorder %s55, 0
      %p138 = por %p136, %p137
      %p139 = scmp.ne.s32.totalorder %s131, %s133
      %p140 = scmp.eq.s32.totalorder %s60, 1
      %p141 = por %p139, %p140
      %p142 = scmp.ne.s32.totalorder %s133, %s134
      %p143 = scmp.eq.s32.totalorder %s60, 0
      %p144 = por %p142, %p143
      %p145 = scmp.ne.s32.totalorder %s133, %s134
      %p146 = scmp.eq.s32.totalorder %s61, 1
      %p147 = por %p145, %p146
      %p149 = scmp.ne.s32.totalorder %s134, %s148
      %p150 = scmp.eq.s32.totalorder %s61, 0
      %p151 = por %p149, %p150
      %s153 = sadd.s32 %s152, 1
      %p156 = scmp.eq.s32.totalorder %s55, 1
      %p157 = scmp.ne.s32.totalorder %s152, %s154
      %p158 = scmp.eq.s32.totalorder %s55, 0
      %p159 = por %p157, %p158
      %p160 = scmp.ne.s32.totalorder %s152, %s154
      %p161 = scmp.eq.s32.totalorder %s60, 1
      %p162 = por %p160, %p161
      %p163 = scmp.ne.s32.totalorder %s154, %s155
      %p164 = scmp.eq.s32.totalorder %s60, 0
      %p165 = por %p163, %p164
      %p166 = scmp.ne.s32.totalorder %s154, %s155
      %p167 = scmp.eq.s32.totalorder %s61, 1
      %p168 = por %p166, %p167
      %p170 = scmp.ne.s32.totalorder %s155, %s169
      %p171 = scmp.eq.s32.totalorder %s61, 0
      %p172 = por %p170, %p171
      %s174 = sadd.s32 %s173, 1
      %p177 = scmp.eq.s32.totalorder %s55, 1
      %p178 = scmp.ne.s32.totalorder %s173, %s175
      %p179 = scmp.eq.s32.totalorder %s55, 0
      %p180 = por %p178, %p179
      %p181 = scmp.ne.s32.totalorder %s173, %s175
      %p182 = scmp.eq.s32.totalorder %s60, 1
      %p183 = por %p181, %p182
      %p184 = scmp.ne.s32.totalorder %s175, %s176
      %p185 = scmp.eq.s32.totalorder %s60, 0
      %p186 = por %p184, %p185
      %p187 = scmp.ne.s32.totalorder %s175, %s176
      %p188 = scmp.eq.s32.totalorder %s61, 1
      %p189 = por %p187, %p188
      %p191 = scmp.ne.s32.totalorder %s176, %s190
      %p192 = scmp.eq.s32.totalorder %s61, 0
      %p193 = por %p191, %p192
      %s195 = sadd.s32 %s194, 1
      %p198 = scmp.eq.s32.totalorder %s55, 1
      %p199 = scmp.ne.s32.totalorder %s194, %s196
      %p200 = scmp.eq.s32.totalorder %s55, 0
      %p201 = por %p199, %p200
      %p202 = scmp.ne.s32.totalorder %s194, %s196
      %p203 = scmp.eq.s32.totalorder %s60, 1
      %p204 = por %p202, %p203
      %p205 = scmp.ne.s32.totalorder %s196, %s197
      %p206 = scmp.eq.s32.totalorder %s60, 0
      %p207 = por %p205, %p206
      %p208 = scmp.ne.s32.totalorder %s196, %s197
      %p209 = scmp.eq.s32.totalorder %s61, 1
      %p210 = por %p208, %p209
      %p212 = scmp.ne.s32.totalorder %s197, %s211
      %p213 = scmp.eq.s32.totalorder %s61, 0
      %p214 = por %p212, %p213
      %s216 = sadd.s32 %s215, 1
      %p219 = scmp.eq.s32.totalorder %s55, 1
      %p220 = scmp.ne.s32.totalorder %s215, %s217
      %p221 = scmp.eq.s32.totalorder %s55, 0
      %p222 = por %p220, %p221
      %p223 = scmp.ne.s32.totalorder %s215, %s217
      %p224 = scmp.eq.s32.totalorder %s60, 1
      %p225 = por %p223, %p224
      %p226 = scmp.ne.s32.totalorder %s217, %s218
      %p227 = scmp.eq.s32.totalorder %s60, 0
      %p228 = por %p226, %p227
      %p229 = scmp.ne.s32.totalorder %s217, %s218
      %p230 = scmp.eq.s32.totalorder %s61, 1
      %p231 = por %p229, %p230
      %p233 = scmp.ne.s32.totalorder %s218, %s232
      %p234 = scmp.eq.s32.totalorder %s61, 0
      %p235 = por %p233, %p234
      %s237 = sadd.s32 %s236, 1
      %p240 = scmp.eq.s32.totalorder %s55, 1
      %p241 = scmp.ne.s32.totalorder %s236, %s238
      %p242 = scmp.eq.s32.totalorder %s55, 0
      %p243 = por %p241, %p242
      %p244 = scmp.ne.s32.totalorder %s236, %s238
      %p245 = scmp.eq.s32.totalorder %s60, 1
      %p246 = por %p244, %p245
      %p247 = scmp.ne.s32.totalorder %s238, %s239
      %p248 = scmp.eq.s32.totalorder %s60, 0
      %p249 = por %p247, %p248
      %p250 = scmp.ne.s32.totalorder %s238, %s239
      %p251 = scmp.eq.s32.totalorder %s61, 1
      %p252 = por %p250, %p251
      %p254 = scmp.ne.s32.totalorder %s239, %s253
      %p255 = scmp.eq.s32.totalorder %s61, 0
      %p256 = por %p254, %p255
      %s258 = sadd.s32 %s257, 1
      %p261 = scmp.eq.s32.totalorder %s55, 1
      %p262 = scmp.ne.s32.totalorder %s257, %s259
      %p263 = scmp.eq.s32.totalorder %s55, 0
      %p264 = por %p262, %p263
      %p265 = scmp.ne.s32.totalorder %s257, %s259
      %p266 = scmp.eq.s32.totalorder %s60, 1
      %p267 = por %p265, %p266
      %p268 = scmp.ne.s32.totalorder %s259, %s260
      %p269 = scmp.eq.s32.totalorder %s60, 0
      %p270 = por %p268, %p269
      %p271 = scmp.ne.s32.totalorder %s259, %s260
      %p272 = scmp.eq.s32.totalorder %s61, 1
      %p273 = por %p271, %p272
      %p275 = scmp.ne.s32.totalorder %s260, %s274
      %p276 = scmp.eq.s32.totalorder %s61, 0
      %p277 = por %p275, %p276
      %s279 = sadd.s32 %s278, 1
      %p282 = scmp.eq.s32.totalorder %s55, 1
      %p283 = scmp.ne.s32.totalorder %s278, %s280
      %p284 = scmp.eq.s32.totalorder %s55, 0
      %p285 = por %p283, %p284
      %p286 = scmp.ne.s32.totalorder %s278, %s280
      %p287 = scmp.eq.s32.totalorder %s60, 1
      %p288 = por %p286, %p287
      %p289 = scmp.ne.s32.totalorder %s280, %s281
      %p290 = scmp.eq.s32.totalorder %s60, 0
      %p291 = por %p289, %p290
      %p292 = scmp.ne.s32.totalorder %s280, %s281
      %p293 = scmp.eq.s32.totalorder %s61, 1
      %p294 = por %p292, %p293
      %p296 = scmp.ne.s32.totalorder %s281, %s295
      %p297 = scmp.eq.s32.totalorder %s61, 0
      %p298 = por %p296, %p297
      %s300 = sadd.s32 %s299, 1
      %p303 = scmp.eq.s32.totalorder %s55, 1
      %p304 = scmp.ne.s32.totalorder %s299, %s301
      %p305 = scmp.eq.s32.totalorder %s55, 0
      %p306 = por %p304, %p305
      %p307 = scmp.ne.s32.totalorder %s299, %s301
      %p308 = scmp.eq.s32.totalorder %s60, 1
      %p309 = por %p307, %p308
      %p310 = scmp.ne.s32.totalorder %s301, %s302
      %p311 = scmp.eq.s32.totalorder %s60, 0
      %p312 = por %p310, %p311
      %p313 = scmp.ne.s32.totalorder %s301, %s302
      %p314 = scmp.eq.s32.totalorder %s61, 1
      %p315 = por %p313, %p314
      %p317 = scmp.ne.s32.totalorder %s302, %s316
      %p318 = scmp.eq.s32.totalorder %s61, 0
      %p319 = por %p317, %p318
      %s321 = sadd.s32 %s320, 1
      %p324 = scmp.eq.s32.totalorder %s55, 1
      %p325 = scmp.ne.s32.totalorder %s320, %s322
      %p326 = scmp.eq.s32.totalorder %s55, 0
      %p327 = por %p325, %p326
      %p328 = scmp.ne.s32.totalorder %s320, %s322
      %p329 = scmp.eq.s32.totalorder %s60, 1
      %p330 = por %p328, %p329
      %p331 = scmp.ne.s32.totalorder %s322, %s323
      %p332 = scmp.eq.s32.totalorder %s60, 0
      %p333 = por %p331, %p332
      %p334 = scmp.ne.s32.totalorder %s322, %s323
      %p335 = scmp.eq.s32.totalorder %s61, 1
      %p336 = por %p334, %p335
      %p338 = scmp.ne.s32.totalorder %s323, %s337
      %p339 = scmp.eq.s32.totalorder %s61, 0
      %p340 = por %p338, %p339
      %s342 = sadd.s32 %s341, 1
      %p345 = scmp.eq.s32.totalorder %s55, 1
      %p346 = scmp.ne.s32.totalorder %s341, %s343
      %p347 = scmp.eq.s32.totalorder %s55, 0
      %p348 = por %p346, %p347
      %p349 = scmp.ne.s32.totalorder %s341, %s343
      %p350 = scmp.eq.s32.totalorder %s60, 1
      %p351 = por %p349, %p350
      %p352 = scmp.ne.s32.totalorder %s343, %s344
      %p353 = scmp.eq.s32.totalorder %s60, 0
      %p354 = por %p352, %p353
      %p355 = scmp.ne.s32.totalorder %s343, %s344
      %p356 = scmp.eq.s32.totalorder %s61, 1
      %p357 = por %p355, %p356
      %p359 = scmp.ne.s32.totalorder %s344, %s358
      %p360 = scmp.eq.s32.totalorder %s61, 0
      %p361 = por %p359, %p360
      %s363 = sadd.s32 %s362, 1
      %p366 = scmp.eq.s32.totalorder %s55, 1
      %p367 = scmp.ne.s32.totalorder %s362, %s364
      %p368 = scmp.eq.s32.totalorder %s55, 0
      %p369 = por %p367, %p368
      %p370 = scmp.ne.s32.totalorder %s362, %s364
      %p371 = scmp.eq.s32.totalorder %s60, 1
      %p372 = por %p370, %p371
      %p373 = scmp.ne.s32.totalorder %s364, %s365
      %p374 = scmp.eq.s32.totalorder %s60, 0
      %p375 = por %p373, %p374
      %p376 = scmp.ne.s32.totalorder %s364, %s365
      %p377 = scmp.eq.s32.totalorder %s61, 1
      %p378 = por %p376, %p377
      %p380 = scmp.ne.s32.totalorder %s365, %s379
      %p381 = scmp.eq.s32.totalorder %s61, 0
      %p382 = por %p380, %p381
      %s384 = sadd.s32 %s383, 1
      %p387 = scmp.eq.s32.totalorder %s55, 1
      %p388 = scmp.ne.s32.totalorder %s383, %s385
      %p389 = scmp.eq.s32.totalorder %s55, 0
      %p390 = por %p388, %p389
      %p391 = scmp.ne.s32.totalorder %s383, %s385
      %p392 = scmp.eq.s32.totalorder %s60, 1
      %p393 = por %p391, %p392
      %p394 = scmp.ne.s32.totalorder %s385, %s386
      %p395 = scmp.eq.s32.totalorder %s60, 0
      %p396 = por %p394, %p395
      %p397 = scmp.ne.s32.totalorder %s385, %s386
      %p398 = scmp.eq.s32.totalorder %s61, 1
      %p399 = por %p397, %p398
      %p401 = scmp.ne.s32.totalorder %s386, %s400
      %p402 = scmp.eq.s32.totalorder %s61, 0
      %p403 = por %p401, %p402
      %s405 = sadd.s32 %s404, 1
      %p408 = scmp.eq.s32.totalorder %s55, 1
      %p409 = scmp.ne.s32.totalorder %s404, %s406
      %p410 = scmp.eq.s32.totalorder %s55, 0
      %p411 = por %p409, %p410
      %p412 = scmp.ne.s32.totalorder %s404, %s406
      %p413 = scmp.eq.s32.totalorder %s60, 1
      %p414 = por %p412, %p413
      %p415 = scmp.ne.s32.totalorder %s406, %s407
      %p416 = scmp.eq.s32.totalorder %s60, 0
      %p417 = por %p415, %p416
      %p418 = scmp.ne.s32.totalorder %s406, %s407
      %p419 = scmp.eq.s32.totalorder %s61, 1
      %p420 = por %p418, %p419
      %p422 = scmp.ne.s32.totalorder %s407, %s421
      %p423 = scmp.eq.s32.totalorder %s61, 0
      %p424 = por %p422, %p423
      %s426 = sadd.s32 %s425, 1
      %p429 = scmp.eq.s32.totalorder %s55, 1
      %p430 = scmp.ne.s32.totalorder %s425, %s427
      %p431 = scmp.eq.s32.totalorder %s55, 0
      %p432 = por %p430, %p431
      %p433 = scmp.ne.s32.totalorder %s425, %s427
      %p434 = scmp.eq.s32.totalorder %s60, 1
      %p435 = por %p433, %p434
      %p436 = scmp.ne.s32.totalorder %s427, %s428
      %p437 = scmp.eq.s32.totalorder %s60, 0
      %p438 = por %p436, %p437
      %p439 = scmp.ne.s32.totalorder %s427, %s428
      %p440 = scmp.eq.s32.totalorder %s61, 1
      %p441 = por %p439, %p440
      %p443 = scmp.ne.s32.totalorder %s428, %s442
      %p444 = scmp.eq.s32.totalorder %s61, 0
      %p445 = por %p443, %p444
      %s447 = sadd.s32 %s446, 1
      %p450 = scmp.eq.s32.totalorder %s55, 1
      %p451 = scmp.ne.s32.totalorder %s446, %s448
      %p452 = scmp.eq.s32.totalorder %s55, 0
      %p453 = por %p451, %p452
      %p454 = scmp.ne.s32.totalorder %s446, %s448
      %p455 = scmp.eq.s32.totalorder %s60, 1
      %p456 = por %p454, %p455
      %p457 = scmp.ne.s32.totalorder %s448, %s449
      %p458 = scmp.eq.s32.totalorder %s60, 0
      %p459 = por %p457, %p458
      %p460 = scmp.ne.s32.totalorder %s448, %s449
      %p461 = scmp.eq.s32.totalorder %s61, 1
      %p462 = por %p460, %p461
      %p464 = scmp.ne.s32.totalorder %s449, %s463
      %p465 = scmp.eq.s32.totalorder %s61, 0
      %p466 = por %p464, %p465
      %s468 = sadd.s32 %s467, 1
      %p471 = scmp.eq.s32.totalorder %s55, 1
      %p472 = scmp.ne.s32.totalorder %s467, %s469
      %p473 = scmp.eq.s32.totalorder %s55, 0
      %p474 = por %p472, %p473
      %p475 = scmp.ne.s32.totalorder %s467, %s469
      %p476 = scmp.eq.s32.totalorder %s60, 1
      %p477 = por %p475, %p476
      %p478 = scmp.ne.s32.totalorder %s469, %s470
      %p479 = scmp.eq.s32.totalorder %s60, 0
      %p480 = por %p478, %p479
      %p481 = scmp.ne.s32.totalorder %s469, %s470
      %p482 = scmp.eq.s32.totalorder %s61, 1
      %p483 = por %p481, %p482
      %p485 = scmp.ne.s32.totalorder %s470, %s484
      %p486 = scmp.eq.s32.totalorder %s61, 0
      %p487 = por %p485, %p486
      %s489 = sadd.s32 %s488, 1
      %p492 = scmp.eq.s32.totalorder %s55, 1
      %p493 = scmp.ne.s32.totalorder %s488, %s490
      %p494 = scmp.eq.s32.totalorder %s55, 0
      %p495 = por %p493, %p494
      %p496 = scmp.ne.s32.totalorder %s488, %s490
      %p497 = scmp.eq.s32.totalorder %s60, 1
      %p498 = por %p496, %p497
      %p499 = scmp.ne.s32.totalorder %s490, %s491
      %p500 = scmp.eq.s32.totalorder %s60, 0
      %p501 = por %p499, %p500
      %p502 = scmp.ne.s32.totalorder %s490, %s491
      %p503 = scmp.eq.s32.totalorder %s61, 1
      %p504 = por %p502, %p503
      %p506 = scmp.ne.s32.totalorder %s491, %s505
      %p507 = scmp.eq.s32.totalorder %s61, 0
      %p508 = por %p506, %p507
      %s509 = ssub.s32 %s55, %s62
      %p510 = scmp.eq.s32.totalorder %s509, 0
      %s512 = sadd.s32 %s511, 1
      %s513 = scalar_select %p510, %s511, %s512
      %p516 = pneg %p510
      %p517 = scmp.eq.s32.totalorder %s55, 1
      %p518 = por %p516, %p517
      %p519 = scmp.ne.s32.totalorder %s511, %s514
      %p520 = scmp.eq.s32.totalorder %s55, 0
      %p521 = por %p519, %p520
      %p522 = scmp.ne.s32.totalorder %s511, %s514
      %p523 = scmp.eq.s32.totalorder %s60, 1
      %p524 = por %p522, %p523
      %p525 = scmp.ne.s32.totalorder %s514, %s515
      %p526 = scmp.eq.s32.totalorder %s60, 0
      %p527 = por %p525, %p526
      %p528 = scmp.ne.s32.totalorder %s514, %s515
      %p529 = scmp.eq.s32.totalorder %s61, 1
      %p530 = por %p528, %p529
      %p532 = scmp.ne.s32.totalorder %s515, %s531
      %p533 = scmp.eq.s32.totalorder %s61, 0
      %p534 = por %p532, %p533
      %p535 = scmp.le.s32.totalorder 1, %s55
      %p536 = scmp.lt.s32.totalorder %s55, 3
      %p537 = pnand %p535, %p536
      %p538 = pneg %p537
      // Predicated region
      $region9: #{tpu_custom_call.1} parent=5 // pred_check
        _
      $region10: #{tpu_custom_call.1} parent=5 // pred_check_branch
        %540 = sbr.rel (%p537) target = $region12
      $region11: #{tpu_custom_call.1} parent=5 // pred_region
        %s541 = ssub.s32 %s55, 1
        // Predicated region
        $region13: #{tpu_custom_call.1} parent=11 // pred_check
          %p542 = pneg %p102
        $region14: #{tpu_custom_call.1} parent=11 // pred_check_branch
          %544 = sbr.rel (%p542) target = $region16
        $region15: #{tpu_custom_call.1} parent=11 // pred_region
          %s546 = ssub.s32 2048, 2048
          %547 = vsyncadd [#allocation14], %s546
          %s548 = sshll.u32 [#allocation13], 4
          %s549 = int_to_ptr.vmem [resolvable:$true] %s548
          %554 = dma.hbm_to_vmem [thread:$0]  %s1, 2048, %s549, [#allocation14], 128, 128, 8
        $region16: #{tpu_custom_call.1} parent=11 // pred_fallthru
          _
        // Predicated region
        $region17: #{tpu_custom_call.1} parent=11 // pred_check
          %p555 = pneg %p123
        $region18: #{tpu_custom_call.1} parent=11 // pred_check_branch
          %557 = sbr.rel (%p555) target = $region20
        $region19: #{tpu_custom_call.1} parent=11 // pred_region
          %s559 = ssub.s32 16, 16
          %560 = vsyncadd [#allocation14], %s559
          %s562 = sshll.u32 [#allocation15], 4
          %s563 = int_to_ptr.vmem [resolvable:$true] %s562
          %565 = dma.hbm_to_vmem [thread:$0]  %s2, 16, %s563, [#allocation14]
        $region20: #{tpu_custom_call.1} parent=11 // pred_fallthru
          _
        // Predicated region
        $region21: #{tpu_custom_call.1} parent=11 // pred_check
          %p566 = pneg %p144
        $region22: #{tpu_custom_call.1} parent=11 // pred_check_branch
          %568 = sbr.rel (%p566) target = $region24
        $region23: #{tpu_custom_call.1} parent=11 // pred_region
          %s570 = ssub.s32 1024, 1024
          %571 = vsyncadd [#allocation17], %s570
          %s572 = sshll.u32 [#allocation16], 4
          %s573 = int_to_ptr.vmem [resolvable:$true] %s572
          %578 = dma.hbm_to_vmem [thread:$0]  %s3, 1024, %s573, [#allocation17], 128, 128, 8
        $region24: #{tpu_custom_call.1} parent=11 // pred_fallthru
          _
        // Predicated region
        $region25: #{tpu_custom_call.1} parent=11 // pred_check
          %p579 = pneg %p165
        $region26: #{tpu_custom_call.1} parent=11 // pred_check_branch
          %581 = sbr.rel (%p579) target = $region28
        $region27: #{tpu_custom_call.1} parent=11 // pred_region
          %s583 = ssub.s32 1024, 1024
          %584 = vsyncadd [#allocation17], %s583
          %s585 = sshll.u32 [#allocation18], 4
          %s586 = int_to_ptr.vmem [resolvable:$true] %s585
          %591 = dma.hbm_to_vmem [thread:$0]  %s4, 1024, %s586, [#allocation17], 128, 128, 8
        $region28: #{tpu_custom_call.1} parent=11 // pred_fallthru
          _
        // Predicated region
        $region29: #{tpu_custom_call.1} parent=11 // pred_check
          %p592 = pneg %p186
        $region30: #{tpu_custom_call.1} parent=11 // pred_check_branch
          %594 = sbr.rel (%p592) target = $region32
        $region31: #{tpu_custom_call.1} parent=11 // pred_region
          %s596 = ssub.s32 16, 16
          %597 = vsyncadd [#allocation20], %s596
          %s599 = sshll.u32 [#allocation19], 4
          %s600 = int_to_ptr.vmem [resolvable:$true] %s599
          %602 = dma.hbm_to_vmem [thread:$0]  %s5, 16, %s600, [#allocation20]
        $region32: #{tpu_custom_call.1} parent=11 // pred_fallthru
          _
        // Predicated region
        $region33: #{tpu_custom_call.1} parent=11 // pred_check
          %p603 = pneg %p207
        $region34: #{tpu_custom_call.1} parent=11 // pred_check_branch
          %605 = sbr.rel (%p603) target = $region36
        $region35: #{tpu_custom_call.1} parent=11 // pred_region
          _
        $region36: #{tpu_custom_call.1} parent=11 // pred_fallthru
          _
        // Predicated region
        $region37: #{tpu_custom_call.1} parent=11 // pred_check
          %p606 = pneg %p228
        $region38: #{tpu_custom_call.1} parent=11 // pred_check_branch
          %608 = sbr.rel (%p606) target = $region40
        $region39: #{tpu_custom_call.1} parent=11 // pred_region
          %s610 = ssub.s32 128, 128
          %611 = vsyncadd [#allocation20], %s610
          %s613 = sshll.u32 [#allocation21], 4
          %s614 = int_to_ptr.vmem [resolvable:$true] %s613
          %616 = dma.hbm_to_vmem [thread:$0]  %s7, 128, %s614, [#allocation20]
        $region40: #{tpu_custom_call.1} parent=11 // pred_fallthru
          _
        // Predicated region
        $region41: #{tpu_custom_call.1} parent=11 // pred_check
          %p617 = pneg %p249
        $region42: #{tpu_custom_call.1} parent=11 // pred_check_branch
          %619 = sbr.rel (%p617) target = $region44
        $region43: #{tpu_custom_call.1} parent=11 // pred_region
          _
        $region44: #{tpu_custom_call.1} parent=11 // pred_fallthru
          _
        // Predicated region
        $region45: #{tpu_custom_call.1} parent=11 // pred_check
          %p620 = pneg %p270
        $region46: #{tpu_custom_call.1} parent=11 // pred_check_branch
          %622 = sbr.rel (%p620) target = $region48
        $region47: #{tpu_custom_call.1} parent=11 // pred_region
          _
        $region48: #{tpu_custom_call.1} parent=11 // pred_fallthru
          _
        // Predicated region
        $region49: #{tpu_custom_call.1} parent=11 // pred_check
          %p623 = pneg %p291
        $region50: #{tpu_custom_call.1} parent=11 // pred_check_branch
          %625 = sbr.rel (%p623) target = $region52
        $region51: #{tpu_custom_call.1} parent=11 // pred_region
          _
        $region52: #{tpu_custom_call.1} parent=11 // pred_fallthru
          _
        // Predicated region
        $region53: #{tpu_custom_call.1} parent=11 // pred_check
          %p626 = pneg %p312
        $region54: #{tpu_custom_call.1} parent=11 // pred_check_branch
          %628 = sbr.rel (%p626) target = $region56
        $region55: #{tpu_custom_call.1} parent=11 // pred_region
          %s630 = ssub.s32 1024, 1024
          %631 = vsyncadd [#allocation23], %s630
          %s632 = sshll.u32 [#allocation22], 4
          %s633 = int_to_ptr.vmem [resolvable:$true] %s632
          %638 = dma.hbm_to_vmem [thread:$0]  %s11, 1024, %s633, [#allocation23], 128, 128, 8
        $region56: #{tpu_custom_call.1} parent=11 // pred_fallthru
          _
        // Predicated region
        $region57: #{tpu_custom_call.1} parent=11 // pred_check
          %p639 = pneg %p333
        $region58: #{tpu_custom_call.1} parent=11 // pred_check_branch
          %641 = sbr.rel (%p639) target = $region60
        $region59: #{tpu_custom_call.1} parent=11 // pred_region
          %s643 = ssub.s32 16, 16
          %644 = vsyncadd [#allocation23], %s643
          %s646 = sshll.u32 [#allocation24], 4
          %s647 = int_to_ptr.vmem [resolvable:$true] %s646
          %649 = dma.hbm_to_vmem [thread:$0]  %s12, 16, %s647, [#allocation23]
        $region60: #{tpu_custom_call.1} parent=11 // pred_fallthru
          _
        // Predicated region
        $region61: #{tpu_custom_call.1} parent=11 // pred_check
          %p650 = pneg %p354
        $region62: #{tpu_custom_call.1} parent=11 // pred_check_branch
          %652 = sbr.rel (%p650) target = $region64
        $region63: #{tpu_custom_call.1} parent=11 // pred_region
          %s654 = ssub.s32 2048, 2048
          %655 = vsyncadd [#allocation26], %s654
          %s656 = sshll.u32 [#allocation25], 4
          %s657 = int_to_ptr.vmem [resolvable:$true] %s656
          %662 = dma.hbm_to_vmem [thread:$0]  %s13, 2048, %s657, [#allocation26], 128, 128, 8
        $region64: #{tpu_custom_call.1} parent=11 // pred_fallthru
          _
        // Predicated region
        $region65: #{tpu_custom_call.1} parent=11 // pred_check
          %p663 = pneg %p375
        $region66: #{tpu_custom_call.1} parent=11 // pred_check_branch
          %665 = sbr.rel (%p663) target = $region68
        $region67: #{tpu_custom_call.1} parent=11 // pred_region
          %s667 = ssub.s32 2048, 2048
          %668 = vsyncadd [#allocation26], %s667
          %s669 = sshll.u32 [#allocation27], 4
          %s670 = int_to_ptr.vmem [resolvable:$true] %s669
          %675 = dma.hbm_to_vmem [thread:$0]  %s14, 2048, %s670, [#allocation26], 128, 128, 8
        $region68: #{tpu_custom_call.1} parent=11 // pred_fallthru
          _
        // Predicated region
        $region69: #{tpu_custom_call.1} parent=11 // pred_check
          %p676 = pneg %p396
        $region70: #{tpu_custom_call.1} parent=11 // pred_check_branch
          %678 = sbr.rel (%p676) target = $region72
        $region71: #{tpu_custom_call.1} parent=11 // pred_region
          %s680 = ssub.s32 16, 16
          %681 = vsyncadd [#allocation29], %s680
          %s683 = sshll.u32 [#allocation28], 4
          %s684 = int_to_ptr.vmem [resolvable:$true] %s683
          %686 = dma.hbm_to_vmem [thread:$0]  %s15, 16, %s684, [#allocation29]
        $region72: #{tpu_custom_call.1} parent=11 // pred_fallthru
          _
        // Predicated region
        $region73: #{tpu_custom_call.1} parent=11 // pred_check
          %p687 = pneg %p417
        $region74: #{tpu_custom_call.1} parent=11 // pred_check_branch
          %689 = sbr.rel (%p687) target = $region76
        $region75: #{tpu_custom_call.1} parent=11 // pred_region
          _
        $region76: #{tpu_custom_call.1} parent=11 // pred_fallthru
          _
        // Predicated region
        $region77: #{tpu_custom_call.1} parent=11 // pred_check
          %p690 = pneg %p438
        $region78: #{tpu_custom_call.1} parent=11 // pred_check_branch
          %692 = sbr.rel (%p690) target = $region80
        $region79: #{tpu_custom_call.1} parent=11 // pred_region
          %s694 = ssub.s32 128, 128
          %695 = vsyncadd [#allocation29], %s694
          %s697 = sshll.u32 [#allocation30], 4
          %s698 = int_to_ptr.vmem [resolvable:$true] %s697
          %700 = dma.hbm_to_vmem [thread:$0]  %s17, 128, %s698, [#allocation29]
        $region80: #{tpu_custom_call.1} parent=11 // pred_fallthru
          _
        // Predicated region
        $region81: #{tpu_custom_call.1} parent=11 // pred_check
          %p701 = pneg %p459
        $region82: #{tpu_custom_call.1} parent=11 // pred_check_branch
          %703 = sbr.rel (%p701) target = $region84
        $region83: #{tpu_custom_call.1} parent=11 // pred_region
          _
        $region84: #{tpu_custom_call.1} parent=11 // pred_fallthru
          _
        // Predicated region
        $region85: #{tpu_custom_call.1} parent=11 // pred_check
          %p704 = pneg %p480
        $region86: #{tpu_custom_call.1} parent=11 // pred_check_branch
          %706 = sbr.rel (%p704) target = $region88
        $region87: #{tpu_custom_call.1} parent=11 // pred_region
          _
        $region88: #{tpu_custom_call.1} parent=11 // pred_fallthru
          _
        // Predicated region
        $region89: #{tpu_custom_call.1} parent=11 // pred_check
          %p707 = pneg %p501
        $region90: #{tpu_custom_call.1} parent=11 // pred_check_branch
          %709 = sbr.rel (%p707) target = $region92
        $region91: #{tpu_custom_call.1} parent=11 // pred_region
          _
        $region92: #{tpu_custom_call.1} parent=11 // pred_fallthru
          _
      $region12: #{tpu_custom_call.1} parent=5 // pred_fallthru
        _
      %p710 = scmp.lt.s32.totalorder %s55, 2
      // Predicated region
      $region93: #{tpu_custom_call.1} parent=5 // pred_check
        %p711 = pneg %p710
      $region94: #{tpu_custom_call.1} parent=5 // pred_check_branch
        %713 = sbr.rel (%p711) target = $region96
      $region95: #{tpu_custom_call.1} parent=5 // pred_region
        // Predicated region
        $region97: #{tpu_custom_call.1} parent=95 // pred_check
          %p714 = pneg %p75
        $region98: #{tpu_custom_call.1} parent=95 // pred_check_branch
          %716 = sbr.rel (%p714) target = $region100
        $region99: #{tpu_custom_call.1} parent=95 // pred_region
          %s717 = sand.u32 %s65, 1
          %s718 = scalar_lea.sflag [#allocation11], %s717
          %s719 = sand.u32 %s65, 1
          %s720 = smul.addr %s719, 64
          %s721 = scalar_lea.vmem [#allocation10], %s720
          %s723 = ssub.s32 1024, 1024
          %724 = vsyncadd %s718, %s723
          %s725 = smul.addr %s55, 8
          %s726 = smul.addr %s725, 128
          %s727 = scalar_lea.hbm %s0, %s726
          %s728 = sshll.u32 %s721, 4
          %s729 = int_to_ptr.vmem [resolvable:$true] %s728
          %734 = dma.hbm_to_vmem [thread:$0]  %s727, 1024, %s729, %s718, 128, 128, 8
        $region100: #{tpu_custom_call.1} parent=95 // pred_fallthru
          _
      $region96: #{tpu_custom_call.1} parent=5 // pred_fallthru
        _
      %p735 = scmp.le.s32.totalorder 1, %s55
      %p736 = scmp.lt.s32.totalorder %s55, 3
      %p737 = pnand %p735, %p736
      %p738 = pneg %p737
      // Predicated region
      $region101: #{tpu_custom_call.1} parent=5 // pred_check
        _
      $region102: #{tpu_custom_call.1} parent=5 // pred_check_branch
        %740 = sbr.rel (%p737) target = $region104
      $region103: #{tpu_custom_call.1} parent=5 // pred_region
        %s741 = ssub.s32 %s55, 1
        %s742 = sand.u32 %s68, 1
        %s743 = scalar_lea.sflag [#allocation11], %s742
        %s744 = sand.u32 %s68, 1
        %s745 = smul.addr %s744, 64
        %s746 = scalar_lea.vmem [#allocation10], %s745
        // Predicated region
        $region105: #{tpu_custom_call.1} parent=103 // pred_check
          %p747 = pneg %p81
        $region106: #{tpu_custom_call.1} parent=103 // pred_check_branch
          %749 = sbr.rel (%p747) target = $region108
        $region107: #{tpu_custom_call.1} parent=103 // pred_region
          %750 = dma.done %s743, 1024
        $region108: #{tpu_custom_call.1} parent=103 // pred_fallthru
          _
        // Predicated region
        $region109: #{tpu_custom_call.1} parent=103 // pred_check
          %p751 = pneg %p102
        $region110: #{tpu_custom_call.1} parent=103 // pred_check_branch
          %753 = sbr.rel (%p751) target = $region112
        $region111: #{tpu_custom_call.1} parent=103 // pred_region
          %754 = dma.done [#allocation14], 2048
        $region112: #{tpu_custom_call.1} parent=103 // pred_fallthru
          _
        // Predicated region
        $region113: #{tpu_custom_call.1} parent=103 // pred_check
          %p755 = pneg %p123
        $region114: #{tpu_custom_call.1} parent=103 // pred_check_branch
          %757 = sbr.rel (%p755) target = $region116
        $region115: #{tpu_custom_call.1} parent=103 // pred_region
          %758 = dma.done [#allocation14], 16
        $region116: #{tpu_custom_call.1} parent=103 // pred_fallthru
          _
        // Predicated region
        $region117: #{tpu_custom_call.1} parent=103 // pred_check
          %p759 = pneg %p144
        $region118: #{tpu_custom_call.1} parent=103 // pred_check_branch
          %761 = sbr.rel (%p759) target = $region120
        $region119: #{tpu_custom_call.1} parent=103 // pred_region
          %762 = dma.done [#allocation17], 1024
        $region120: #{tpu_custom_call.1} parent=103 // pred_fallthru
          _
        // Predicated region
        $region121: #{tpu_custom_call.1} parent=103 // pred_check
          %p763 = pneg %p165
        $region122: #{tpu_custom_call.1} parent=103 // pred_check_branch
          %765 = sbr.rel (%p763) target = $region124
        $region123: #{tpu_custom_call.1} parent=103 // pred_region
          %766 = dma.done [#allocation17], 1024
        $region124: #{tpu_custom_call.1} parent=103 // pred_fallthru
          _
        // Predicated region
        $region125: #{tpu_custom_call.1} parent=103 // pred_check
          %p767 = pneg %p186
        $region126: #{tpu_custom_call.1} parent=103 // pred_check_branch
          %769 = sbr.rel (%p767) target = $region128
        $region127: #{tpu_custom_call.1} parent=103 // pred_region
          %770 = dma.done [#allocation20], 16
        $region128: #{tpu_custom_call.1} parent=103 // pred_fallthru
          _
        // Predicated region
        $region129: #{tpu_custom_call.1} parent=103 // pred_check
          %p771 = pneg %p228
        $region130: #{tpu_custom_call.1} parent=103 // pred_check_branch
          %773 = sbr.rel (%p771) target = $region132
        $region131: #{tpu_custom_call.1} parent=103 // pred_region
          %774 = dma.done [#allocation20], 128
        $region132: #{tpu_custom_call.1} parent=103 // pred_fallthru
          _
        // Predicated region
        $region133: #{tpu_custom_call.1} parent=103 // pred_check
          %p775 = pneg %p312
        $region134: #{tpu_custom_call.1} parent=103 // pred_check_branch
          %777 = sbr.rel (%p775) target = $region136
        $region135: #{tpu_custom_call.1} parent=103 // pred_region
          %778 = dma.done [#allocation23], 1024
        $region136: #{tpu_custom_call.1} parent=103 // pred_fallthru
          _
        // Predicated region
        $region137: #{tpu_custom_call.1} parent=103 // pred_check
          %p779 = pneg %p333
        $region138: #{tpu_custom_call.1} parent=103 // pred_check_branch
          %781 = sbr.rel (%p779) target = $region140
        $region139: #{tpu_custom_call.1} parent=103 // pred_region
          %782 = dma.done [#allocation23], 16
        $region140: #{tpu_custom_call.1} parent=103 // pred_fallthru
          _
        // Predicated region
        $region141: #{tpu_custom_call.1} parent=103 // pred_check
          %p783 = pneg %p354
        $region142: #{tpu_custom_call.1} parent=103 // pred_check_branch
          %785 = sbr.rel (%p783) target = $region144
        $region143: #{tpu_custom_call.1} parent=103 // pred_region
          %786 = dma.done [#allocation26], 2048
        $region144: #{tpu_custom_call.1} parent=103 // pred_fallthru
          _
        // Predicated region
        $region145: #{tpu_custom_call.1} parent=103 // pred_check
          %p787 = pneg %p375
        $region146: #{tpu_custom_call.1} parent=103 // pred_check_branch
          %789 = sbr.rel (%p787) target = $region148
        $region147: #{tpu_custom_call.1} parent=103 // pred_region
          %790 = dma.done [#allocation26], 2048
        $region148: #{tpu_custom_call.1} parent=103 // pred_fallthru
          _
        // Predicated region
        $region149: #{tpu_custom_call.1} parent=103 // pred_check
          %p791 = pneg %p396
        $region150: #{tpu_custom_call.1} parent=103 // pred_check_branch
          %793 = sbr.rel (%p791) target = $region152
        $region151: #{tpu_custom_call.1} parent=103 // pred_region
          %794 = dma.done [#allocation29], 16
        $region152: #{tpu_custom_call.1} parent=103 // pred_fallthru
          _
        // Predicated region
        $region153: #{tpu_custom_call.1} parent=103 // pred_check
          %p795 = pneg %p438
        $region154: #{tpu_custom_call.1} parent=103 // pred_check_branch
          %797 = sbr.rel (%p795) target = $region156
        $region155: #{tpu_custom_call.1} parent=103 // pred_region
          %798 = dma.done [#allocation29], 128
        $region156: #{tpu_custom_call.1} parent=103 // pred_fallthru
          _
        %s799 = sand.u32 %s68, 1
        %s800 = scalar_lea.sflag [#allocation11], %s799
        %s801 = sand.u32 %s68, 1
        %s802 = smul.addr %s801, 64
        %s803 = scalar_lea.vmem [#allocation10], %s802
        %p804 = pneg %p81
        %p805 = pneg %p78
        %p806 = pneg %p102
        %p807 = pneg %p99
        %p808 = pneg %p123
        %p809 = pneg %p120
        %p810 = pneg %p144
        %p811 = pneg %p141
        %p812 = pneg %p165
        %p813 = pneg %p162
        %p814 = pneg %p186
        %p815 = pneg %p183
        %p816 = pneg %p207
        %p817 = pneg %p204
        %p818 = pneg %p228
        %p819 = pneg %p225
        %p820 = pneg %p249
        %p821 = pneg %p246
        %p822 = pneg %p270
        %p823 = pneg %p267
        %p824 = pneg %p291
        %p825 = pneg %p288
        %p826 = pneg %p312
        %p827 = pneg %p309
        %p828 = pneg %p333
        %p829 = pneg %p330
        %p830 = pneg %p354
        %p831 = pneg %p351
        %p832 = pneg %p375
        %p833 = pneg %p372
        %p834 = pneg %p396
        %p835 = pneg %p393
        %p836 = pneg %p417
        %p837 = pneg %p414
        %p838 = pneg %p438
        %p839 = pneg %p435
        %p840 = pneg %p459
        %p841 = pneg %p456
        %p842 = pneg %p480
        %p843 = pneg %p477
        %p844 = pneg %p501
        %p845 = pneg %p498
        %p846 = pneg %p527
        %p847 = pneg %p524
        %s848 = sand.u32 %s514, 1
        %s849 = scalar_lea.sflag [#allocation12], %s848
        %s850 = sand.u32 %s514, 1
        %s851 = smul.addr %s850, 64
        %s852 = scalar_lea.vmem [#allocation31], %s851
        %v853 = vld [vmem:[%s746] sm:$0xff]
        %v854 = vld [vmem:[%s746 + $0x8] sm:$0xff]
        %v855 = vld [vmem:[%s746 + $0x10] sm:$0xff]
        %v856 = vld [vmem:[%s746 + $0x18] sm:$0xff]
        %v857 = vld [vmem:[%s746 + $0x20] sm:$0xff]
        %v858 = vld [vmem:[%s746 + $0x28] sm:$0xff]
        %v859 = vld [vmem:[%s746 + $0x30] sm:$0xff]
        %v860 = vld [vmem:[%s746 + $0x38] sm:$0xff]
        %v861 = vld [vmem:[#allocation13] sm:$0xff]
        %v862 = vld [vmem:[#allocation13 + $0x8] sm:$0xff]
        %v863 = vld [vmem:[#allocation13 + $0x10] sm:$0xff]
        %v864 = vld [vmem:[#allocation13 + $0x18] sm:$0xff]
        %v865 = vld [vmem:[#allocation13 + $0x20] sm:$0xff]
        %v866 = vld [vmem:[#allocation13 + $0x28] sm:$0xff]
        %v867 = vld [vmem:[#allocation13 + $0x30] sm:$0xff]
        %v868 = vld [vmem:[#allocation13 + $0x38] sm:$0xff]
        %v869 = vld [vmem:[#allocation13 + $0x40] sm:$0xff]
        %v870 = vld [vmem:[#allocation13 + $0x48] sm:$0xff]
        %v871 = vld [vmem:[#allocation13 + $0x50] sm:$0xff]
        %v872 = vld [vmem:[#allocation13 + $0x58] sm:$0xff]
        %v873 = vld [vmem:[#allocation13 + $0x60] sm:$0xff]
        %v874 = vld [vmem:[#allocation13 + $0x68] sm:$0xff]
        %v875 = vld [vmem:[#allocation13 + $0x70] sm:$0xff]
        %v876 = vld [vmem:[#allocation13 + $0x78] sm:$0xff]
        %v877 = vld [vmem:[#allocation15] sm:$0x1]
        %v879 = vlaneseq
        %v880 = vshrl.u32 %v879, 7
        %v881 = vsub.s32 0, %v880
        %v882 = vrot.slane %v877, %v881
        %884 = vmatprep.subr.mxu0 0.0
        %885 = vmatpush1.msra.mxu0 %v861
        %886 = vmatprep.subr.mxu0 0.0
        %887 = vmatpush1.msra.mxu0 %v862
        %888 = vmatprep.subr.mxu0 0.0
        %889 = vmatpush1.msra.mxu0 %v863
        %890 = vmatprep.subr.mxu0 0.0
        %891 = vmatpush1.msra.mxu0 %v864
        %892 = vmatprep.subr.mxu0 0.0
        %893 = vmatpush1.msra.mxu0 %v865
        %894 = vmatprep.subr.mxu0 0.0
        %895 = vmatpush1.msra.mxu0 %v866
        %896 = vmatprep.subr.mxu0 0.0
        %897 = vmatpush1.msra.mxu0 %v867
        %898 = vmatprep.subr.mxu0 0.0
        %899 = vmatpush1.msra.mxu0 %v868
        %900 = vmatprep.subr.mxu0 0.0
        %901 = vmatpush1.msra.mxu0 %v869
        %902 = vmatprep.subr.mxu0 0.0
        %903 = vmatpush1.msra.mxu0 %v870
        %904 = vmatprep.subr.mxu0 0.0
        %905 = vmatpush1.msra.mxu0 %v871
        %906 = vmatprep.subr.mxu0 0.0
        %907 = vmatpush1.msra.mxu0 %v872
        %908 = vmatprep.subr.mxu0 0.0
        %909 = vmatpush1.msra.mxu0 %v873
        %910 = vmatprep.subr.mxu0 0.0
        %911 = vmatpush1.msra.mxu0 %v874
        %912 = vmatprep.subr.mxu0 0.0
        %913 = vmatpush1.msra.mxu0 %v875
        %914 = vmatprep.subr.mxu0 0.0
        %915 = vmatpush1.msra.mxu0 %v876
        %916 = vmatprep.subr.mxu0 0.0
        %917 = vmatpush1.msra.mxu0 0.0
        %918 = vmatprep.subr.mxu0 0.0
        %919 = vmatpush1.msra.mxu0 0.0
        %920 = vmatprep.subr.mxu0 0.0
        %921 = vmatpush1.msra.mxu0 0.0
        %922 = vmatprep.subr.mxu0 0.0
        %923 = vmatpush1.msra.mxu0 0.0
        %924 = vmatprep.subr.mxu0 0.0
        %925 = vmatpush1.msra.mxu0 0.0
        %926 = vmatprep.subr.mxu0 0.0
        %927 = vmatpush1.msra.mxu0 0.0
        %928 = vmatprep.subr.mxu0 0.0
        %929 = vmatpush1.msra.mxu0 0.0
        %930 = vmatprep.subr.mxu0 0.0
        %931 = vmatpush1.msra.mxu0 0.0
        %932 = vmatprep.subr.mxu0 0.0
        %933 = vmatpush1.msra.mxu0 0.0
        %934 = vmatprep.subr.mxu0 0.0
        %935 = vmatpush1.msra.mxu0 0.0
        %936 = vmatprep.subr.mxu0 0.0
        %937 = vmatpush1.msra.mxu0 0.0
        %938 = vmatprep.subr.mxu0 0.0
        %939 = vmatpush1.msra.mxu0 0.0
        %940 = vmatprep.subr.mxu0 0.0
        %941 = vmatpush1.msra.mxu0 0.0
        %942 = vmatprep.subr.mxu0 0.0
        %943 = vmatpush1.msra.mxu0 0.0
        %944 = vmatprep.subr.mxu0 0.0
        %945 = vmatpush1.msra.mxu0 0.0
        %946 = vmatprep.subr.mxu0 0.0
        %947 = vmatpush1.msra.mxu0 0.0
        %948 = vmatprep.mubr.f32.mxu0 0.0
        %949 = vmatmul.mubr.f32.gmra.mrb[0].mxu0 %v853
        %v950 = vpop.f32.mrb[0].mxu0
        %v951 = vadd.f32 %v882, %v950
        %v952 = vpop.f32.mrb[0].mxu0
        %953 = vmatprep.mubr.f32.mxu0 0.0
        %954 = vmatmul.mubr.f32.gmra.mrb[0].mxu0 %v854
        %v955 = vpop.f32.mrb[0].mxu0
        %v956 = vadd.f32 %v882, %v955
        %v957 = vpop.f32.mrb[0].mxu0
        %958 = vmatprep.mubr.f32.mxu0 0.0
        %959 = vmatmul.mubr.f32.gmra.mrb[0].mxu0 %v855
        %v960 = vpop.f32.mrb[0].mxu0
        %v961 = vadd.f32 %v882, %v960
        %v962 = vpop.f32.mrb[0].mxu0
        %963 = vmatprep.mubr.f32.mxu0 0.0
        %964 = vmatmul.mubr.f32.gmra.mrb[0].mxu0 %v856
        %v965 = vpop.f32.mrb[0].mxu0
        %v966 = vadd.f32 %v882, %v965
        %v967 = vpop.f32.mrb[0].mxu0
        %968 = vmatprep.mubr.f32.mxu0 0.0
        %969 = vmatmul.mubr.f32.gmra.mrb[0].mxu0 %v857
        %v970 = vpop.f32.mrb[0].mxu0
        %v971 = vadd.f32 %v882, %v970
        %v972 = vpop.f32.mrb[0].mxu0
        %973 = vmatprep.mubr.f32.mxu0 0.0
        %974 = vmatmul.mubr.f32.gmra.mrb[0].mxu0 %v858
        %v975 = vpop.f32.mrb[0].mxu0
        %v976 = vadd.f32 %v882, %v975
        %v977 = vpop.f32.mrb[0].mxu0
        %978 = vmatprep.mubr.f32.mxu0 0.0
        %979 = vmatmul.mubr.f32.gmra.mrb[0].mxu0 %v859
        %v980 = vpop.f32.mrb[0].mxu0
        %v981 = vadd.f32 %v882, %v980
        %v982 = vpop.f32.mrb[0].mxu0
        %983 = vmatprep.mubr.f32.mxu0 0.0
        %984 = vmatmul.mubr.f32.gmra.mrb[0].mxu0 %v860
        %v985 = vpop.f32.mrb[0].mxu0
        %v986 = vadd.f32 %v882, %v985
        %v987 = vpop.f32.mrb[0].mxu0
        %988 = vdwg.mxu0
        %v989 = vmax.f32 %v951, 0.0
        %v990 = vmax.f32 %v956, 0.0
        %v991 = vmax.f32 %v961, 0.0
        %v992 = vmax.f32 %v966, 0.0
        %v993 = vmax.f32 %v971, 0.0
        %v994 = vmax.f32 %v976, 0.0
        %v995 = vmax.f32 %v981, 0.0
        %v996 = vmax.f32 %v986, 0.0
        %1005 = vrot.lane.b32.xlu0 %v989, 120
        %v1006 = vpop.permute.xlu0 %1005
        %1007 = vrot.lane.b32.xlu0 %v990, 120
        %v1008 = vpop.permute.xlu0 %1007
        %1009 = vrot.lane.b32.xlu0 %v991, 120
        %v1010 = vpop.permute.xlu0 %1009
        %1011 = vrot.lane.b32.xlu0 %v992, 120
        %v1012 = vpop.permute.xlu0 %1011
        %1013 = vrot.lane.b32.xlu0 %v993, 120
        %v1014 = vpop.permute.xlu0 %1013
        %1015 = vrot.lane.b32.xlu0 %v994, 120
        %v1016 = vpop.permute.xlu0 %1015
        %1017 = vrot.lane.b32.xlu0 %v995, 120
        %v1018 = vpop.permute.xlu0 %1017
        %1019 = vrot.lane.b32.xlu0 %v996, 120
        %v1020 = vpop.permute.xlu0 %1019
        %vm1021 = vcmask 64512
        %v1022 = vsel %vm1021, %v989, 0
        %v1024 = vsel %vm1021, %v990, 0
        %v1026 = vsel %vm1021, %v991, 0
        %v1028 = vsel %vm1021, %v992, 0
        %v1030 = vsel %vm1021, %v993, 0
        %v1032 = vsel %vm1021, %v994, 0
        %v1034 = vsel %vm1021, %v995, 0
        %v1036 = vsel %vm1021, %v996, 0
        %v1038 = vsel %vm1021, %v1006, 0
        %v1040 = vsel %vm1021, %v1008, 0
        %v1042 = vsel %vm1021, %v1010, 0
        %v1044 = vsel %vm1021, %v1012, 0
        %v1046 = vsel %vm1021, %v1014, 0
        %v1048 = vsel %vm1021, %v1016, 0
        %v1050 = vsel %vm1021, %v1018, 0
        %v1052 = vsel %vm1021, %v1020, 0
        %1054 = vmatprep.subr.mxu0 0.0
        %1055 = vmatpush1.xpose.msra.mxu0 %v1038
        %1056 = vmatprep.subr.mxu0 0.0
        %1057 = vmatpush1.xpose.msra.mxu0 %v1040
        %1058 = vmatprep.subr.mxu0 0.0
        %1059 = vmatpush1.xpose.msra.mxu0 %v1042
        %1060 = vmatprep.subr.mxu0 0.0
        %1061 = vmatpush1.xpose.msra.mxu0 %v1044
        %1062 = vmatprep.subr.mxu0 0.0
        %1063 = vmatpush1.xpose.msra.mxu0 %v1046
        %1064 = vmatprep.subr.mxu0 0.0
        %1065 = vmatpush1.xpose.msra.mxu0 %v1048
        %1066 = vmatprep.subr.mxu0 0.0
        %1067 = vmatpush1.xpose.msra.mxu0 %v1050
        %1068 = vmatprep.subr.mxu0 0.0
        %1069 = vmatpush1.xpose.msra.mxu0 %v1052
        %1070 = vmatprep.subr.mxu0 0.0
        %1071 = vmatpush1.xpose.msra.mxu0 0.0
        %1072 = vmatprep.subr.mxu0 0.0
        %1073 = vmatpush1.xpose.msra.mxu0 0.0
        %1074 = vmatprep.subr.mxu0 0.0
        %1075 = vmatpush1.xpose.msra.mxu0 0.0
        %1076 = vmatprep.subr.mxu0 0.0
        %1077 = vmatpush1.xpose.msra.mxu0 0.0
        %1078 = vmatprep.subr.mxu0 0.0
        %1079 = vmatpush1.xpose.msra.mxu0 0.0
        %1080 = vmatprep.subr.mxu0 0.0
        %1081 = vmatpush1.xpose.msra.mxu0 0.0
        %1082 = vmatprep.subr.mxu0 0.0
        %1083 = vmatpush1.xpose.msra.mxu0 0.0
        %1084 = vmatprep.subr.mxu0 0.0
        %1085 = vmatpush1.xpose.msra.mxu0 0.0
        %1086 = vmatprep.subr.mxu0 0.0
        %1087 = vmatpush1.xpose.msra.mxu0 0.0
        %1088 = vmatprep.subr.mxu0 0.0
        %1089 = vmatpush1.xpose.msra.mxu0 0.0
        %1090 = vmatprep.subr.mxu0 0.0
        %1091 = vmatpush1.xpose.msra.mxu0 0.0
        %1092 = vmatprep.subr.mxu0 0.0
        %1093 = vmatpush1.xpose.msra.mxu0 0.0
        %1094 = vmatprep.subr.mxu0 0.0
        %1095 = vmatpush1.xpose.msra.mxu0 0.0
        %1096 = vmatprep.subr.mxu0 0.0
        %1097 = vmatpush1.xpose.msra.mxu0 0.0
        %1098 = vmatprep.subr.mxu0 0.0
        %1099 = vmatpush1.xpose.msra.mxu0 0.0
        %1100 = vmatprep.subr.mxu0 0.0
        %1101 = vmatpush1.xpose.msra.mxu0 0.0
        %1102 = vmatprep.subr.mxu0 0.0
        %1103 = vmatpush1.xpose.msra.mxu0 0.0
        %1104 = vmatprep.subr.mxu0 0.0
        %1105 = vmatpush1.xpose.msra.mxu0 0.0
        %1106 = vmatprep.subr.mxu0 0.0
        %1107 = vmatpush1.xpose.msra.mxu0 0.0
        %1108 = vmatprep.subr.mxu0 0.0
        %1109 = vmatpush1.xpose.msra.mxu0 0.0
        %1110 = vmatprep.subr.mxu0 0.0
        %1111 = vmatpush1.xpose.msra.mxu0 0.0
        %1112 = vmatprep.subr.mxu0 0.0
        %1113 = vmatpush1.xpose.msra.mxu0 0.0
        %1114 = vmatprep.subr.mxu0 0.0
        %1115 = vmatpush1.xpose.msra.mxu0 0.0
        %1116 = vmatprep.subr.mxu0 0.0
        %1117 = vmatpush1.xpose.msra.mxu0 0.0
        %1118 = vmatprep.mubr.f32.mxu0 0.0
        %1119 = vmatmul.mubr.f32.gmra.mrb[0].mxu0 %v1022
        %v1120 = vpop.f32.mrb[0].mxu0
        %v1121 = vadd.f32 0.0, %v1120
        %v1122 = vpop.f32.mrb[0].mxu0
        %1123 = vmatprep.mubr.f32.mxu0 0.0
        %1124 = vmatmul.mubr.f32.gmra.mrb[0].mxu0 %v1024
        %v1125 = vpop.f32.mrb[0].mxu0
        %v1126 = vadd.f32 0.0, %v1125
        %v1127 = vpop.f32.mrb[0].mxu0
        %1128 = vmatprep.mubr.f32.mxu0 0.0
        %1129 = vmatmul.mubr.f32.gmra.mrb[0].mxu0 %v1026
        %v1130 = vpop.f32.mrb[0].mxu0
        %v1131 = vadd.f32 0.0, %v1130
        %v1132 = vpop.f32.mrb[0].mxu0
        %1133 = vmatprep.mubr.f32.mxu0 0.0
        %1134 = vmatmul.mubr.f32.gmra.mrb[0].mxu0 %v1028
        %v1135 = vpop.f32.mrb[0].mxu0
        %v1136 = vadd.f32 0.0, %v1135
        %v1137 = vpop.f32.mrb[0].mxu0
        %1138 = vmatprep.mubr.f32.mxu0 0.0
        %1139 = vmatmul.mubr.f32.gmra.mrb[0].mxu0 %v1030
        %v1140 = vpop.f32.mrb[0].mxu0
        %v1141 = vadd.f32 0.0, %v1140
        %v1142 = vpop.f32.mrb[0].mxu0
        %1143 = vmatprep.mubr.f32.mxu0 0.0
        %1144 = vmatmul.mubr.f32.gmra.mrb[0].mxu0 %v1032
        %v1145 = vpop.f32.mrb[0].mxu0
        %v1146 = vadd.f32 0.0, %v1145
        %v1147 = vpop.f32.mrb[0].mxu0
        %1148 = vmatprep.mubr.f32.mxu0 0.0
        %1149 = vmatmul.mubr.f32.gmra.mrb[0].mxu0 %v1034
        %v1150 = vpop.f32.mrb[0].mxu0
        %v1151 = vadd.f32 0.0, %v1150
        %v1152 = vpop.f32.mrb[0].mxu0
        %1153 = vmatprep.mubr.f32.mxu0 0.0
        %1154 = vmatmul.mubr.f32.gmra.mrb[0].mxu0 %v1036
        %v1155 = vpop.f32.mrb[0].mxu0
        %v1156 = vadd.f32 0.0, %v1155
        %v1157 = vpop.f32.mrb[0].mxu0
        %1158 = vdwg.mxu0
        %v1159 = vld [vmem:[#allocation16] sm:$0xff]
        %v1160 = vld [vmem:[#allocation16 + $0x8] sm:$0xff]
        %v1161 = vld [vmem:[#allocation16 + $0x10] sm:$0xff]
        %v1162 = vld [vmem:[#allocation16 + $0x18] sm:$0xff]
        %v1163 = vld [vmem:[#allocation16 + $0x20] sm:$0xff]
        %v1164 = vld [vmem:[#allocation16 + $0x28] sm:$0xff]
        %v1165 = vld [vmem:[#allocation16 + $0x30] sm:$0xff]
        %v1166 = vld [vmem:[#allocation16 + $0x38] sm:$0xff]
        %v1167 = vld [vmem:[#allocation18] sm:$0xff]
        %v1168 = vld [vmem:[#allocation18 + $0x8] sm:$0xff]
        %v1169 = vld [vmem:[#allocation18 + $0x10] sm:$0xff]
        %v1170 = vld [vmem:[#allocation18 + $0x18] sm:$0xff]
        %v1171 = vld [vmem:[#allocation18 + $0x20] sm:$0xff]
        %v1172 = vld [vmem:[#allocation18 + $0x28] sm:$0xff]
        %v1173 = vld [vmem:[#allocation18 + $0x30] sm:$0xff]
        %v1174 = vld [vmem:[#allocation18 + $0x38] sm:$0xff]
        %1175 = vxpose.xlu0.b32.start [1/16] %v1121, 128
        %1176 = vxpose.xlu0.b32.cont [2/16] %v1126, 128
        %1177 = vxpose.xlu0.b32.cont [3/16] %v1131, 128
        %1178 = vxpose.xlu0.b32.cont [4/16] %v1136, 128
        %1179 = vxpose.xlu0.b32.cont [5/16] %v1141, 128
        %1180 = vxpose.xlu0.b32.cont [6/16] %v1146, 128
        %1181 = vxpose.xlu0.b32.cont [7/16] %v1151, 128
        %1182 = vxpose.xlu0.b32.cont [8/16] %v1156, 128
        %1183 = vxpose.xlu0.b32.cont [9/16] 0.0, 128
        %1184 = vxpose.xlu0.b32.cont [10/16] 0.0, 128
        %1185 = vxpose.xlu0.b32.cont [11/16] 0.0, 128
        %1186 = vxpose.xlu0.b32.cont [12/16] 0.0, 128
        %1187 = vxpose.xlu0.b32.cont [13/16] 0.0, 128
        %1188 = vxpose.xlu0.b32.cont [14/16] 0.0, 128
        %1189 = vxpose.xlu0.b32.cont [15/16] 0.0, 128
        %1190 = vxpose.xlu0.b32.end [16/16] 0.0, 128
        %v1191 = vpop.trf.xlu0
        %v1192 = vpop.trf.xlu0
        %v1193 = vpop.trf.xlu0
        %v1194 = vpop.trf.xlu0
        %v1195 = vpop.trf.xlu0
        %v1196 = vpop.trf.xlu0
        %v1197 = vpop.trf.xlu0
        %v1198 = vpop.trf.xlu0
        %v1199 = vpop.trf.xlu0
        %v1200 = vpop.trf.xlu0
        %v1201 = vpop.trf.xlu0
        %v1202 = vpop.trf.xlu0
        %v1203 = vpop.trf.xlu0
        %v1204 = vpop.trf.xlu0
        %v1205 = vpop.trf.xlu0
        %v1206 = vpop.trf.xlu0
        %vm1207 = vcmask 523264
        %v1209 = vsel %vm1207, %v1191, 0
        %v1212 = vsel %vm1207, %v1192, 0
        %v1215 = vsel %vm1207, %v1193, 0
        %v1218 = vsel %vm1207, %v1194, 0
        %v1221 = vsel %vm1207, %v1195, 0
        %v1224 = vsel %vm1207, %v1196, 0
        %v1227 = vsel %vm1207, %v1197, 0
        %v1230 = vsel %vm1207, %v1198, 0
        %1232 = vmatprep.subr.mxu0 0.0
        %1233 = vmatpush1.msra.mxu0 %v1167
        %1234 = vmatprep.subr.mxu0 0.0
        %1235 = vmatpush1.msra.mxu0 %v1168
        %1236 = vmatprep.subr.mxu0 0.0
        %1237 = vmatpush1.msra.mxu0 %v1169
        %1238 = vmatprep.subr.mxu0 0.0
        %1239 = vmatpush1.msra.mxu0 %v1170
        %1240 = vmatprep.subr.mxu0 0.0
        %1241 = vmatpush1.msra.mxu0 %v1171
        %1242 = vmatprep.subr.mxu0 0.0
        %1243 = vmatpush1.msra.mxu0 %v1172
        %1244 = vmatprep.subr.mxu0 0.0
        %1245 = vmatpush1.msra.mxu0 %v1173
        %1246 = vmatprep.subr.mxu0 0.0
        %1247 = vmatpush1.msra.mxu0 %v1174
        %1248 = vmatprep.subr.mxu0 0.0
        %1249 = vmatpush1.msra.mxu0 0.0
        %1250 = vmatprep.subr.mxu0 0.0
        %1251 = vmatpush1.msra.mxu0 0.0
        %1252 = vmatprep.subr.mxu0 0.0
        %1253 = vmatpush1.msra.mxu0 0.0
        %1254 = vmatprep.subr.mxu0 0.0
        %1255 = vmatpush1.msra.mxu0 0.0
        %1256 = vmatprep.subr.mxu0 0.0
        %1257 = vmatpush1.msra.mxu0 0.0
        %1258 = vmatprep.subr.mxu0 0.0
        %1259 = vmatpush1.msra.mxu0 0.0
        %1260 = vmatprep.subr.mxu0 0.0
        %1261 = vmatpush1.msra.mxu0 0.0
        %1262 = vmatprep.subr.mxu0 0.0
        %1263 = vmatpush1.msra.mxu0 0.0
        %1264 = vmatprep.subr.mxu0 0.0
        %1265 = vmatpush1.msra.mxu0 0.0
        %1266 = vmatprep.subr.mxu0 0.0
        %1267 = vmatpush1.msra.mxu0 0.0
        %1268 = vmatprep.subr.mxu0 0.0
        %1269 = vmatpush1.msra.mxu0 0.0
        %1270 = vmatprep.subr.mxu0 0.0
        %1271 = vmatpush1.msra.mxu0 0.0
        %1272 = vmatprep.subr.mxu0 0.0
        %1273 = vmatpush1.msra.mxu0 0.0
        %1274 = vmatprep.subr.mxu0 0.0
        %1275 = vmatpush1.msra.mxu0 0.0
        %1276 = vmatprep.subr.mxu0 0.0
        %1277 = vmatpush1.msra.mxu0 0.0
        %1278 = vmatprep.subr.mxu0 0.0
        %1279 = vmatpush1.msra.mxu0 0.0
        %1280 = vmatprep.subr.mxu0 0.0
        %1281 = vmatpush1.msra.mxu0 0.0
        %1282 = vmatprep.subr.mxu0 0.0
        %1283 = vmatpush1.msra.mxu0 0.0
        %1284 = vmatprep.subr.mxu0 0.0
        %1285 = vmatpush1.msra.mxu0 0.0
        %1286 = vmatprep.subr.mxu0 0.0
        %1287 = vmatpush1.msra.mxu0 0.0
        %1288 = vmatprep.subr.mxu0 0.0
        %1289 = vmatpush1.msra.mxu0 0.0
        %1290 = vmatprep.subr.mxu0 0.0
        %1291 = vmatpush1.msra.mxu0 0.0
        %1292 = vmatprep.subr.mxu0 0.0
        %1293 = vmatpush1.msra.mxu0 0.0
        %1294 = vmatprep.subr.mxu0 0.0
        %1295 = vmatpush1.msra.mxu0 0.0
        %1296 = vmatprep.mubr.f32.mxu0 0.0
        %1297 = vmatmul.mubr.f32.gmra.mrb[0].mxu0 %v1209
        %v1298 = vpop.f32.mrb[0].mxu0
        %v1299 = vadd.f32 0.0, %v1298
        %v1300 = vpop.f32.mrb[0].mxu0
        %1301 = vmatprep.mubr.f32.mxu0 0.0
        %1302 = vmatmul.mubr.f32.gmra.mrb[0].mxu0 %v1212
        %v1303 = vpop.f32.mrb[0].mxu0
        %v1304 = vadd.f32 0.0, %v1303
        %v1305 = vpop.f32.mrb[0].mxu0
        %1306 = vmatprep.mubr.f32.mxu0 0.0
        %1307 = vmatmul.mubr.f32.gmra.mrb[0].mxu0 %v1215
        %v1308 = vpop.f32.mrb[0].mxu0
        %v1309 = vadd.f32 0.0, %v1308
        %v1310 = vpop.f32.mrb[0].mxu0
        %1311 = vmatprep.mubr.f32.mxu0 0.0
        %1312 = vmatmul.mubr.f32.gmra.mrb[0].mxu0 %v1218
        %v1313 = vpop.f32.mrb[0].mxu0
        %v1314 = vadd.f32 0.0, %v1313
        %v1315 = vpop.f32.mrb[0].mxu0
        %1316 = vmatprep.mubr.f32.mxu0 0.0
        %1317 = vmatmul.mubr.f32.gmra.mrb[0].mxu0 %v1221
        %v1318 = vpop.f32.mrb[0].mxu0
        %v1319 = vadd.f32 0.0, %v1318
        %v1320 = vpop.f32.mrb[0].mxu0
        %1321 = vmatprep.mubr.f32.mxu0 0.0
        %1322 = vmatmul.mubr.f32.gmra.mrb[0].mxu0 %v1224
        %v1323 = vpop.f32.mrb[0].mxu0
        %v1324 = vadd.f32 0.0, %v1323
        %v1325 = vpop.f32.mrb[0].mxu0
        %1326 = vmatprep.mubr.f32.mxu0 0.0
        %1327 = vmatmul.mubr.f32.gmra.mrb[0].mxu0 %v1227
        %v1328 = vpop.f32.mrb[0].mxu0
        %v1329 = vadd.f32 0.0, %v1328
        %v1330 = vpop.f32.mrb[0].mxu0
        %1331 = vmatprep.mubr.f32.mxu0 0.0
        %1332 = vmatmul.mubr.f32.gmra.mrb[0].mxu0 %v1230
        %v1333 = vpop.f32.mrb[0].mxu0
        %v1334 = vadd.f32 0.0, %v1333
        %v1335 = vpop.f32.mrb[0].mxu0
        %1336 = vdwg.mxu0
        %v1338 = vsel %vm1207, %v1121, 0
        %v1341 = vsel %vm1207, %v1126, 0
        %v1344 = vsel %vm1207, %v1131, 0
        %v1347 = vsel %vm1207, %v1136, 0
        %v1350 = vsel %vm1207, %v1141, 0
        %v1353 = vsel %vm1207, %v1146, 0
        %v1356 = vsel %vm1207, %v1151, 0
        %v1359 = vsel %vm1207, %v1156, 0
        %1361 = vmatprep.subr.mxu0 0.0
        %1362 = vmatpush1.msra.mxu0 %v1159
        %1363 = vmatprep.subr.mxu0 0.0
        %1364 = vmatpush1.msra.mxu0 %v1160
        %1365 = vmatprep.subr.mxu0 0.0
        %1366 = vmatpush1.msra.mxu0 %v1161
        %1367 = vmatprep.subr.mxu0 0.0
        %1368 = vmatpush1.msra.mxu0 %v1162
        %1369 = vmatprep.subr.mxu0 0.0
        %1370 = vmatpush1.msra.mxu0 %v1163
        %1371 = vmatprep.subr.mxu0 0.0
        %1372 = vmatpush1.msra.mxu0 %v1164
        %1373 = vmatprep.subr.mxu0 0.0
        %1374 = vmatpush1.msra.mxu0 %v1165
        %1375 = vmatprep.subr.mxu0 0.0
        %1376 = vmatpush1.msra.mxu0 %v1166
        %1377 = vmatprep.subr.mxu0 0.0
        %1378 = vmatpush1.msra.mxu0 0.0
        %1379 = vmatprep.subr.mxu0 0.0
        %1380 = vmatpush1.msra.mxu0 0.0
        %1381 = vmatprep.subr.mxu0 0.0
        %1382 = vmatpush1.msra.mxu0 0.0
        %1383 = vmatprep.subr.mxu0 0.0
        %1384 = vmatpush1.msra.mxu0 0.0
        %1385 = vmatprep.subr.mxu0 0.0
        %1386 = vmatpush1.msra.mxu0 0.0
        %1387 = vmatprep.subr.mxu0 0.0
        %1388 = vmatpush1.msra.mxu0 0.0
        %1389 = vmatprep.subr.mxu0 0.0
        %1390 = vmatpush1.msra.mxu0 0.0
        %1391 = vmatprep.subr.mxu0 0.0
        %1392 = vmatpush1.msra.mxu0 0.0
        %1393 = vmatprep.subr.mxu0 0.0
        %1394 = vmatpush1.msra.mxu0 0.0
        %1395 = vmatprep.subr.mxu0 0.0
        %1396 = vmatpush1.msra.mxu0 0.0
        %1397 = vmatprep.subr.mxu0 0.0
        %1398 = vmatpush1.msra.mxu0 0.0
        %1399 = vmatprep.subr.mxu0 0.0
        %1400 = vmatpush1.msra.mxu0 0.0
        %1401 = vmatprep.subr.mxu0 0.0
        %1402 = vmatpush1.msra.mxu0 0.0
        %1403 = vmatprep.subr.mxu0 0.0
        %1404 = vmatpush1.msra.mxu0 0.0
        %1405 = vmatprep.subr.mxu0 0.0
        %1406 = vmatpush1.msra.mxu0 0.0
        %1407 = vmatprep.subr.mxu0 0.0
        %1408 = vmatpush1.msra.mxu0 0.0
        %1409 = vmatprep.subr.mxu0 0.0
        %1410 = vmatpush1.msra.mxu0 0.0
        %1411 = vmatprep.subr.mxu0 0.0
        %1412 = vmatpush1.msra.mxu0 0.0
        %1413 = vmatprep.subr.mxu0 0.0
        %1414 = vmatpush1.msra.mxu0 0.0
        %1415 = vmatprep.subr.mxu0 0.0
        %1416 = vmatpush1.msra.mxu0 0.0
        %1417 = vmatprep.subr.mxu0 0.0
        %1418 = vmatpush1.msra.mxu0 0.0
        %1419 = vmatprep.subr.mxu0 0.0
        %1420 = vmatpush1.msra.mxu0 0.0
        %1421 = vmatprep.subr.mxu0 0.0
        %1422 = vmatpush1.msra.mxu0 0.0
        %1423 = vmatprep.subr.mxu0 0.0
        %1424 = vmatpush1.msra.mxu0 0.0
        %1425 = vmatprep.mubr.f32.mxu0 0.0
        %1426 = vmatmul.mubr.f32.gmra.mrb[0].mxu0 %v1338
        %v1427 = vpop.f32.mrb[0].mxu0
        %v1428 = vadd.f32 %v1299, %v1427
        %v1429 = vpop.f32.mrb[0].mxu0
        %1430 = vmatprep.mubr.f32.mxu0 0.0
        %1431 = vmatmul.mubr.f32.gmra.mrb[0].mxu0 %v1341
        %v1432 = vpop.f32.mrb[0].mxu0
        %v1433 = vadd.f32 %v1304, %v1432
        %v1434 = vpop.f32.mrb[0].mxu0
        %1435 = vmatprep.mubr.f32.mxu0 0.0
        %1436 = vmatmul.mubr.f32.gmra.mrb[0].mxu0 %v1344
        %v1437 = vpop.f32.mrb[0].mxu0
        %v1438 = vadd.f32 %v1309, %v1437
        %v1439 = vpop.f32.mrb[0].mxu0
        %1440 = vmatprep.mubr.f32.mxu0 0.0
        %1441 = vmatmul.mubr.f32.gmra.mrb[0].mxu0 %v1347
        %v1442 = vpop.f32.mrb[0].mxu0
        %v1443 = vadd.f32 %v1314, %v1442
        %v1444 = vpop.f32.mrb[0].mxu0
        %1445 = vmatprep.mubr.f32.mxu0 0.0
        %1446 = vmatmul.mubr.f32.gmra.mrb[0].mxu0 %v1350
        %v1447 = vpop.f32.mrb[0].mxu0
        %v1448 = vadd.f32 %v1319, %v1447
        %v1449 = vpop.f32.mrb[0].mxu0
        %1450 = vmatprep.mubr.f32.mxu0 0.0
        %1451 = vmatmul.mubr.f32.gmra.mrb[0].mxu0 %v1353
        %v1452 = vpop.f32.mrb[0].mxu0
        %v1453 = vadd.f32 %v1324, %v1452
        %v1454 = vpop.f32.mrb[0].mxu0
        %1455 = vmatprep.mubr.f32.mxu0 0.0
        %1456 = vmatmul.mubr.f32.gmra.mrb[0].mxu0 %v1356
        %v1457 = vpop.f32.mrb[0].mxu0
        %v1458 = vadd.f32 %v1329, %v1457
        %v1459 = vpop.f32.mrb[0].mxu0
        %1460 = vmatprep.mubr.f32.mxu0 0.0
        %1461 = vmatmul.mubr.f32.gmra.mrb[0].mxu0 %v1359
        %v1462 = vpop.f32.mrb[0].mxu0
        %v1463 = vadd.f32 %v1334, %v1462
        %v1464 = vpop.f32.mrb[0].mxu0
        %1465 = vdwg.mxu0
        %v1466 = vld [vmem:[#allocation19] sm:$0x1]
        %v1468 = vlaneseq
        %v1469 = vshrl.u32 %v1468, 7
        %v1470 = vsub.s32 0, %v1469
        %v1471 = vrot.slane %v1466, %v1470
        %v1473 = vadd.f32 %v1428, %v1471
        %v1474 = vadd.f32 %v1433, %v1471
        %v1475 = vadd.f32 %v1438, %v1471
        %v1476 = vadd.f32 %v1443, %v1471
        %v1477 = vadd.f32 %v1448, %v1471
        %v1478 = vadd.f32 %v1453, %v1471
        %v1479 = vadd.f32 %v1458, %v1471
        %v1480 = vadd.f32 %v1463, %v1471
        %v1481 = vmax.f32 %v1473, 0.0
        %v1482 = vmax.f32 %v1474, 0.0
        %v1483 = vmax.f32 %v1475, 0.0
        %v1484 = vmax.f32 %v1476, 0.0
        %v1485 = vmax.f32 %v1477, 0.0
        %v1486 = vmax.f32 %v1478, 0.0
        %v1487 = vmax.f32 %v1479, 0.0
        %v1488 = vmax.f32 %v1480, 0.0
        %1489 = vrot.lane.b32.xlu0 %v989, 112
        %v1490 = vpop.permute.xlu0 %1489
        %1491 = vrot.lane.b32.xlu0 %v990, 112
        %v1492 = vpop.permute.xlu0 %1491
        %1493 = vrot.lane.b32.xlu0 %v991, 112
        %v1494 = vpop.permute.xlu0 %1493
        %1495 = vrot.lane.b32.xlu0 %v992, 112
        %v1496 = vpop.permute.xlu0 %1495
        %1497 = vrot.lane.b32.xlu0 %v993, 112
        %v1498 = vpop.permute.xlu0 %1497
        %1499 = vrot.lane.b32.xlu0 %v994, 112
        %v1500 = vpop.permute.xlu0 %1499
        %1501 = vrot.lane.b32.xlu0 %v995, 112
        %v1502 = vpop.permute.xlu0 %1501
        %1503 = vrot.lane.b32.xlu0 %v996, 112
        %v1504 = vpop.permute.xlu0 %1503
        %v1513 = vsel %vm1021, %v1490, 0.0
        %1514 = vadd.xlane.f32.xlu0 %v1513
        %v1515 = vpop.xlane.xlu0 %1514
        %v1516 = vsel %vm1021, %v1492, 0.0
        %1517 = vadd.xlane.f32.xlu0 %v1516
        %v1518 = vpop.xlane.xlu0 %1517
        %v1519 = vsel %vm1021, %v1494, 0.0
        %1520 = vadd.xlane.f32.xlu0 %v1519
        %v1521 = vpop.xlane.xlu0 %1520
        %v1522 = vsel %vm1021, %v1496, 0.0
        %1523 = vadd.xlane.f32.xlu0 %v1522
        %v1524 = vpop.xlane.xlu0 %1523
        %v1525 = vsel %vm1021, %v1498, 0.0
        %1526 = vadd.xlane.f32.xlu0 %v1525
        %v1527 = vpop.xlane.xlu0 %1526
        %v1528 = vsel %vm1021, %v1500, 0.0
        %1529 = vadd.xlane.f32.xlu0 %v1528
        %v1530 = vpop.xlane.xlu0 %1529
        %v1531 = vsel %vm1021, %v1502, 0.0
        %1532 = vadd.xlane.f32.xlu0 %v1531
        %v1533 = vpop.xlane.xlu0 %1532
        %v1534 = vsel %vm1021, %v1504, 0.0
        %1535 = vadd.xlane.f32.xlu0 %v1534
        %v1536 = vpop.xlane.xlu0 %1535
        %v1537 = vrcp.pop 8.0
        %v1538 = vmul.f32 %v1515, %v1537
        %v1539 = vmul.f32 %v1518, %v1537
        %v1540 = vmul.f32 %v1521, %v1537
        %v1541 = vmul.f32 %v1524, %v1537
        %v1542 = vmul.f32 %v1527, %v1537
        %v1543 = vmul.f32 %v1530, %v1537
        %v1544 = vmul.f32 %v1533, %v1537
        %v1545 = vmul.f32 %v1536, %v1537
        %v1546 = vld [vmem:[#allocation21] sm:$0xff]
        %v1547 = vld [vmem:[#allocation2] sm:$0x1]
        %v1549 = vlaneseq
        %v1550 = vshrl.u32 %v1549, 7
        %v1551 = vsub.s32 0, %v1550
        %v1552 = vrot.slane %v1547, %v1551
        %v1554 = vmul.f32 %v1538, %v1552
        %v1555 = vmul.f32 %v1539, %v1552
        %v1556 = vmul.f32 %v1540, %v1552
        %v1557 = vmul.f32 %v1541, %v1552
        %v1558 = vmul.f32 %v1542, %v1552
        %v1559 = vmul.f32 %v1543, %v1552
        %v1560 = vmul.f32 %v1544, %v1552
        %v1561 = vmul.f32 %v1545, %v1552
        %v1563 = vsel %vm1021, %v1481, 0
        %v1566 = vsel %vm1021, %v1482, 0
        %v1569 = vsel %vm1021, %v1483, 0
        %v1572 = vsel %vm1021, %v1484, 0
        %v1575 = vsel %vm1021, %v1485, 0
        %v1578 = vsel %vm1021, %v1486, 0
        %v1581 = vsel %vm1021, %v1487, 0
        %v1584 = vsel %vm1021, %v1488, 0
        %1586 = vmatprep.subr.mxu0 0.0
        %1587 = vmatpush1.msra.mxu0 %v1546
        %1588 = vmatprep.subr.mxu0 0.0
        %1589 = vmatpush1.msra.mxu0 0.0
        %1590 = vmatprep.subr.mxu0 0.0
        %1591 = vmatpush1.msra.mxu0 0.0
        %1592 = vmatprep.subr.mxu0 0.0
        %1593 = vmatpush1.msra.mxu0 0.0
        %1594 = vmatprep.subr.mxu0 0.0
        %1595 = vmatpush1.msra.mxu0 0.0
        %1596 = vmatprep.subr.mxu0 0.0
        %1597 = vmatpush1.msra.mxu0 0.0
        %1598 = vmatprep.subr.mxu0 0.0
        %1599 = vmatpush1.msra.mxu0 0.0
        %1600 = vmatprep.subr.mxu0 0.0
        %1601 = vmatpush1.msra.mxu0 0.0
        %1602 = vmatprep.subr.mxu0 0.0
        %1603 = vmatpush1.msra.mxu0 0.0
        %1604 = vmatprep.subr.mxu0 0.0
        %1605 = vmatpush1.msra.mxu0 0.0
        %1606 = vmatprep.subr.mxu0 0.0
        %1607 = vmatpush1.msra.mxu0 0.0
        %1608 = vmatprep.subr.mxu0 0.0
        %1609 = vmatpush1.msra.mxu0 0.0
        %1610 = vmatprep.subr.mxu0 0.0
        %1611 = vmatpush1.msra.mxu0 0.0
        %1612 = vmatprep.subr.mxu0 0.0
        %1613 = vmatpush1.msra.mxu0 0.0
        %1614 = vmatprep.subr.mxu0 0.0
        %1615 = vmatpush1.msra.mxu0 0.0
        %1616 = vmatprep.subr.mxu0 0.0
        %1617 = vmatpush1.msra.mxu0 0.0
        %1618 = vmatprep.subr.mxu0 0.0
        %1619 = vmatpush1.msra.mxu0 0.0
        %1620 = vmatprep.subr.mxu0 0.0
        %1621 = vmatpush1.msra.mxu0 0.0
        %1622 = vmatprep.subr.mxu0 0.0
        %1623 = vmatpush1.msra.mxu0 0.0
        %1624 = vmatprep.subr.mxu0 0.0
        %1625 = vmatpush1.msra.mxu0 0.0
        %1626 = vmatprep.subr.mxu0 0.0
        %1627 = vmatpush1.msra.mxu0 0.0
        %1628 = vmatprep.subr.mxu0 0.0
        %1629 = vmatpush1.msra.mxu0 0.0
        %1630 = vmatprep.subr.mxu0 0.0
        %1631 = vmatpush1.msra.mxu0 0.0
        %1632 = vmatprep.subr.mxu0 0.0
        %1633 = vmatpush1.msra.mxu0 0.0
        %1634 = vmatprep.subr.mxu0 0.0
        %1635 = vmatpush1.msra.mxu0 0.0
        %1636 = vmatprep.subr.mxu0 0.0
        %1637 = vmatpush1.msra.mxu0 0.0
        %1638 = vmatprep.subr.mxu0 0.0
        %1639 = vmatpush1.msra.mxu0 0.0
        %1640 = vmatprep.subr.mxu0 0.0
        %1641 = vmatpush1.msra.mxu0 0.0
        %1642 = vmatprep.subr.mxu0 0.0
        %1643 = vmatpush1.msra.mxu0 0.0
        %1644 = vmatprep.subr.mxu0 0.0
        %1645 = vmatpush1.msra.mxu0 0.0
        %1646 = vmatprep.subr.mxu0 0.0
        %1647 = vmatpush1.msra.mxu0 0.0
        %1648 = vmatprep.subr.mxu0 0.0
        %1649 = vmatpush1.msra.mxu0 0.0
        %1650 = vmatprep.mubr.f32.mxu0 0.0
        %1651 = vmatmul.mubr.f32.gmra.mrb[0].mxu0 %v1563
        %v1652 = vpop.f32.mrb[0].mxu0
        %v1653 = vadd.f32 %v1554, %v1652
        %v1654 = vpop.f32.mrb[0].mxu0
        %1655 = vmatprep.mubr.f32.mxu0 0.0
        %1656 = vmatmul.mubr.f32.gmra.mrb[0].mxu0 %v1566
        %v1657 = vpop.f32.mrb[0].mxu0
        %v1658 = vadd.f32 %v1555, %v1657
        %v1659 = vpop.f32.mrb[0].mxu0
        %1660 = vmatprep.mubr.f32.mxu0 0.0
        %1661 = vmatmul.mubr.f32.gmra.mrb[0].mxu0 %v1569
        %v1662 = vpop.f32.mrb[0].mxu0
        %v1663 = vadd.f32 %v1556, %v1662
        %v1664 = vpop.f32.mrb[0].mxu0
        %1665 = vmatprep.mubr.f32.mxu0 0.0
        %1666 = vmatmul.mubr.f32.gmra.mrb[0].mxu0 %v1572
        %v1667 = vpop.f32.mrb[0].mxu0
        %v1668 = vadd.f32 %v1557, %v1667
        %v1669 = vpop.f32.mrb[0].mxu0
        %1670 = vmatprep.mubr.f32.mxu0 0.0
        %1671 = vmatmul.mubr.f32.gmra.mrb[0].mxu0 %v1575
        %v1672 = vpop.f32.mrb[0].mxu0
        %v1673 = vadd.f32 %v1558, %v1672
        %v1674 = vpop.f32.mrb[0].mxu0
        %1675 = vmatprep.mubr.f32.mxu0 0.0
        %1676 = vmatmul.mubr.f32.gmra.mrb[0].mxu0 %v1578
        %v1677 = vpop.f32.mrb[0].mxu0
        %v1678 = vadd.f32 %v1559, %v1677
        %v1679 = vpop.f32.mrb[0].mxu0
        %1680 = vmatprep.mubr.f32.mxu0 0.0
        %1681 = vmatmul.mubr.f32.gmra.mrb[0].mxu0 %v1581
        %v1682 = vpop.f32.mrb[0].mxu0
        %v1683 = vadd.f32 %v1560, %v1682
        %v1684 = vpop.f32.mrb[0].mxu0
        %1685 = vmatprep.mubr.f32.mxu0 0.0
        %1686 = vmatmul.mubr.f32.gmra.mrb[0].mxu0 %v1584
        %v1687 = vpop.f32.mrb[0].mxu0
        %v1688 = vadd.f32 %v1561, %v1687
        %v1689 = vpop.f32.mrb[0].mxu0
        %1690 = vdwg.mxu0
        %v1691 = vld [vmem:[#allocation3] sm:$0x1]
        %v1693 = vlaneseq
        %v1694 = vshrl.u32 %v1693, 7
        %v1695 = vsub.s32 0, %v1694
        %v1696 = vrot.slane %v1691, %v1695
        %v1698 = vadd.f32 %v1653, %v1696
        %v1699 = vadd.f32 %v1658, %v1696
        %v1700 = vadd.f32 %v1663, %v1696
        %v1701 = vadd.f32 %v1668, %v1696
        %v1702 = vadd.f32 %v1673, %v1696
        %v1703 = vadd.f32 %v1678, %v1696
        %v1704 = vadd.f32 %v1683, %v1696
        %v1705 = vadd.f32 %v1688, %v1696
        %v1706 = vmax.f32 %v1698, 0.0
        %v1707 = vmax.f32 %v1699, 0.0
        %v1708 = vmax.f32 %v1700, 0.0
        %v1709 = vmax.f32 %v1701, 0.0
        %v1710 = vmax.f32 %v1702, 0.0
        %v1711 = vmax.f32 %v1703, 0.0
        %v1712 = vmax.f32 %v1704, 0.0
        %v1713 = vmax.f32 %v1705, 0.0
        %v1714 = vld [vmem:[#allocation4] sm:$0x1]
        %v1715 = vld [vmem:[#allocation5] sm:$0x1]
        %v1717 = vlaneseq
        %v1718 = vshrl.u32 %v1717, 7
        %v1719 = vsub.s32 0, %v1718
        %v1720 = vrot.slane %v1715, %v1719
        %vm1722 = vcmask 7168
        %v1724 = vsel %vm1722, %v1706, 0
        %v1727 = vsel %vm1722, %v1707, 0
        %v1730 = vsel %vm1722, %v1708, 0
        %v1733 = vsel %vm1722, %v1709, 0
        %v1736 = vsel %vm1722, %v1710, 0
        %v1739 = vsel %vm1722, %v1711, 0
        %v1742 = vsel %vm1722, %v1712, 0
        %v1745 = vsel %vm1722, %v1713, 0
        %vm1747 = vcmask 1040384
        %v1749 = vsel %vm1747, %v1714, 0
        %1751 = vmatprep.subr.mxu0 0.0
        %1752 = vmatpush1.msra.mxu0 %v1749
        %1753 = vmatprep.subr.mxu0 0.0
        %1754 = vmatpush1.msra.mxu0 0.0
        %1755 = vmatprep.subr.mxu0 0.0
        %1756 = vmatpush1.msra.mxu0 0.0
        %1757 = vmatprep.subr.mxu0 0.0
        %1758 = vmatpush1.msra.mxu0 0.0
        %1759 = vmatprep.subr.mxu0 0.0
        %1760 = vmatpush1.msra.mxu0 0.0
        %1761 = vmatprep.subr.mxu0 0.0
        %1762 = vmatpush1.msra.mxu0 0.0
        %1763 = vmatprep.subr.mxu0 0.0
        %1764 = vmatpush1.msra.mxu0 0.0
        %1765 = vmatprep.subr.mxu0 0.0
        %1766 = vmatpush1.msra.mxu0 0.0
        %1767 = vmatprep.subr.mxu0 0.0
        %1768 = vmatpush1.msra.mxu0 0.0
        %1769 = vmatprep.subr.mxu0 0.0
        %1770 = vmatpush1.msra.mxu0 0.0
        %1771 = vmatprep.subr.mxu0 0.0
        %1772 = vmatpush1.msra.mxu0 0.0
        %1773 = vmatprep.subr.mxu0 0.0
        %1774 = vmatpush1.msra.mxu0 0.0
        %1775 = vmatprep.subr.mxu0 0.0
        %1776 = vmatpush1.msra.mxu0 0.0
        %1777 = vmatprep.subr.mxu0 0.0
        %1778 = vmatpush1.msra.mxu0 0.0
        %1779 = vmatprep.subr.mxu0 0.0
        %1780 = vmatpush1.msra.mxu0 0.0
        %1781 = vmatprep.subr.mxu0 0.0
        %1782 = vmatpush1.msra.mxu0 0.0
        %1783 = vmatprep.subr.mxu0 0.0
        %1784 = vmatpush1.msra.mxu0 0.0
        %1785 = vmatprep.subr.mxu0 0.0
        %1786 = vmatpush1.msra.mxu0 0.0
        %1787 = vmatprep.subr.mxu0 0.0
        %1788 = vmatpush1.msra.mxu0 0.0
        %1789 = vmatprep.subr.mxu0 0.0
        %1790 = vmatpush1.msra.mxu0 0.0
        %1791 = vmatprep.subr.mxu0 0.0
        %1792 = vmatpush1.msra.mxu0 0.0
        %1793 = vmatprep.subr.mxu0 0.0
        %1794 = vmatpush1.msra.mxu0 0.0
        %1795 = vmatprep.subr.mxu0 0.0
        %1796 = vmatpush1.msra.mxu0 0.0
        %1797 = vmatprep.subr.mxu0 0.0
        %1798 = vmatpush1.msra.mxu0 0.0
        %1799 = vmatprep.subr.mxu0 0.0
        %1800 = vmatpush1.msra.mxu0 0.0
        %1801 = vmatprep.subr.mxu0 0.0
        %1802 = vmatpush1.msra.mxu0 0.0
        %1803 = vmatprep.subr.mxu0 0.0
        %1804 = vmatpush1.msra.mxu0 0.0
        %1805 = vmatprep.subr.mxu0 0.0
        %1806 = vmatpush1.msra.mxu0 0.0
        %1807 = vmatprep.subr.mxu0 0.0
        %1808 = vmatpush1.msra.mxu0 0.0
        %1809 = vmatprep.subr.mxu0 0.0
        %1810 = vmatpush1.msra.mxu0 0.0
        %1811 = vmatprep.subr.mxu0 0.0
        %1812 = vmatpush1.msra.mxu0 0.0
        %1813 = vmatprep.subr.mxu0 0.0
        %1814 = vmatpush1.msra.mxu0 0.0
        %1815 = vmatprep.mubr.f32.mxu0 0.0
        %1816 = vmatmul.mubr.f32.gmra.mrb[0].mxu0 %v1724
        %v1817 = vpop.f32.mrb[0].mxu0
        %v1818 = vadd.f32 %v1720, %v1817
        %v1819 = vpop.f32.mrb[0].mxu0
        %1820 = vmatprep.mubr.f32.mxu0 0.0
        %1821 = vmatmul.mubr.f32.gmra.mrb[0].mxu0 %v1727
        %v1822 = vpop.f32.mrb[0].mxu0
        %v1823 = vadd.f32 %v1720, %v1822
        %v1824 = vpop.f32.mrb[0].mxu0
        %1825 = vmatprep.mubr.f32.mxu0 0.0
        %1826 = vmatmul.mubr.f32.gmra.mrb[0].mxu0 %v1730
        %v1827 = vpop.f32.mrb[0].mxu0
        %v1828 = vadd.f32 %v1720, %v1827
        %v1829 = vpop.f32.mrb[0].mxu0
        %1830 = vmatprep.mubr.f32.mxu0 0.0
        %1831 = vmatmul.mubr.f32.gmra.mrb[0].mxu0 %v1733
        %v1832 = vpop.f32.mrb[0].mxu0
        %v1833 = vadd.f32 %v1720, %v1832
        %v1834 = vpop.f32.mrb[0].mxu0
        %1835 = vmatprep.mubr.f32.mxu0 0.0
        %1836 = vmatmul.mubr.f32.gmra.mrb[0].mxu0 %v1736
        %v1837 = vpop.f32.mrb[0].mxu0
        %v1838 = vadd.f32 %v1720, %v1837
        %v1839 = vpop.f32.mrb[0].mxu0
        %1840 = vmatprep.mubr.f32.mxu0 0.0
        %1841 = vmatmul.mubr.f32.gmra.mrb[0].mxu0 %v1739
        %v1842 = vpop.f32.mrb[0].mxu0
        %v1843 = vadd.f32 %v1720, %v1842
        %v1844 = vpop.f32.mrb[0].mxu0
        %1845 = vmatprep.mubr.f32.mxu0 0.0
        %1846 = vmatmul.mubr.f32.gmra.mrb[0].mxu0 %v1742
        %v1847 = vpop.f32.mrb[0].mxu0
        %v1848 = vadd.f32 %v1720, %v1847
        %v1849 = vpop.f32.mrb[0].mxu0
        %1850 = vmatprep.mubr.f32.mxu0 0.0
        %1851 = vmatmul.mubr.f32.gmra.mrb[0].mxu0 %v1745
        %v1852 = vpop.f32.mrb[0].mxu0
        %v1853 = vadd.f32 %v1720, %v1852
        %v1854 = vpop.f32.mrb[0].mxu0
        %1855 = vdwg.mxu0
        %v1856 = vxor.u32 %v1818, 2147483648
        %v1857 = vxor.u32 %v1823, 2147483648
        %v1858 = vxor.u32 %v1828, 2147483648
        %v1859 = vxor.u32 %v1833, 2147483648
        %v1860 = vxor.u32 %v1838, 2147483648
        %v1861 = vxor.u32 %v1843, 2147483648
        %v1862 = vxor.u32 %v1848, 2147483648
        %v1863 = vxor.u32 %v1853, 2147483648
        %v1864 = vmul.f32 %v1856, 1.442695
        %v1865 = vpow.pop %v1864
        %v1866 = vmul.f32 %v1857, 1.442695
        %v1867 = vpow.pop %v1866
        %v1868 = vmul.f32 %v1858, 1.442695
        %v1869 = vpow.pop %v1868
        %v1870 = vmul.f32 %v1859, 1.442695
        %v1871 = vpow.pop %v1870
        %v1872 = vmul.f32 %v1860, 1.442695
        %v1873 = vpow.pop %v1872
        %v1874 = vmul.f32 %v1861, 1.442695
        %v1875 = vpow.pop %v1874
        %v1876 = vmul.f32 %v1862, 1.442695
        %v1877 = vpow.pop %v1876
        %v1878 = vmul.f32 %v1863, 1.442695
        %v1879 = vpow.pop %v1878
        %v1880 = vadd.f32 %v1865, 1.0
        %v1881 = vadd.f32 %v1867, 1.0
        %v1882 = vadd.f32 %v1869, 1.0
        %v1883 = vadd.f32 %v1871, 1.0
        %v1884 = vadd.f32 %v1873, 1.0
        %v1885 = vadd.f32 %v1875, 1.0
        %v1886 = vadd.f32 %v1877, 1.0
        %v1887 = vadd.f32 %v1879, 1.0
        %v1888 = vrcp.pop %v1880
        %v1889 = vmul.f32 1.0, %v1888
        %v1890 = vrcp.pop %v1881
        %v1891 = vmul.f32 1.0, %v1890
        %v1892 = vrcp.pop %v1882
        %v1893 = vmul.f32 1.0, %v1892
        %v1894 = vrcp.pop %v1883
        %v1895 = vmul.f32 1.0, %v1894
        %v1896 = vrcp.pop %v1884
        %v1897 = vmul.f32 1.0, %v1896
        %v1898 = vrcp.pop %v1885
        %v1899 = vmul.f32 1.0, %v1898
        %v1900 = vrcp.pop %v1886
        %v1901 = vmul.f32 1.0, %v1900
        %v1902 = vrcp.pop %v1887
        %v1903 = vmul.f32 1.0, %v1902
        %1905 = vset.pattern.permute.xlu0 0
        %1906 = vperm.xlu0 %1905, %v1889
        %v1907 = vpop.permute.xlu0 %1906
        %1910 = vset.pattern.permute.xlu0 0
        %1911 = vperm.xlu0 %1910, %v1891
        %v1912 = vpop.permute.xlu0 %1911
        %1915 = vset.pattern.permute.xlu0 0
        %1916 = vperm.xlu0 %1915, %v1893
        %v1917 = vpop.permute.xlu0 %1916
        %1920 = vset.pattern.permute.xlu0 0
        %1921 = vperm.xlu0 %1920, %v1895
        %v1922 = vpop.permute.xlu0 %1921
        %1925 = vset.pattern.permute.xlu0 0
        %1926 = vperm.xlu0 %1925, %v1897
        %v1927 = vpop.permute.xlu0 %1926
        %1930 = vset.pattern.permute.xlu0 0
        %1931 = vperm.xlu0 %1930, %v1899
        %v1932 = vpop.permute.xlu0 %1931
        %1935 = vset.pattern.permute.xlu0 0
        %1936 = vperm.xlu0 %1935, %v1901
        %v1937 = vpop.permute.xlu0 %1936
        %1940 = vset.pattern.permute.xlu0 0
        %1941 = vperm.xlu0 %1940, %v1903
        %v1942 = vpop.permute.xlu0 %1941
        %v1944 = vmul.f32 %v1907, %v853
        %v1945 = vmul.f32 %v1912, %v854
        %v1946 = vmul.f32 %v1917, %v855
        %v1947 = vmul.f32 %v1922, %v856
        %v1948 = vmul.f32 %v1927, %v857
        %v1949 = vmul.f32 %v1932, %v858
        %v1950 = vmul.f32 %v1937, %v859
        %v1951 = vmul.f32 %v1942, %v860
        %v1952 = vld [vmem:[#allocation22] sm:$0xff]
        %v1953 = vld [vmem:[#allocation22 + $0x8] sm:$0xff]
        %v1954 = vld [vmem:[#allocation22 + $0x10] sm:$0xff]
        %v1955 = vld [vmem:[#allocation22 + $0x18] sm:$0xff]
        %v1956 = vld [vmem:[#allocation22 + $0x20] sm:$0xff]
        %v1957 = vld [vmem:[#allocation22 + $0x28] sm:$0xff]
        %v1958 = vld [vmem:[#allocation22 + $0x30] sm:$0xff]
        %v1959 = vld [vmem:[#allocation22 + $0x38] sm:$0xff]
        %v1960 = vld [vmem:[#allocation24] sm:$0x1]
        %v1962 = vlaneseq
        %v1963 = vshrl.u32 %v1962, 7
        %v1964 = vsub.s32 0, %v1963
        %v1965 = vrot.slane %v1960, %v1964
        %1967 = vxpose.xlu0.b32.start [1/16] %v1944, 128
        %1968 = vxpose.xlu0.b32.cont [2/16] %v1945, 128
        %1969 = vxpose.xlu0.b32.cont [3/16] %v1946, 128
        %1970 = vxpose.xlu0.b32.cont [4/16] %v1947, 128
        %1971 = vxpose.xlu0.b32.cont [5/16] %v1948, 128
        %1972 = vxpose.xlu0.b32.cont [6/16] %v1949, 128
        %1973 = vxpose.xlu0.b32.cont [7/16] %v1950, 128
        %1974 = vxpose.xlu0.b32.cont [8/16] %v1951, 128
        %1975 = vxpose.xlu0.b32.cont [9/16] 0.0, 128
        %1976 = vxpose.xlu0.b32.cont [10/16] 0.0, 128
        %1977 = vxpose.xlu0.b32.cont [11/16] 0.0, 128
        %1978 = vxpose.xlu0.b32.cont [12/16] 0.0, 128
        %1979 = vxpose.xlu0.b32.cont [13/16] 0.0, 128
        %1980 = vxpose.xlu0.b32.cont [14/16] 0.0, 128
        %1981 = vxpose.xlu0.b32.cont [15/16] 0.0, 128
        %1982 = vxpose.xlu0.b32.end [16/16] 0.0, 128
        %v1983 = vpop.trf.xlu0
        %v1984 = vpop.trf.xlu0
        %v1985 = vpop.trf.xlu0
        %v1986 = vpop.trf.xlu0
        %v1987 = vpop.trf.xlu0
        %v1988 = vpop.trf.xlu0
        %v1989 = vpop.trf.xlu0
        %v1990 = vpop.trf.xlu0
        %v1991 = vpop.trf.xlu0
        %v1992 = vpop.trf.xlu0
        %v1993 = vpop.trf.xlu0
        %v1994 = vpop.trf.xlu0
        %v1995 = vpop.trf.xlu0
        %v1996 = vpop.trf.xlu0
        %v1997 = vpop.trf.xlu0
        %v1998 = vpop.trf.xlu0
        %v2000 = vsel %vm1207, %v1983, 0
        %v2003 = vsel %vm1207, %v1984, 0
        %v2006 = vsel %vm1207, %v1985, 0
        %v2009 = vsel %vm1207, %v1986, 0
        %v2012 = vsel %vm1207, %v1987, 0
        %v2015 = vsel %vm1207, %v1988, 0
        %v2018 = vsel %vm1207, %v1989, 0
        %v2021 = vsel %vm1207, %v1990, 0
        %v2024 = vsel %vm1207, %v1991, 0
        %v2027 = vsel %vm1207, %v1992, 0
        %v2030 = vsel %vm1207, %v1993, 0
        %v2033 = vsel %vm1207, %v1994, 0
        %v2036 = vsel %vm1207, %v1995, 0
        %v2039 = vsel %vm1207, %v1996, 0
        %v2042 = vsel %vm1207, %v1997, 0
        %v2045 = vsel %vm1207, %v1998, 0
        %2047 = vmatprep.subr.mxu0 0.0
        %2048 = vmatpush1.msra.mxu0 %v1952
        %2049 = vmatprep.subr.mxu0 0.0
        %2050 = vmatpush1.msra.mxu0 %v1953
        %2051 = vmatprep.subr.mxu0 0.0
        %2052 = vmatpush1.msra.mxu0 %v1954
        %2053 = vmatprep.subr.mxu0 0.0
        %2054 = vmatpush1.msra.mxu0 %v1955
        %2055 = vmatprep.subr.mxu0 0.0
        %2056 = vmatpush1.msra.mxu0 %v1956
        %2057 = vmatprep.subr.mxu0 0.0
        %2058 = vmatpush1.msra.mxu0 %v1957
        %2059 = vmatprep.subr.mxu0 0.0
        %2060 = vmatpush1.msra.mxu0 %v1958
        %2061 = vmatprep.subr.mxu0 0.0
        %2062 = vmatpush1.msra.mxu0 %v1959
        %2063 = vmatprep.subr.mxu0 0.0
        %2064 = vmatpush1.msra.mxu0 0.0
        %2065 = vmatprep.subr.mxu0 0.0
        %2066 = vmatpush1.msra.mxu0 0.0
        %2067 = vmatprep.subr.mxu0 0.0
        %2068 = vmatpush1.msra.mxu0 0.0
        %2069 = vmatprep.subr.mxu0 0.0
        %2070 = vmatpush1.msra.mxu0 0.0
        %2071 = vmatprep.subr.mxu0 0.0
        %2072 = vmatpush1.msra.mxu0 0.0
        %2073 = vmatprep.subr.mxu0 0.0
        %2074 = vmatpush1.msra.mxu0 0.0
        %2075 = vmatprep.subr.mxu0 0.0
        %2076 = vmatpush1.msra.mxu0 0.0
        %2077 = vmatprep.subr.mxu0 0.0
        %2078 = vmatpush1.msra.mxu0 0.0
        %2079 = vmatprep.subr.mxu0 0.0
        %2080 = vmatpush1.msra.mxu0 0.0
        %2081 = vmatprep.subr.mxu0 0.0
        %2082 = vmatpush1.msra.mxu0 0.0
        %2083 = vmatprep.subr.mxu0 0.0
        %2084 = vmatpush1.msra.mxu0 0.0
        %2085 = vmatprep.subr.mxu0 0.0
        %2086 = vmatpush1.msra.mxu0 0.0
        %2087 = vmatprep.subr.mxu0 0.0
        %2088 = vmatpush1.msra.mxu0 0.0
        %2089 = vmatprep.subr.mxu0 0.0
        %2090 = vmatpush1.msra.mxu0 0.0
        %2091 = vmatprep.subr.mxu0 0.0
        %2092 = vmatpush1.msra.mxu0 0.0
        %2093 = vmatprep.subr.mxu0 0.0
        %2094 = vmatpush1.msra.mxu0 0.0
        %2095 = vmatprep.subr.mxu0 0.0
        %2096 = vmatpush1.msra.mxu0 0.0
        %2097 = vmatprep.subr.mxu0 0.0
        %2098 = vmatpush1.msra.mxu0 0.0
        %2099 = vmatprep.subr.mxu0 0.0
        %2100 = vmatpush1.msra.mxu0 0.0
        %2101 = vmatprep.subr.mxu0 0.0
        %2102 = vmatpush1.msra.mxu0 0.0
        %2103 = vmatprep.subr.mxu0 0.0
        %2104 = vmatpush1.msra.mxu0 0.0
        %2105 = vmatprep.subr.mxu0 0.0
        %2106 = vmatpush1.msra.mxu0 0.0
        %2107 = vmatprep.subr.mxu0 0.0
        %2108 = vmatpush1.msra.mxu0 0.0
        %2109 = vmatprep.subr.mxu0 0.0
        %2110 = vmatpush1.msra.mxu0 0.0
        %2111 = vmatprep.mubr.f32.mxu0 0.0
        %2112 = vmatmul.mubr.f32.gmra.mrb[0].mxu0 %v2000
        %v2113 = vpop.f32.mrb[0].mxu0
        %v2114 = vadd.f32 %v1965, %v2113
        %v2115 = vpop.f32.mrb[0].mxu0
        %2116 = vmatprep.mubr.f32.mxu0 0.0
        %2117 = vmatmul.mubr.f32.gmra.mrb[0].mxu0 %v2003
        %v2118 = vpop.f32.mrb[0].mxu0
        %v2119 = vadd.f32 %v1965, %v2118
        %v2120 = vpop.f32.mrb[0].mxu0
        %2121 = vmatprep.mubr.f32.mxu0 0.0
        %2122 = vmatmul.mubr.f32.gmra.mrb[0].mxu0 %v2006
        %v2123 = vpop.f32.mrb[0].mxu0
        %v2124 = vadd.f32 %v1965, %v2123
        %v2125 = vpop.f32.mrb[0].mxu0
        %2126 = vmatprep.mubr.f32.mxu0 0.0
        %2127 = vmatmul.mubr.f32.gmra.mrb[0].mxu0 %v2009
        %v2128 = vpop.f32.mrb[0].mxu0
        %v2129 = vadd.f32 %v1965, %v2128
        %v2130 = vpop.f32.mrb[0].mxu0
        %2131 = vmatprep.mubr.f32.mxu0 0.0
        %2132 = vmatmul.mubr.f32.gmra.mrb[0].mxu0 %v2012
        %v2133 = vpop.f32.mrb[0].mxu0
        %v2134 = vadd.f32 %v1965, %v2133
        %v2135 = vpop.f32.mrb[0].mxu0
        %2136 = vmatprep.mubr.f32.mxu0 0.0
        %2137 = vmatmul.mubr.f32.gmra.mrb[0].mxu0 %v2015
        %v2138 = vpop.f32.mrb[0].mxu0
        %v2139 = vadd.f32 %v1965, %v2138
        %v2140 = vpop.f32.mrb[0].mxu0
        %2141 = vmatprep.mubr.f32.mxu0 0.0
        %2142 = vmatmul.mubr.f32.gmra.mrb[0].mxu0 %v2018
        %v2143 = vpop.f32.mrb[0].mxu0
        %v2144 = vadd.f32 %v1965, %v2143
        %v2145 = vpop.f32.mrb[0].mxu0
        %2146 = vmatprep.mubr.f32.mxu0 0.0
        %2147 = vmatmul.mubr.f32.gmra.mrb[0].mxu0 %v2021
        %v2148 = vpop.f32.mrb[0].mxu0
        %v2149 = vadd.f32 %v1965, %v2148
        %v2150 = vpop.f32.mrb[0].mxu0
        %2151 = vmatprep.mubr.f32.mxu0 0.0
        %2152 = vmatmul.mubr.f32.gmra.mrb[0].mxu0 %v2024
        %v2153 = vpop.f32.mrb[0].mxu0
        %v2154 = vadd.f32 %v1965, %v2153
        %v2155 = vpop.f32.mrb[0].mxu0
        %2156 = vmatprep.mubr.f32.mxu0 0.0
        %2157 = vmatmul.mubr.f32.gmra.mrb[0].mxu0 %v2027
        %v2158 = vpop.f32.mrb[0].mxu0
        %v2159 = vadd.f32 %v1965, %v2158
        %v2160 = vpop.f32.mrb[0].mxu0
        %2161 = vmatprep.mubr.f32.mxu0 0.0
        %2162 = vmatmul.mubr.f32.gmra.mrb[0].mxu0 %v2030
        %v2163 = vpop.f32.mrb[0].mxu0
        %v2164 = vadd.f32 %v1965, %v2163
        %v2165 = vpop.f32.mrb[0].mxu0
        %2166 = vmatprep.mubr.f32.mxu0 0.0
        %2167 = vmatmul.mubr.f32.gmra.mrb[0].mxu0 %v2033
        %v2168 = vpop.f32.mrb[0].mxu0
        %v2169 = vadd.f32 %v1965, %v2168
        %v2170 = vpop.f32.mrb[0].mxu0
        %2171 = vmatprep.mubr.f32.mxu0 0.0
        %2172 = vmatmul.mubr.f32.gmra.mrb[0].mxu0 %v2036
        %v2173 = vpop.f32.mrb[0].mxu0
        %v2174 = vadd.f32 %v1965, %v2173
        %v2175 = vpop.f32.mrb[0].mxu0
        %2176 = vmatprep.mubr.f32.mxu0 0.0
        %2177 = vmatmul.mubr.f32.gmra.mrb[0].mxu0 %v2039
        %v2178 = vpop.f32.mrb[0].mxu0
        %v2179 = vadd.f32 %v1965, %v2178
        %v2180 = vpop.f32.mrb[0].mxu0
        %2181 = vmatprep.mubr.f32.mxu0 0.0
        %2182 = vmatmul.mubr.f32.gmra.mrb[0].mxu0 %v2042
        %v2183 = vpop.f32.mrb[0].mxu0
        %v2184 = vadd.f32 %v1965, %v2183
        %v2185 = vpop.f32.mrb[0].mxu0
        %2186 = vmatprep.mubr.f32.mxu0 0.0
        %2187 = vmatmul.mubr.f32.gmra.mrb[0].mxu0 %v2045
        %v2188 = vpop.f32.mrb[0].mxu0
        %v2189 = vadd.f32 %v1965, %v2188
        %v2190 = vpop.f32.mrb[0].mxu0
        %2191 = vdwg.mxu0
        %v2192 = vmax.f32 %v2114, 0.0
        %v2193 = vmax.f32 %v2119, 0.0
        %v2194 = vmax.f32 %v2124, 0.0
        %v2195 = vmax.f32 %v2129, 0.0
        %v2196 = vmax.f32 %v2134, 0.0
        %v2197 = vmax.f32 %v2139, 0.0
        %v2198 = vmax.f32 %v2144, 0.0
        %v2199 = vmax.f32 %v2149, 0.0
        %v2200 = vmax.f32 %v2154, 0.0
        %v2201 = vmax.f32 %v2159, 0.0
        %v2202 = vmax.f32 %v2164, 0.0
        %v2203 = vmax.f32 %v2169, 0.0
        %v2204 = vmax.f32 %v2174, 0.0
        %v2205 = vmax.f32 %v2179, 0.0
        %v2206 = vmax.f32 %v2184, 0.0
        %v2207 = vmax.f32 %v2189, 0.0
        %2224 = vrot.lane.b32.xlu0 %v2192, 120
        %v2225 = vpop.permute.xlu0 %2224
        %2226 = vrot.lane.b32.xlu0 %v2193, 120
        %v2227 = vpop.permute.xlu0 %2226
        %2228 = vrot.lane.b32.xlu0 %v2194, 120
        %v2229 = vpop.permute.xlu0 %2228
        %2230 = vrot.lane.b32.xlu0 %v2195, 120
        %v2231 = vpop.permute.xlu0 %2230
        %2232 = vrot.lane.b32.xlu0 %v2196, 120
        %v2233 = vpop.permute.xlu0 %2232
        %2234 = vrot.lane.b32.xlu0 %v2197, 120
        %v2235 = vpop.permute.xlu0 %2234
        %2236 = vrot.lane.b32.xlu0 %v2198, 120
        %v2237 = vpop.permute.xlu0 %2236
        %2238 = vrot.lane.b32.xlu0 %v2199, 120
        %v2239 = vpop.permute.xlu0 %2238
        %2240 = vrot.lane.b32.xlu0 %v2200, 120
        %v2241 = vpop.permute.xlu0 %2240
        %2242 = vrot.lane.b32.xlu0 %v2201, 120
        %v2243 = vpop.permute.xlu0 %2242
        %2244 = vrot.lane.b32.xlu0 %v2202, 120
        %v2245 = vpop.permute.xlu0 %2244
        %2246 = vrot.lane.b32.xlu0 %v2203, 120
        %v2247 = vpop.permute.xlu0 %2246
        %2248 = vrot.lane.b32.xlu0 %v2204, 120
        %v2249 = vpop.permute.xlu0 %2248
        %2250 = vrot.lane.b32.xlu0 %v2205, 120
        %v2251 = vpop.permute.xlu0 %2250
        %2252 = vrot.lane.b32.xlu0 %v2206, 120
        %v2253 = vpop.permute.xlu0 %2252
        %2254 = vrot.lane.b32.xlu0 %v2207, 120
        %v2255 = vpop.permute.xlu0 %2254
        %v2256 = vsel %vm1021, %v2192, 0
        %v2258 = vsel %vm1021, %v2193, 0
        %v2260 = vsel %vm1021, %v2194, 0
        %v2262 = vsel %vm1021, %v2195, 0
        %v2264 = vsel %vm1021, %v2196, 0
        %v2266 = vsel %vm1021, %v2197, 0
        %v2268 = vsel %vm1021, %v2198, 0
        %v2270 = vsel %vm1021, %v2199, 0
        %v2272 = vsel %vm1021, %v2200, 0
        %v2274 = vsel %vm1021, %v2201, 0
        %v2276 = vsel %vm1021, %v2202, 0
        %v2278 = vsel %vm1021, %v2203, 0
        %v2280 = vsel %vm1021, %v2204, 0
        %v2282 = vsel %vm1021, %v2205, 0
        %v2284 = vsel %vm1021, %v2206, 0
        %v2286 = vsel %vm1021, %v2207, 0
        %v2288 = vsel %vm1021, %v2225, 0
        %v2290 = vsel %vm1021, %v2227, 0
        %v2292 = vsel %vm1021, %v2229, 0
        %v2294 = vsel %vm1021, %v2231, 0
        %v2296 = vsel %vm1021, %v2233, 0
        %v2298 = vsel %vm1021, %v2235, 0
        %v2300 = vsel %vm1021, %v2237, 0
        %v2302 = vsel %vm1021, %v2239, 0
        %v2304 = vsel %vm1021, %v2241, 0
        %v2306 = vsel %vm1021, %v2243, 0
        %v2308 = vsel %vm1021, %v2245, 0
        %v2310 = vsel %vm1021, %v2247, 0
        %v2312 = vsel %vm1021, %v2249, 0
        %v2314 = vsel %vm1021, %v2251, 0
        %v2316 = vsel %vm1021, %v2253, 0
        %v2318 = vsel %vm1021, %v2255, 0
        %2320 = vmatprep.subr.mxu0 0.0
        %2321 = vmatpush1.xpose.msra.mxu0 %v2288
        %2322 = vmatprep.subr.mxu0 0.0
        %2323 = vmatpush1.xpose.msra.mxu0 %v2290
        %2324 = vmatprep.subr.mxu0 0.0
        %2325 = vmatpush1.xpose.msra.mxu0 %v2292
        %2326 = vmatprep.subr.mxu0 0.0
        %2327 = vmatpush1.xpose.msra.mxu0 %v2294
        %2328 = vmatprep.subr.mxu0 0.0
        %2329 = vmatpush1.xpose.msra.mxu0 %v2296
        %2330 = vmatprep.subr.mxu0 0.0
        %2331 = vmatpush1.xpose.msra.mxu0 %v2298
        %2332 = vmatprep.subr.mxu0 0.0
        %2333 = vmatpush1.xpose.msra.mxu0 %v2300
        %2334 = vmatprep.subr.mxu0 0.0
        %2335 = vmatpush1.xpose.msra.mxu0 %v2302
        %2336 = vmatprep.subr.mxu0 0.0
        %2337 = vmatpush1.xpose.msra.mxu0 %v2304
        %2338 = vmatprep.subr.mxu0 0.0
        %2339 = vmatpush1.xpose.msra.mxu0 %v2306
        %2340 = vmatprep.subr.mxu0 0.0
        %2341 = vmatpush1.xpose.msra.mxu0 %v2308
        %2342 = vmatprep.subr.mxu0 0.0
        %2343 = vmatpush1.xpose.msra.mxu0 %v2310
        %2344 = vmatprep.subr.mxu0 0.0
        %2345 = vmatpush1.xpose.msra.mxu0 %v2312
        %2346 = vmatprep.subr.mxu0 0.0
        %2347 = vmatpush1.xpose.msra.mxu0 %v2314
        %2348 = vmatprep.subr.mxu0 0.0
        %2349 = vmatpush1.xpose.msra.mxu0 %v2316
        %2350 = vmatprep.subr.mxu0 0.0
        %2351 = vmatpush1.xpose.msra.mxu0 %v2318
        %2352 = vmatprep.subr.mxu0 0.0
        %2353 = vmatpush1.xpose.msra.mxu0 0.0
        %2354 = vmatprep.subr.mxu0 0.0
        %2355 = vmatpush1.xpose.msra.mxu0 0.0
        %2356 = vmatprep.subr.mxu0 0.0
        %2357 = vmatpush1.xpose.msra.mxu0 0.0
        %2358 = vmatprep.subr.mxu0 0.0
        %2359 = vmatpush1.xpose.msra.mxu0 0.0
        %2360 = vmatprep.subr.mxu0 0.0
        %2361 = vmatpush1.xpose.msra.mxu0 0.0
        %2362 = vmatprep.subr.mxu0 0.0
        %2363 = vmatpush1.xpose.msra.mxu0 0.0
        %2364 = vmatprep.subr.mxu0 0.0
        %2365 = vmatpush1.xpose.msra.mxu0 0.0
        %2366 = vmatprep.subr.mxu0 0.0
        %2367 = vmatpush1.xpose.msra.mxu0 0.0
        %2368 = vmatprep.subr.mxu0 0.0
        %2369 = vmatpush1.xpose.msra.mxu0 0.0
        %2370 = vmatprep.subr.mxu0 0.0
        %2371 = vmatpush1.xpose.msra.mxu0 0.0
        %2372 = vmatprep.subr.mxu0 0.0
        %2373 = vmatpush1.xpose.msra.mxu0 0.0
        %2374 = vmatprep.subr.mxu0 0.0
        %2375 = vmatpush1.xpose.msra.mxu0 0.0
        %2376 = vmatprep.subr.mxu0 0.0
        %2377 = vmatpush1.xpose.msra.mxu0 0.0
        %2378 = vmatprep.subr.mxu0 0.0
        %2379 = vmatpush1.xpose.msra.mxu0 0.0
        %2380 = vmatprep.subr.mxu0 0.0
        %2381 = vmatpush1.xpose.msra.mxu0 0.0
        %2382 = vmatprep.subr.mxu0 0.0
        %2383 = vmatpush1.xpose.msra.mxu0 0.0
        %2384 = vmatprep.mubr.f32.mxu0 0.0
        %2385 = vmatmul.mubr.f32.gmra.mrb[0].mxu0 %v2256
        %v2386 = vpop.f32.mrb[0].mxu0
        %v2387 = vadd.f32 0.0, %v2386
        %v2388 = vpop.f32.mrb[0].mxu0
        %2389 = vmatprep.mubr.f32.mxu0 0.0
        %2390 = vmatmul.mubr.f32.gmra.mrb[0].mxu0 %v2258
        %v2391 = vpop.f32.mrb[0].mxu0
        %v2392 = vadd.f32 0.0, %v2391
        %v2393 = vpop.f32.mrb[0].mxu0
        %2394 = vmatprep.mubr.f32.mxu0 0.0
        %2395 = vmatmul.mubr.f32.gmra.mrb[0].mxu0 %v2260
        %v2396 = vpop.f32.mrb[0].mxu0
        %v2397 = vadd.f32 0.0, %v2396
        %v2398 = vpop.f32.mrb[0].mxu0
        %2399 = vmatprep.mubr.f32.mxu0 0.0
        %2400 = vmatmul.mubr.f32.gmra.mrb[0].mxu0 %v2262
        %v2401 = vpop.f32.mrb[0].mxu0
        %v2402 = vadd.f32 0.0, %v2401
        %v2403 = vpop.f32.mrb[0].mxu0
        %2404 = vmatprep.mubr.f32.mxu0 0.0
        %2405 = vmatmul.mubr.f32.gmra.mrb[0].mxu0 %v2264
        %v2406 = vpop.f32.mrb[0].mxu0
        %v2407 = vadd.f32 0.0, %v2406
        %v2408 = vpop.f32.mrb[0].mxu0
        %2409 = vmatprep.mubr.f32.mxu0 0.0
        %2410 = vmatmul.mubr.f32.gmra.mrb[0].mxu0 %v2266
        %v2411 = vpop.f32.mrb[0].mxu0
        %v2412 = vadd.f32 0.0, %v2411
        %v2413 = vpop.f32.mrb[0].mxu0
        %2414 = vmatprep.mubr.f32.mxu0 0.0
        %2415 = vmatmul.mubr.f32.gmra.mrb[0].mxu0 %v2268
        %v2416 = vpop.f32.mrb[0].mxu0
        %v2417 = vadd.f32 0.0, %v2416
        %v2418 = vpop.f32.mrb[0].mxu0
        %2419 = vmatprep.mubr.f32.mxu0 0.0
        %2420 = vmatmul.mubr.f32.gmra.mrb[0].mxu0 %v2270
        %v2421 = vpop.f32.mrb[0].mxu0
        %v2422 = vadd.f32 0.0, %v2421
        %v2423 = vpop.f32.mrb[0].mxu0
        %2424 = vmatprep.mubr.f32.mxu0 0.0
        %2425 = vmatmul.mubr.f32.gmra.mrb[0].mxu0 %v2272
        %v2426 = vpop.f32.mrb[0].mxu0
        %v2427 = vadd.f32 0.0, %v2426
        %v2428 = vpop.f32.mrb[0].mxu0
        %2429 = vmatprep.mubr.f32.mxu0 0.0
        %2430 = vmatmul.mubr.f32.gmra.mrb[0].mxu0 %v2274
        %v2431 = vpop.f32.mrb[0].mxu0
        %v2432 = vadd.f32 0.0, %v2431
        %v2433 = vpop.f32.mrb[0].mxu0
        %2434 = vmatprep.mubr.f32.mxu0 0.0
        %2435 = vmatmul.mubr.f32.gmra.mrb[0].mxu0 %v2276
        %v2436 = vpop.f32.mrb[0].mxu0
        %v2437 = vadd.f32 0.0, %v2436
        %v2438 = vpop.f32.mrb[0].mxu0
        %2439 = vmatprep.mubr.f32.mxu0 0.0
        %2440 = vmatmul.mubr.f32.gmra.mrb[0].mxu0 %v2278
        %v2441 = vpop.f32.mrb[0].mxu0
        %v2442 = vadd.f32 0.0, %v2441
        %v2443 = vpop.f32.mrb[0].mxu0
        %2444 = vmatprep.mubr.f32.mxu0 0.0
        %2445 = vmatmul.mubr.f32.gmra.mrb[0].mxu0 %v2280
        %v2446 = vpop.f32.mrb[0].mxu0
        %v2447 = vadd.f32 0.0, %v2446
        %v2448 = vpop.f32.mrb[0].mxu0
        %2449 = vmatprep.mubr.f32.mxu0 0.0
        %2450 = vmatmul.mubr.f32.gmra.mrb[0].mxu0 %v2282
        %v2451 = vpop.f32.mrb[0].mxu0
        %v2452 = vadd.f32 0.0, %v2451
        %v2453 = vpop.f32.mrb[0].mxu0
        %2454 = vmatprep.mubr.f32.mxu0 0.0
        %2455 = vmatmul.mubr.f32.gmra.mrb[0].mxu0 %v2284
        %v2456 = vpop.f32.mrb[0].mxu0
        %v2457 = vadd.f32 0.0, %v2456
        %v2458 = vpop.f32.mrb[0].mxu0
        %2459 = vmatprep.mubr.f32.mxu0 0.0
        %2460 = vmatmul.mubr.f32.gmra.mrb[0].mxu0 %v2286
        %v2461 = vpop.f32.mrb[0].mxu0
        %v2462 = vadd.f32 0.0, %v2461
        %v2463 = vpop.f32.mrb[0].mxu0
        %2464 = vdwg.mxu0
        %v2465 = vld [vmem:[#allocation25] sm:$0xff]
        %v2466 = vld [vmem:[#allocation25 + $0x8] sm:$0xff]
        %v2467 = vld [vmem:[#allocation25 + $0x10] sm:$0xff]
        %v2468 = vld [vmem:[#allocation25 + $0x18] sm:$0xff]
        %v2469 = vld [vmem:[#allocation25 + $0x20] sm:$0xff]
        %v2470 = vld [vmem:[#allocation25 + $0x28] sm:$0xff]
        %v2471 = vld [vmem:[#allocation25 + $0x30] sm:$0xff]
        %v2472 = vld [vmem:[#allocation25 + $0x38] sm:$0xff]
        %v2473 = vld [vmem:[#allocation25 + $0x40] sm:$0xff]
        %v2474 = vld [vmem:[#allocation25 + $0x48] sm:$0xff]
        %v2475 = vld [vmem:[#allocation25 + $0x50] sm:$0xff]
        %v2476 = vld [vmem:[#allocation25 + $0x58] sm:$0xff]
        %v2477 = vld [vmem:[#allocation25 + $0x60] sm:$0xff]
        %v2478 = vld [vmem:[#allocation25 + $0x68] sm:$0xff]
        %v2479 = vld [vmem:[#allocation25 + $0x70] sm:$0xff]
        %v2480 = vld [vmem:[#allocation25 + $0x78] sm:$0xff]
        %v2481 = vld [vmem:[#allocation27] sm:$0xff]
        %v2482 = vld [vmem:[#allocation27 + $0x8] sm:$0xff]
        %v2483 = vld [vmem:[#allocation27 + $0x10] sm:$0xff]
        %v2484 = vld [vmem:[#allocation27 + $0x18] sm:$0xff]
        %v2485 = vld [vmem:[#allocation27 + $0x20] sm:$0xff]
        %v2486 = vld [vmem:[#allocation27 + $0x28] sm:$0xff]
        %v2487 = vld [vmem:[#allocation27 + $0x30] sm:$0xff]
        %v2488 = vld [vmem:[#allocation27 + $0x38] sm:$0xff]
        %v2489 = vld [vmem:[#allocation27 + $0x40] sm:$0xff]
        %v2490 = vld [vmem:[#allocation27 + $0x48] sm:$0xff]
        %v2491 = vld [vmem:[#allocation27 + $0x50] sm:$0xff]
        %v2492 = vld [vmem:[#allocation27 + $0x58] sm:$0xff]
        %v2493 = vld [vmem:[#allocation27 + $0x60] sm:$0xff]
        %v2494 = vld [vmem:[#allocation27 + $0x68] sm:$0xff]
        %v2495 = vld [vmem:[#allocation27 + $0x70] sm:$0xff]
        %v2496 = vld [vmem:[#allocation27 + $0x78] sm:$0xff]
        %2497 = vxpose.xlu0.b32.start [1/16] %v2387, 128
        %2498 = vxpose.xlu0.b32.cont [2/16] %v2392, 128
        %2499 = vxpose.xlu0.b32.cont [3/16] %v2397, 128
        %2500 = vxpose.xlu0.b32.cont [4/16] %v2402, 128
        %2501 = vxpose.xlu0.b32.cont [5/16] %v2407, 128
        %2502 = vxpose.xlu0.b32.cont [6/16] %v2412, 128
        %2503 = vxpose.xlu0.b32.cont [7/16] %v2417, 128
        %2504 = vxpose.xlu0.b32.cont [8/16] %v2422, 128
        %2505 = vxpose.xlu0.b32.cont [9/16] %v2427, 128
        %2506 = vxpose.xlu0.b32.cont [10/16] %v2432, 128
        %2507 = vxpose.xlu0.b32.cont [11/16] %v2437, 128
        %2508 = vxpose.xlu0.b32.cont [12/16] %v2442, 128
        %2509 = vxpose.xlu0.b32.cont [13/16] %v2447, 128
        %2510 = vxpose.xlu0.b32.cont [14/16] %v2452, 128
        %2511 = vxpose.xlu0.b32.cont [15/16] %v2457, 128
        %2512 = vxpose.xlu0.b32.end [16/16] %v2462, 128
        %v2513 = vpop.trf.xlu0
        %v2514 = vpop.trf.xlu0
        %v2515 = vpop.trf.xlu0
        %v2516 = vpop.trf.xlu0
        %v2517 = vpop.trf.xlu0
        %v2518 = vpop.trf.xlu0
        %v2519 = vpop.trf.xlu0
        %v2520 = vpop.trf.xlu0
        %v2521 = vpop.trf.xlu0
        %v2522 = vpop.trf.xlu0
        %v2523 = vpop.trf.xlu0
        %v2524 = vpop.trf.xlu0
        %v2525 = vpop.trf.xlu0
        %v2526 = vpop.trf.xlu0
        %v2527 = vpop.trf.xlu0
        %v2528 = vpop.trf.xlu0
        %2529 = vmatprep.subr.mxu0 0.0
        %2530 = vmatpush1.msra.mxu0 %v2481
        %2531 = vmatprep.subr.mxu0 0.0
        %2532 = vmatpush1.msra.mxu0 %v2482
        %2533 = vmatprep.subr.mxu0 0.0
        %2534 = vmatpush1.msra.mxu0 %v2483
        %2535 = vmatprep.subr.mxu0 0.0
        %2536 = vmatpush1.msra.mxu0 %v2484
        %2537 = vmatprep.subr.mxu0 0.0
        %2538 = vmatpush1.msra.mxu0 %v2485
        %2539 = vmatprep.subr.mxu0 0.0
        %2540 = vmatpush1.msra.mxu0 %v2486
        %2541 = vmatprep.subr.mxu0 0.0
        %2542 = vmatpush1.msra.mxu0 %v2487
        %2543 = vmatprep.subr.mxu0 0.0
        %2544 = vmatpush1.msra.mxu0 %v2488
        %2545 = vmatprep.subr.mxu0 0.0
        %2546 = vmatpush1.msra.mxu0 %v2489
        %2547 = vmatprep.subr.mxu0 0.0
        %2548 = vmatpush1.msra.mxu0 %v2490
        %2549 = vmatprep.subr.mxu0 0.0
        %2550 = vmatpush1.msra.mxu0 %v2491
        %2551 = vmatprep.subr.mxu0 0.0
        %2552 = vmatpush1.msra.mxu0 %v2492
        %2553 = vmatprep.subr.mxu0 0.0
        %2554 = vmatpush1.msra.mxu0 %v2493
        %2555 = vmatprep.subr.mxu0 0.0
        %2556 = vmatpush1.msra.mxu0 %v2494
        %2557 = vmatprep.subr.mxu0 0.0
        %2558 = vmatpush1.msra.mxu0 %v2495
        %2559 = vmatprep.subr.mxu0 0.0
        %2560 = vmatpush1.msra.mxu0 %v2496
        %2561 = vmatprep.subr.mxu0 0.0
        %2562 = vmatpush1.msra.mxu0 0.0
        %2563 = vmatprep.subr.mxu0 0.0
        %2564 = vmatpush1.msra.mxu0 0.0
        %2565 = vmatprep.subr.mxu0 0.0
        %2566 = vmatpush1.msra.mxu0 0.0
        %2567 = vmatprep.subr.mxu0 0.0
        %2568 = vmatpush1.msra.mxu0 0.0
        %2569 = vmatprep.subr.mxu0 0.0
        %2570 = vmatpush1.msra.mxu0 0.0
        %2571 = vmatprep.subr.mxu0 0.0
        %2572 = vmatpush1.msra.mxu0 0.0
        %2573 = vmatprep.subr.mxu0 0.0
        %2574 = vmatpush1.msra.mxu0 0.0
        %2575 = vmatprep.subr.mxu0 0.0
        %2576 = vmatpush1.msra.mxu0 0.0
        %2577 = vmatprep.subr.mxu0 0.0
        %2578 = vmatpush1.msra.mxu0 0.0
        %2579 = vmatprep.subr.mxu0 0.0
        %2580 = vmatpush1.msra.mxu0 0.0
        %2581 = vmatprep.subr.mxu0 0.0
        %2582 = vmatpush1.msra.mxu0 0.0
        %2583 = vmatprep.subr.mxu0 0.0
        %2584 = vmatpush1.msra.mxu0 0.0
        %2585 = vmatprep.subr.mxu0 0.0
        %2586 = vmatpush1.msra.mxu0 0.0
        %2587 = vmatprep.subr.mxu0 0.0
        %2588 = vmatpush1.msra.mxu0 0.0
        %2589 = vmatprep.subr.mxu0 0.0
        %2590 = vmatpush1.msra.mxu0 0.0
        %2591 = vmatprep.subr.mxu0 0.0
        %2592 = vmatpush1.msra.mxu0 0.0
        %2593 = vmatprep.mubr.f32.mxu0 0.0
        %2594 = vmatmul.mubr.f32.gmra.mrb[0].mxu0 %v2513
        %v2595 = vpop.f32.mrb[0].mxu0
        %v2596 = vadd.f32 0.0, %v2595
        %v2597 = vpop.f32.mrb[0].mxu0
        %2598 = vmatprep.mubr.f32.mxu0 0.0
        %2599 = vmatmul.mubr.f32.gmra.mrb[0].mxu0 %v2514
        %v2600 = vpop.f32.mrb[0].mxu0
        %v2601 = vadd.f32 0.0, %v2600
        %v2602 = vpop.f32.mrb[0].mxu0
        %2603 = vmatprep.mubr.f32.mxu0 0.0
        %2604 = vmatmul.mubr.f32.gmra.mrb[0].mxu0 %v2515
        %v2605 = vpop.f32.mrb[0].mxu0
        %v2606 = vadd.f32 0.0, %v2605
        %v2607 = vpop.f32.mrb[0].mxu0
        %2608 = vmatprep.mubr.f32.mxu0 0.0
        %2609 = vmatmul.mubr.f32.gmra.mrb[0].mxu0 %v2516
        %v2610 = vpop.f32.mrb[0].mxu0
        %v2611 = vadd.f32 0.0, %v2610
        %v2612 = vpop.f32.mrb[0].mxu0
        %2613 = vmatprep.mubr.f32.mxu0 0.0
        %2614 = vmatmul.mubr.f32.gmra.mrb[0].mxu0 %v2517
        %v2615 = vpop.f32.mrb[0].mxu0
        %v2616 = vadd.f32 0.0, %v2615
        %v2617 = vpop.f32.mrb[0].mxu0
        %2618 = vmatprep.mubr.f32.mxu0 0.0
        %2619 = vmatmul.mubr.f32.gmra.mrb[0].mxu0 %v2518
        %v2620 = vpop.f32.mrb[0].mxu0
        %v2621 = vadd.f32 0.0, %v2620
        %v2622 = vpop.f32.mrb[0].mxu0
        %2623 = vmatprep.mubr.f32.mxu0 0.0
        %2624 = vmatmul.mubr.f32.gmra.mrb[0].mxu0 %v2519
        %v2625 = vpop.f32.mrb[0].mxu0
        %v2626 = vadd.f32 0.0, %v2625
        %v2627 = vpop.f32.mrb[0].mxu0
        %2628 = vmatprep.mubr.f32.mxu0 0.0
        %2629 = vmatmul.mubr.f32.gmra.mrb[0].mxu0 %v2520
        %v2630 = vpop.f32.mrb[0].mxu0
        %v2631 = vadd.f32 0.0, %v2630
        %v2632 = vpop.f32.mrb[0].mxu0
        %2633 = vmatprep.mubr.f32.mxu0 0.0
        %2634 = vmatmul.mubr.f32.gmra.mrb[0].mxu0 %v2521
        %v2635 = vpop.f32.mrb[0].mxu0
        %v2636 = vadd.f32 0.0, %v2635
        %v2637 = vpop.f32.mrb[0].mxu0
        %2638 = vmatprep.mubr.f32.mxu0 0.0
        %2639 = vmatmul.mubr.f32.gmra.mrb[0].mxu0 %v2522
        %v2640 = vpop.f32.mrb[0].mxu0
        %v2641 = vadd.f32 0.0, %v2640
        %v2642 = vpop.f32.mrb[0].mxu0
        %2643 = vmatprep.mubr.f32.mxu0 0.0
        %2644 = vmatmul.mubr.f32.gmra.mrb[0].mxu0 %v2523
        %v2645 = vpop.f32.mrb[0].mxu0
        %v2646 = vadd.f32 0.0, %v2645
        %v2647 = vpop.f32.mrb[0].mxu0
        %2648 = vmatprep.mubr.f32.mxu0 0.0
        %2649 = vmatmul.mubr.f32.gmra.mrb[0].mxu0 %v2524
        %v2650 = vpop.f32.mrb[0].mxu0
        %v2651 = vadd.f32 0.0, %v2650
        %v2652 = vpop.f32.mrb[0].mxu0
        %2653 = vmatprep.mubr.f32.mxu0 0.0
        %2654 = vmatmul.mubr.f32.gmra.mrb[0].mxu0 %v2525
        %v2655 = vpop.f32.mrb[0].mxu0
        %v2656 = vadd.f32 0.0, %v2655
        %v2657 = vpop.f32.mrb[0].mxu0
        %2658 = vmatprep.mubr.f32.mxu0 0.0
        %2659 = vmatmul.mubr.f32.gmra.mrb[0].mxu0 %v2526
        %v2660 = vpop.f32.mrb[0].mxu0
        %v2661 = vadd.f32 0.0, %v2660
        %v2662 = vpop.f32.mrb[0].mxu0
        %2663 = vmatprep.mubr.f32.mxu0 0.0
        %2664 = vmatmul.mubr.f32.gmra.mrb[0].mxu0 %v2527
        %v2665 = vpop.f32.mrb[0].mxu0
        %v2666 = vadd.f32 0.0, %v2665
        %v2667 = vpop.f32.mrb[0].mxu0
        %2668 = vmatprep.mubr.f32.mxu0 0.0
        %2669 = vmatmul.mubr.f32.gmra.mrb[0].mxu0 %v2528
        %v2670 = vpop.f32.mrb[0].mxu0
        %v2671 = vadd.f32 0.0, %v2670
        %v2672 = vpop.f32.mrb[0].mxu0
        %2673 = vdwg.mxu0
        %2674 = vmatprep.subr.mxu0 0.0
        %2675 = vmatpush1.msra.mxu0 %v2465
        %2676 = vmatprep.subr.mxu0 0.0
        %2677 = vmatpush1.msra.mxu0 %v2466
        %2678 = vmatprep.subr.mxu0 0.0
        %2679 = vmatpush1.msra.mxu0 %v2467
        %2680 = vmatprep.subr.mxu0 0.0
        %2681 = vmatpush1.msra.mxu0 %v2468
        %2682 = vmatprep.subr.mxu0 0.0
        %2683 = vmatpush1.msra.mxu0 %v2469
        %2684 = vmatprep.subr.mxu0 0.0
        %2685 = vmatpush1.msra.mxu0 %v2470
        %2686 = vmatprep.subr.mxu0 0.0
        %2687 = vmatpush1.msra.mxu0 %v2471
        %2688 = vmatprep.subr.mxu0 0.0
        %2689 = vmatpush1.msra.mxu0 %v2472
        %2690 = vmatprep.subr.mxu0 0.0
        %2691 = vmatpush1.msra.mxu0 %v2473
        %2692 = vmatprep.subr.mxu0 0.0
        %2693 = vmatpush1.msra.mxu0 %v2474
        %2694 = vmatprep.subr.mxu0 0.0
        %2695 = vmatpush1.msra.mxu0 %v2475
        %2696 = vmatprep.subr.mxu0 0.0
        %2697 = vmatpush1.msra.mxu0 %v2476
        %2698 = vmatprep.subr.mxu0 0.0
        %2699 = vmatpush1.msra.mxu0 %v2477
        %2700 = vmatprep.subr.mxu0 0.0
        %2701 = vmatpush1.msra.mxu0 %v2478
        %2702 = vmatprep.subr.mxu0 0.0
        %2703 = vmatpush1.msra.mxu0 %v2479
        %2704 = vmatprep.subr.mxu0 0.0
        %2705 = vmatpush1.msra.mxu0 %v2480
        %2706 = vmatprep.subr.mxu0 0.0
        %2707 = vmatpush1.msra.mxu0 0.0
        %2708 = vmatprep.subr.mxu0 0.0
        %2709 = vmatpush1.msra.mxu0 0.0
        %2710 = vmatprep.subr.mxu0 0.0
        %2711 = vmatpush1.msra.mxu0 0.0
        %2712 = vmatprep.subr.mxu0 0.0
        %2713 = vmatpush1.msra.mxu0 0.0
        %2714 = vmatprep.subr.mxu0 0.0
        %2715 = vmatpush1.msra.mxu0 0.0
        %2716 = vmatprep.subr.mxu0 0.0
        %2717 = vmatpush1.msra.mxu0 0.0
        %2718 = vmatprep.subr.mxu0 0.0
        %2719 = vmatpush1.msra.mxu0 0.0
        %2720 = vmatprep.subr.mxu0 0.0
        %2721 = vmatpush1.msra.mxu0 0.0
        %2722 = vmatprep.subr.mxu0 0.0
        %2723 = vmatpush1.msra.mxu0 0.0
        %2724 = vmatprep.subr.mxu0 0.0
        %2725 = vmatpush1.msra.mxu0 0.0
        %2726 = vmatprep.subr.mxu0 0.0
        %2727 = vmatpush1.msra.mxu0 0.0
        %2728 = vmatprep.subr.mxu0 0.0
        %2729 = vmatpush1.msra.mxu0 0.0
        %2730 = vmatprep.subr.mxu0 0.0
        %2731 = vmatpush1.msra.mxu0 0.0
        %2732 = vmatprep.subr.mxu0 0.0
        %2733 = vmatpush1.msra.mxu0 0.0
        %2734 = vmatprep.subr.mxu0 0.0
        %2735 = vmatpush1.msra.mxu0 0.0
        %2736 = vmatprep.subr.mxu0 0.0
        %2737 = vmatpush1.msra.mxu0 0.0
        %2738 = vmatprep.mubr.f32.mxu0 0.0
        %2739 = vmatmul.mubr.f32.gmra.mrb[0].mxu0 %v2387
        %v2740 = vpop.f32.mrb[0].mxu0
        %v2741 = vadd.f32 %v2596, %v2740
        %v2742 = vpop.f32.mrb[0].mxu0
        %2743 = vmatprep.mubr.f32.mxu0 0.0
        %2744 = vmatmul.mubr.f32.gmra.mrb[0].mxu0 %v2392
        %v2745 = vpop.f32.mrb[0].mxu0
        %v2746 = vadd.f32 %v2601, %v2745
        %v2747 = vpop.f32.mrb[0].mxu0
        %2748 = vmatprep.mubr.f32.mxu0 0.0
        %2749 = vmatmul.mubr.f32.gmra.mrb[0].mxu0 %v2397
        %v2750 = vpop.f32.mrb[0].mxu0
        %v2751 = vadd.f32 %v2606, %v2750
        %v2752 = vpop.f32.mrb[0].mxu0
        %2753 = vmatprep.mubr.f32.mxu0 0.0
        %2754 = vmatmul.mubr.f32.gmra.mrb[0].mxu0 %v2402
        %v2755 = vpop.f32.mrb[0].mxu0
        %v2756 = vadd.f32 %v2611, %v2755
        %v2757 = vpop.f32.mrb[0].mxu0
        %2758 = vmatprep.mubr.f32.mxu0 0.0
        %2759 = vmatmul.mubr.f32.gmra.mrb[0].mxu0 %v2407
        %v2760 = vpop.f32.mrb[0].mxu0
        %v2761 = vadd.f32 %v2616, %v2760
        %v2762 = vpop.f32.mrb[0].mxu0
        %2763 = vmatprep.mubr.f32.mxu0 0.0
        %2764 = vmatmul.mubr.f32.gmra.mrb[0].mxu0 %v2412
        %v2765 = vpop.f32.mrb[0].mxu0
        %v2766 = vadd.f32 %v2621, %v2765
        %v2767 = vpop.f32.mrb[0].mxu0
        %2768 = vmatprep.mubr.f32.mxu0 0.0
        %2769 = vmatmul.mubr.f32.gmra.mrb[0].mxu0 %v2417
        %v2770 = vpop.f32.mrb[0].mxu0
        %v2771 = vadd.f32 %v2626, %v2770
        %v2772 = vpop.f32.mrb[0].mxu0
        %2773 = vmatprep.mubr.f32.mxu0 0.0
        %2774 = vmatmul.mubr.f32.gmra.mrb[0].mxu0 %v2422
        %v2775 = vpop.f32.mrb[0].mxu0
        %v2776 = vadd.f32 %v2631, %v2775
        %v2777 = vpop.f32.mrb[0].mxu0
        %2778 = vmatprep.mubr.f32.mxu0 0.0
        %2779 = vmatmul.mubr.f32.gmra.mrb[0].mxu0 %v2427
        %v2780 = vpop.f32.mrb[0].mxu0
        %v2781 = vadd.f32 %v2636, %v2780
        %v2782 = vpop.f32.mrb[0].mxu0
        %2783 = vmatprep.mubr.f32.mxu0 0.0
        %2784 = vmatmul.mubr.f32.gmra.mrb[0].mxu0 %v2432
        %v2785 = vpop.f32.mrb[0].mxu0
        %v2786 = vadd.f32 %v2641, %v2785
        %v2787 = vpop.f32.mrb[0].mxu0
        %2788 = vmatprep.mubr.f32.mxu0 0.0
        %2789 = vmatmul.mubr.f32.gmra.mrb[0].mxu0 %v2437
        %v2790 = vpop.f32.mrb[0].mxu0
        %v2791 = vadd.f32 %v2646, %v2790
        %v2792 = vpop.f32.mrb[0].mxu0
        %2793 = vmatprep.mubr.f32.mxu0 0.0
        %2794 = vmatmul.mubr.f32.gmra.mrb[0].mxu0 %v2442
        %v2795 = vpop.f32.mrb[0].mxu0
        %v2796 = vadd.f32 %v2651, %v2795
        %v2797 = vpop.f32.mrb[0].mxu0
        %2798 = vmatprep.mubr.f32.mxu0 0.0
        %2799 = vmatmul.mubr.f32.gmra.mrb[0].mxu0 %v2447
        %v2800 = vpop.f32.mrb[0].mxu0
        %v2801 = vadd.f32 %v2656, %v2800
        %v2802 = vpop.f32.mrb[0].mxu0
        %2803 = vmatprep.mubr.f32.mxu0 0.0
        %2804 = vmatmul.mubr.f32.gmra.mrb[0].mxu0 %v2452
        %v2805 = vpop.f32.mrb[0].mxu0
        %v2806 = vadd.f32 %v2661, %v2805
        %v2807 = vpop.f32.mrb[0].mxu0
        %2808 = vmatprep.mubr.f32.mxu0 0.0
        %2809 = vmatmul.mubr.f32.gmra.mrb[0].mxu0 %v2457
        %v2810 = vpop.f32.mrb[0].mxu0
        %v2811 = vadd.f32 %v2666, %v2810
        %v2812 = vpop.f32.mrb[0].mxu0
        %2813 = vmatprep.mubr.f32.mxu0 0.0
        %2814 = vmatmul.mubr.f32.gmra.mrb[0].mxu0 %v2462
        %v2815 = vpop.f32.mrb[0].mxu0
        %v2816 = vadd.f32 %v2671, %v2815
        %v2817 = vpop.f32.mrb[0].mxu0
        %2818 = vdwg.mxu0
        %v2819 = vld [vmem:[#allocation28] sm:$0x1]
        %v2821 = vlaneseq
        %v2822 = vshrl.u32 %v2821, 7
        %v2823 = vsub.s32 0, %v2822
        %v2824 = vrot.slane %v2819, %v2823
        %v2826 = vadd.f32 %v2741, %v2824
        %v2827 = vadd.f32 %v2746, %v2824
        %v2828 = vadd.f32 %v2751, %v2824
        %v2829 = vadd.f32 %v2756, %v2824
        %v2830 = vadd.f32 %v2761, %v2824
        %v2831 = vadd.f32 %v2766, %v2824
        %v2832 = vadd.f32 %v2771, %v2824
        %v2833 = vadd.f32 %v2776, %v2824
        %v2834 = vadd.f32 %v2781, %v2824
        %v2835 = vadd.f32 %v2786, %v2824
        %v2836 = vadd.f32 %v2791, %v2824
        %v2837 = vadd.f32 %v2796, %v2824
        %v2838 = vadd.f32 %v2801, %v2824
        %v2839 = vadd.f32 %v2806, %v2824
        %v2840 = vadd.f32 %v2811, %v2824
        %v2841 = vadd.f32 %v2816, %v2824
        %v2842 = vmax.f32 %v2826, 0.0
        %v2843 = vmax.f32 %v2827, 0.0
        %v2844 = vmax.f32 %v2828, 0.0
        %v2845 = vmax.f32 %v2829, 0.0
        %v2846 = vmax.f32 %v2830, 0.0
        %v2847 = vmax.f32 %v2831, 0.0
        %v2848 = vmax.f32 %v2832, 0.0
        %v2849 = vmax.f32 %v2833, 0.0
        %v2850 = vmax.f32 %v2834, 0.0
        %v2851 = vmax.f32 %v2835, 0.0
        %v2852 = vmax.f32 %v2836, 0.0
        %v2853 = vmax.f32 %v2837, 0.0
        %v2854 = vmax.f32 %v2838, 0.0
        %v2855 = vmax.f32 %v2839, 0.0
        %v2856 = vmax.f32 %v2840, 0.0
        %v2857 = vmax.f32 %v2841, 0.0
        %2858 = vrot.lane.b32.xlu0 %v2192, 112
        %v2859 = vpop.permute.xlu0 %2858
        %2860 = vrot.lane.b32.xlu0 %v2193, 112
        %v2861 = vpop.permute.xlu0 %2860
        %2862 = vrot.lane.b32.xlu0 %v2194, 112
        %v2863 = vpop.permute.xlu0 %2862
        %2864 = vrot.lane.b32.xlu0 %v2195, 112
        %v2865 = vpop.permute.xlu0 %2864
        %2866 = vrot.lane.b32.xlu0 %v2196, 112
        %v2867 = vpop.permute.xlu0 %2866
        %2868 = vrot.lane.b32.xlu0 %v2197, 112
        %v2869 = vpop.permute.xlu0 %2868
        %2870 = vrot.lane.b32.xlu0 %v2198, 112
        %v2871 = vpop.permute.xlu0 %2870
        %2872 = vrot.lane.b32.xlu0 %v2199, 112
        %v2873 = vpop.permute.xlu0 %2872
        %2874 = vrot.lane.b32.xlu0 %v2200, 112
        %v2875 = vpop.permute.xlu0 %2874
        %2876 = vrot.lane.b32.xlu0 %v2201, 112
        %v2877 = vpop.permute.xlu0 %2876
        %2878 = vrot.lane.b32.xlu0 %v2202, 112
        %v2879 = vpop.permute.xlu0 %2878
        %2880 = vrot.lane.b32.xlu0 %v2203, 112
        %v2881 = vpop.permute.xlu0 %2880
        %2882 = vrot.lane.b32.xlu0 %v2204, 112
        %v2883 = vpop.permute.xlu0 %2882
        %2884 = vrot.lane.b32.xlu0 %v2205, 112
        %v2885 = vpop.permute.xlu0 %2884
        %2886 = vrot.lane.b32.xlu0 %v2206, 112
        %v2887 = vpop.permute.xlu0 %2886
        %2888 = vrot.lane.b32.xlu0 %v2207, 112
        %v2889 = vpop.permute.xlu0 %2888
        %v2906 = vsel %vm1021, %v2859, 0.0
        %2907 = vadd.xlane.f32.xlu0 %v2906
        %v2908 = vpop.xlane.xlu0 %2907
        %v2909 = vsel %vm1021, %v2861, 0.0
        %2910 = vadd.xlane.f32.xlu0 %v2909
        %v2911 = vpop.xlane.xlu0 %2910
        %v2912 = vsel %vm1021, %v2863, 0.0
        %2913 = vadd.xlane.f32.xlu0 %v2912
        %v2914 = vpop.xlane.xlu0 %2913
        %v2915 = vsel %vm1021, %v2865, 0.0
        %2916 = vadd.xlane.f32.xlu0 %v2915
        %v2917 = vpop.xlane.xlu0 %2916
        %v2918 = vsel %vm1021, %v2867, 0.0
        %2919 = vadd.xlane.f32.xlu0 %v2918
        %v2920 = vpop.xlane.xlu0 %2919
        %v2921 = vsel %vm1021, %v2869, 0.0
        %2922 = vadd.xlane.f32.xlu0 %v2921
        %v2923 = vpop.xlane.xlu0 %2922
        %v2924 = vsel %vm1021, %v2871, 0.0
        %2925 = vadd.xlane.f32.xlu0 %v2924
        %v2926 = vpop.xlane.xlu0 %2925
        %v2927 = vsel %vm1021, %v2873, 0.0
        %2928 = vadd.xlane.f32.xlu0 %v2927
        %v2929 = vpop.xlane.xlu0 %2928
        %v2930 = vsel %vm1021, %v2875, 0.0
        %2931 = vadd.xlane.f32.xlu0 %v2930
        %v2932 = vpop.xlane.xlu0 %2931
        %v2933 = vsel %vm1021, %v2877, 0.0
        %2934 = vadd.xlane.f32.xlu0 %v2933
        %v2935 = vpop.xlane.xlu0 %2934
        %v2936 = vsel %vm1021, %v2879, 0.0
        %2937 = vadd.xlane.f32.xlu0 %v2936
        %v2938 = vpop.xlane.xlu0 %2937
        %v2939 = vsel %vm1021, %v2881, 0.0
        %2940 = vadd.xlane.f32.xlu0 %v2939
        %v2941 = vpop.xlane.xlu0 %2940
        %v2942 = vsel %vm1021, %v2883, 0.0
        %2943 = vadd.xlane.f32.xlu0 %v2942
        %v2944 = vpop.xlane.xlu0 %2943
        %v2945 = vsel %vm1021, %v2885, 0.0
        %2946 = vadd.xlane.f32.xlu0 %v2945
        %v2947 = vpop.xlane.xlu0 %2946
        %v2948 = vsel %vm1021, %v2887, 0.0
        %2949 = vadd.xlane.f32.xlu0 %v2948
        %v2950 = vpop.xlane.xlu0 %2949
        %v2951 = vsel %vm1021, %v2889, 0.0
        %2952 = vadd.xlane.f32.xlu0 %v2951
        %v2953 = vpop.xlane.xlu0 %2952
        %v2954 = vmul.f32 %v2908, %v1537
        %v2955 = vmul.f32 %v2911, %v1537
        %v2956 = vmul.f32 %v2914, %v1537
        %v2957 = vmul.f32 %v2917, %v1537
        %v2958 = vmul.f32 %v2920, %v1537
        %v2959 = vmul.f32 %v2923, %v1537
        %v2960 = vmul.f32 %v2926, %v1537
        %v2961 = vmul.f32 %v2929, %v1537
        %v2962 = vmul.f32 %v2932, %v1537
        %v2963 = vmul.f32 %v2935, %v1537
        %v2964 = vmul.f32 %v2938, %v1537
        %v2965 = vmul.f32 %v2941, %v1537
        %v2966 = vmul.f32 %v2944, %v1537
        %v2967 = vmul.f32 %v2947, %v1537
        %v2968 = vmul.f32 %v2950, %v1537
        %v2969 = vmul.f32 %v2953, %v1537
        %v2970 = vld [vmem:[#allocation30] sm:$0xff]
        %v2971 = vld [vmem:[#allocation6] sm:$0x1]
        %v2973 = vlaneseq
        %v2974 = vshrl.u32 %v2973, 7
        %v2975 = vsub.s32 0, %v2974
        %v2976 = vrot.slane %v2971, %v2975
        %v2978 = vmul.f32 %v2954, %v2976
        %v2979 = vmul.f32 %v2955, %v2976
        %v2980 = vmul.f32 %v2956, %v2976
        %v2981 = vmul.f32 %v2957, %v2976
        %v2982 = vmul.f32 %v2958, %v2976
        %v2983 = vmul.f32 %v2959, %v2976
        %v2984 = vmul.f32 %v2960, %v2976
        %v2985 = vmul.f32 %v2961, %v2976
        %v2986 = vmul.f32 %v2962, %v2976
        %v2987 = vmul.f32 %v2963, %v2976
        %v2988 = vmul.f32 %v2964, %v2976
        %v2989 = vmul.f32 %v2965, %v2976
        %v2990 = vmul.f32 %v2966, %v2976
        %v2991 = vmul.f32 %v2967, %v2976
        %v2992 = vmul.f32 %v2968, %v2976
        %v2993 = vmul.f32 %v2969, %v2976
        %v2995 = vsel %vm1021, %v2842, 0
        %v2998 = vsel %vm1021, %v2843, 0
        %v3001 = vsel %vm1021, %v2844, 0
        %v3004 = vsel %vm1021, %v2845, 0
        %v3007 = vsel %vm1021, %v2846, 0
        %v3010 = vsel %vm1021, %v2847, 0
        %v3013 = vsel %vm1021, %v2848, 0
        %v3016 = vsel %vm1021, %v2849, 0
        %v3019 = vsel %vm1021, %v2850, 0
        %v3022 = vsel %vm1021, %v2851, 0
        %v3025 = vsel %vm1021, %v2852, 0
        %v3028 = vsel %vm1021, %v2853, 0
        %v3031 = vsel %vm1021, %v2854, 0
        %v3034 = vsel %vm1021, %v2855, 0
        %v3037 = vsel %vm1021, %v2856, 0
        %v3040 = vsel %vm1021, %v2857, 0
        %3042 = vmatprep.subr.mxu0 0.0
        %3043 = vmatpush1.msra.mxu0 %v2970
        %3044 = vmatprep.subr.mxu0 0.0
        %3045 = vmatpush1.msra.mxu0 0.0
        %3046 = vmatprep.subr.mxu0 0.0
        %3047 = vmatpush1.msra.mxu0 0.0
        %3048 = vmatprep.subr.mxu0 0.0
        %3049 = vmatpush1.msra.mxu0 0.0
        %3050 = vmatprep.subr.mxu0 0.0
        %3051 = vmatpush1.msra.mxu0 0.0
        %3052 = vmatprep.subr.mxu0 0.0
        %3053 = vmatpush1.msra.mxu0 0.0
        %3054 = vmatprep.subr.mxu0 0.0
        %3055 = vmatpush1.msra.mxu0 0.0
        %3056 = vmatprep.subr.mxu0 0.0
        %3057 = vmatpush1.msra.mxu0 0.0
        %3058 = vmatprep.subr.mxu0 0.0
        %3059 = vmatpush1.msra.mxu0 0.0
        %3060 = vmatprep.subr.mxu0 0.0
        %3061 = vmatpush1.msra.mxu0 0.0
        %3062 = vmatprep.subr.mxu0 0.0
        %3063 = vmatpush1.msra.mxu0 0.0
        %3064 = vmatprep.subr.mxu0 0.0
        %3065 = vmatpush1.msra.mxu0 0.0
        %3066 = vmatprep.subr.mxu0 0.0
        %3067 = vmatpush1.msra.mxu0 0.0
        %3068 = vmatprep.subr.mxu0 0.0
        %3069 = vmatpush1.msra.mxu0 0.0
        %3070 = vmatprep.subr.mxu0 0.0
        %3071 = vmatpush1.msra.mxu0 0.0
        %3072 = vmatprep.subr.mxu0 0.0
        %3073 = vmatpush1.msra.mxu0 0.0
        %3074 = vmatprep.subr.mxu0 0.0
        %3075 = vmatpush1.msra.mxu0 0.0
        %3076 = vmatprep.subr.mxu0 0.0
        %3077 = vmatpush1.msra.mxu0 0.0
        %3078 = vmatprep.subr.mxu0 0.0
        %3079 = vmatpush1.msra.mxu0 0.0
        %3080 = vmatprep.subr.mxu0 0.0
        %3081 = vmatpush1.msra.mxu0 0.0
        %3082 = vmatprep.subr.mxu0 0.0
        %3083 = vmatpush1.msra.mxu0 0.0
        %3084 = vmatprep.subr.mxu0 0.0
        %3085 = vmatpush1.msra.mxu0 0.0
        %3086 = vmatprep.subr.mxu0 0.0
        %3087 = vmatpush1.msra.mxu0 0.0
        %3088 = vmatprep.subr.mxu0 0.0
        %3089 = vmatpush1.msra.mxu0 0.0
        %3090 = vmatprep.subr.mxu0 0.0
        %3091 = vmatpush1.msra.mxu0 0.0
        %3092 = vmatprep.subr.mxu0 0.0
        %3093 = vmatpush1.msra.mxu0 0.0
        %3094 = vmatprep.subr.mxu0 0.0
        %3095 = vmatpush1.msra.mxu0 0.0
        %3096 = vmatprep.subr.mxu0 0.0
        %3097 = vmatpush1.msra.mxu0 0.0
        %3098 = vmatprep.subr.mxu0 0.0
        %3099 = vmatpush1.msra.mxu0 0.0
        %3100 = vmatprep.subr.mxu0 0.0
        %3101 = vmatpush1.msra.mxu0 0.0
        %3102 = vmatprep.subr.mxu0 0.0
        %3103 = vmatpush1.msra.mxu0 0.0
        %3104 = vmatprep.subr.mxu0 0.0
        %3105 = vmatpush1.msra.mxu0 0.0
        %3106 = vmatprep.mubr.f32.mxu0 0.0
        %3107 = vmatmul.mubr.f32.gmra.mrb[0].mxu0 %v2995
        %v3108 = vpop.f32.mrb[0].mxu0
        %v3109 = vadd.f32 %v2978, %v3108
        %v3110 = vpop.f32.mrb[0].mxu0
        %3111 = vmatprep.mubr.f32.mxu0 0.0
        %3112 = vmatmul.mubr.f32.gmra.mrb[0].mxu0 %v2998
        %v3113 = vpop.f32.mrb[0].mxu0
        %v3114 = vadd.f32 %v2979, %v3113
        %v3115 = vpop.f32.mrb[0].mxu0
        %3116 = vmatprep.mubr.f32.mxu0 0.0
        %3117 = vmatmul.mubr.f32.gmra.mrb[0].mxu0 %v3001
        %v3118 = vpop.f32.mrb[0].mxu0
        %v3119 = vadd.f32 %v2980, %v3118
        %v3120 = vpop.f32.mrb[0].mxu0
        %3121 = vmatprep.mubr.f32.mxu0 0.0
        %3122 = vmatmul.mubr.f32.gmra.mrb[0].mxu0 %v3004
        %v3123 = vpop.f32.mrb[0].mxu0
        %v3124 = vadd.f32 %v2981, %v3123
        %v3125 = vpop.f32.mrb[0].mxu0
        %3126 = vmatprep.mubr.f32.mxu0 0.0
        %3127 = vmatmul.mubr.f32.gmra.mrb[0].mxu0 %v3007
        %v3128 = vpop.f32.mrb[0].mxu0
        %v3129 = vadd.f32 %v2982, %v3128
        %v3130 = vpop.f32.mrb[0].mxu0
        %3131 = vmatprep.mubr.f32.mxu0 0.0
        %3132 = vmatmul.mubr.f32.gmra.mrb[0].mxu0 %v3010
        %v3133 = vpop.f32.mrb[0].mxu0
        %v3134 = vadd.f32 %v2983, %v3133
        %v3135 = vpop.f32.mrb[0].mxu0
        %3136 = vmatprep.mubr.f32.mxu0 0.0
        %3137 = vmatmul.mubr.f32.gmra.mrb[0].mxu0 %v3013
        %v3138 = vpop.f32.mrb[0].mxu0
        %v3139 = vadd.f32 %v2984, %v3138
        %v3140 = vpop.f32.mrb[0].mxu0
        %3141 = vmatprep.mubr.f32.mxu0 0.0
        %3142 = vmatmul.mubr.f32.gmra.mrb[0].mxu0 %v3016
        %v3143 = vpop.f32.mrb[0].mxu0
        %v3144 = vadd.f32 %v2985, %v3143
        %v3145 = vpop.f32.mrb[0].mxu0
        %3146 = vmatprep.mubr.f32.mxu0 0.0
        %3147 = vmatmul.mubr.f32.gmra.mrb[0].mxu0 %v3019
        %v3148 = vpop.f32.mrb[0].mxu0
        %v3149 = vadd.f32 %v2986, %v3148
        %v3150 = vpop.f32.mrb[0].mxu0
        %3151 = vmatprep.mubr.f32.mxu0 0.0
        %3152 = vmatmul.mubr.f32.gmra.mrb[0].mxu0 %v3022
        %v3153 = vpop.f32.mrb[0].mxu0
        %v3154 = vadd.f32 %v2987, %v3153
        %v3155 = vpop.f32.mrb[0].mxu0
        %3156 = vmatprep.mubr.f32.mxu0 0.0
        %3157 = vmatmul.mubr.f32.gmra.mrb[0].mxu0 %v3025
        %v3158 = vpop.f32.mrb[0].mxu0
        %v3159 = vadd.f32 %v2988, %v3158
        %v3160 = vpop.f32.mrb[0].mxu0
        %3161 = vmatprep.mubr.f32.mxu0 0.0
        %3162 = vmatmul.mubr.f32.gmra.mrb[0].mxu0 %v3028
        %v3163 = vpop.f32.mrb[0].mxu0
        %v3164 = vadd.f32 %v2989, %v3163
        %v3165 = vpop.f32.mrb[0].mxu0
        %3166 = vmatprep.mubr.f32.mxu0 0.0
        %3167 = vmatmul.mubr.f32.gmra.mrb[0].mxu0 %v3031
        %v3168 = vpop.f32.mrb[0].mxu0
        %v3169 = vadd.f32 %v2990, %v3168
        %v3170 = vpop.f32.mrb[0].mxu0
        %3171 = vmatprep.mubr.f32.mxu0 0.0
        %3172 = vmatmul.mubr.f32.gmra.mrb[0].mxu0 %v3034
        %v3173 = vpop.f32.mrb[0].mxu0
        %v3174 = vadd.f32 %v2991, %v3173
        %v3175 = vpop.f32.mrb[0].mxu0
        %3176 = vmatprep.mubr.f32.mxu0 0.0
        %3177 = vmatmul.mubr.f32.gmra.mrb[0].mxu0 %v3037
        %v3178 = vpop.f32.mrb[0].mxu0
        %v3179 = vadd.f32 %v2992, %v3178
        %v3180 = vpop.f32.mrb[0].mxu0
        %3181 = vmatprep.mubr.f32.mxu0 0.0
        %3182 = vmatmul.mubr.f32.gmra.mrb[0].mxu0 %v3040
        %v3183 = vpop.f32.mrb[0].mxu0
        %v3184 = vadd.f32 %v2993, %v3183
        %v3185 = vpop.f32.mrb[0].mxu0
        %3186 = vdwg.mxu0
        %v3187 = vld [vmem:[#allocation7] sm:$0x1]
        %v3189 = vlaneseq
        %v3190 = vshrl.u32 %v3189, 7
        %v3191 = vsub.s32 0, %v3190
        %v3192 = vrot.slane %v3187, %v3191
        %v3194 = vadd.f32 %v3109, %v3192
        %v3195 = vadd.f32 %v3114, %v3192
        %v3196 = vadd.f32 %v3119, %v3192
        %v3197 = vadd.f32 %v3124, %v3192
        %v3198 = vadd.f32 %v3129, %v3192
        %v3199 = vadd.f32 %v3134, %v3192
        %v3200 = vadd.f32 %v3139, %v3192
        %v3201 = vadd.f32 %v3144, %v3192
        %v3202 = vadd.f32 %v3149, %v3192
        %v3203 = vadd.f32 %v3154, %v3192
        %v3204 = vadd.f32 %v3159, %v3192
        %v3205 = vadd.f32 %v3164, %v3192
        %v3206 = vadd.f32 %v3169, %v3192
        %v3207 = vadd.f32 %v3174, %v3192
        %v3208 = vadd.f32 %v3179, %v3192
        %v3209 = vadd.f32 %v3184, %v3192
        %v3210 = vmax.f32 %v3194, 0.0
        %v3211 = vmax.f32 %v3195, 0.0
        %v3212 = vmax.f32 %v3196, 0.0
        %v3213 = vmax.f32 %v3197, 0.0
        %v3214 = vmax.f32 %v3198, 0.0
        %v3215 = vmax.f32 %v3199, 0.0
        %v3216 = vmax.f32 %v3200, 0.0
        %v3217 = vmax.f32 %v3201, 0.0
        %v3218 = vmax.f32 %v3202, 0.0
        %v3219 = vmax.f32 %v3203, 0.0
        %v3220 = vmax.f32 %v3204, 0.0
        %v3221 = vmax.f32 %v3205, 0.0
        %v3222 = vmax.f32 %v3206, 0.0
        %v3223 = vmax.f32 %v3207, 0.0
        %v3224 = vmax.f32 %v3208, 0.0
        %v3225 = vmax.f32 %v3209, 0.0
        %v3226 = vld [vmem:[#allocation8] sm:$0x1]
        %v3227 = vld [vmem:[#allocation9] sm:$0x1]
        %v3229 = vlaneseq
        %v3230 = vshrl.u32 %v3229, 7
        %v3231 = vsub.s32 0, %v3230
        %v3232 = vrot.slane %v3227, %v3231
        %v3235 = vsel %vm1722, %v3210, 0
        %v3238 = vsel %vm1722, %v3211, 0
        %v3241 = vsel %vm1722, %v3212, 0
        %v3244 = vsel %vm1722, %v3213, 0
        %v3247 = vsel %vm1722, %v3214, 0
        %v3250 = vsel %vm1722, %v3215, 0
        %v3253 = vsel %vm1722, %v3216, 0
        %v3256 = vsel %vm1722, %v3217, 0
        %v3259 = vsel %vm1722, %v3218, 0
        %v3262 = vsel %vm1722, %v3219, 0
        %v3265 = vsel %vm1722, %v3220, 0
        %v3268 = vsel %vm1722, %v3221, 0
        %v3271 = vsel %vm1722, %v3222, 0
        %v3274 = vsel %vm1722, %v3223, 0
        %v3277 = vsel %vm1722, %v3224, 0
        %v3280 = vsel %vm1722, %v3225, 0
        %v3283 = vsel %vm1747, %v3226, 0
        %3285 = vmatprep.subr.mxu0 0.0
        %3286 = vmatpush1.msra.mxu0 %v3283
        %3287 = vmatprep.subr.mxu0 0.0
        %3288 = vmatpush1.msra.mxu0 0.0
        %3289 = vmatprep.subr.mxu0 0.0
        %3290 = vmatpush1.msra.mxu0 0.0
        %3291 = vmatprep.subr.mxu0 0.0
        %3292 = vmatpush1.msra.mxu0 0.0
        %3293 = vmatprep.subr.mxu0 0.0
        %3294 = vmatpush1.msra.mxu0 0.0
        %3295 = vmatprep.subr.mxu0 0.0
        %3296 = vmatpush1.msra.mxu0 0.0
        %3297 = vmatprep.subr.mxu0 0.0
        %3298 = vmatpush1.msra.mxu0 0.0
        %3299 = vmatprep.subr.mxu0 0.0
        %3300 = vmatpush1.msra.mxu0 0.0
        %3301 = vmatprep.subr.mxu0 0.0
        %3302 = vmatpush1.msra.mxu0 0.0
        %3303 = vmatprep.subr.mxu0 0.0
        %3304 = vmatpush1.msra.mxu0 0.0
        %3305 = vmatprep.subr.mxu0 0.0
        %3306 = vmatpush1.msra.mxu0 0.0
        %3307 = vmatprep.subr.mxu0 0.0
        %3308 = vmatpush1.msra.mxu0 0.0
        %3309 = vmatprep.subr.mxu0 0.0
        %3310 = vmatpush1.msra.mxu0 0.0
        %3311 = vmatprep.subr.mxu0 0.0
        %3312 = vmatpush1.msra.mxu0 0.0
        %3313 = vmatprep.subr.mxu0 0.0
        %3314 = vmatpush1.msra.mxu0 0.0
        %3315 = vmatprep.subr.mxu0 0.0
        %3316 = vmatpush1.msra.mxu0 0.0
        %3317 = vmatprep.subr.mxu0 0.0
        %3318 = vmatpush1.msra.mxu0 0.0
        %3319 = vmatprep.subr.mxu0 0.0
        %3320 = vmatpush1.msra.mxu0 0.0
        %3321 = vmatprep.subr.mxu0 0.0
        %3322 = vmatpush1.msra.mxu0 0.0
        %3323 = vmatprep.subr.mxu0 0.0
        %3324 = vmatpush1.msra.mxu0 0.0
        %3325 = vmatprep.subr.mxu0 0.0
        %3326 = vmatpush1.msra.mxu0 0.0
        %3327 = vmatprep.subr.mxu0 0.0
        %3328 = vmatpush1.msra.mxu0 0.0
        %3329 = vmatprep.subr.mxu0 0.0
        %3330 = vmatpush1.msra.mxu0 0.0
        %3331 = vmatprep.subr.mxu0 0.0
        %3332 = vmatpush1.msra.mxu0 0.0
        %3333 = vmatprep.subr.mxu0 0.0
        %3334 = vmatpush1.msra.mxu0 0.0
        %3335 = vmatprep.subr.mxu0 0.0
        %3336 = vmatpush1.msra.mxu0 0.0
        %3337 = vmatprep.subr.mxu0 0.0
        %3338 = vmatpush1.msra.mxu0 0.0
        %3339 = vmatprep.subr.mxu0 0.0
        %3340 = vmatpush1.msra.mxu0 0.0
        %3341 = vmatprep.subr.mxu0 0.0
        %3342 = vmatpush1.msra.mxu0 0.0
        %3343 = vmatprep.subr.mxu0 0.0
        %3344 = vmatpush1.msra.mxu0 0.0
        %3345 = vmatprep.subr.mxu0 0.0
        %3346 = vmatpush1.msra.mxu0 0.0
        %3347 = vmatprep.subr.mxu0 0.0
        %3348 = vmatpush1.msra.mxu0 0.0
        %3349 = vmatprep.mubr.f32.mxu0 0.0
        %3350 = vmatmul.mubr.f32.gmra.mrb[0].mxu0 %v3235
        %v3351 = vpop.f32.mrb[0].mxu0
        %v3352 = vadd.f32 %v3232, %v3351
        %v3353 = vpop.f32.mrb[0].mxu0
        %3354 = vmatprep.mubr.f32.mxu0 0.0
        %3355 = vmatmul.mubr.f32.gmra.mrb[0].mxu0 %v3238
        %v3356 = vpop.f32.mrb[0].mxu0
        %v3357 = vadd.f32 %v3232, %v3356
        %v3358 = vpop.f32.mrb[0].mxu0
        %3359 = vmatprep.mubr.f32.mxu0 0.0
        %3360 = vmatmul.mubr.f32.gmra.mrb[0].mxu0 %v3241
        %v3361 = vpop.f32.mrb[0].mxu0
        %v3362 = vadd.f32 %v3232, %v3361
        %v3363 = vpop.f32.mrb[0].mxu0
        %3364 = vmatprep.mubr.f32.mxu0 0.0
        %3365 = vmatmul.mubr.f32.gmra.mrb[0].mxu0 %v3244
        %v3366 = vpop.f32.mrb[0].mxu0
        %v3367 = vadd.f32 %v3232, %v3366
        %v3368 = vpop.f32.mrb[0].mxu0
        %3369 = vmatprep.mubr.f32.mxu0 0.0
        %3370 = vmatmul.mubr.f32.gmra.mrb[0].mxu0 %v3247
        %v3371 = vpop.f32.mrb[0].mxu0
        %v3372 = vadd.f32 %v3232, %v3371
        %v3373 = vpop.f32.mrb[0].mxu0
        %3374 = vmatprep.mubr.f32.mxu0 0.0
        %3375 = vmatmul.mubr.f32.gmra.mrb[0].mxu0 %v3250
        %v3376 = vpop.f32.mrb[0].mxu0
        %v3377 = vadd.f32 %v3232, %v3376
        %v3378 = vpop.f32.mrb[0].mxu0
        %3379 = vmatprep.mubr.f32.mxu0 0.0
        %3380 = vmatmul.mubr.f32.gmra.mrb[0].mxu0 %v3253
        %v3381 = vpop.f32.mrb[0].mxu0
        %v3382 = vadd.f32 %v3232, %v3381
        %v3383 = vpop.f32.mrb[0].mxu0
        %3384 = vmatprep.mubr.f32.mxu0 0.0
        %3385 = vmatmul.mubr.f32.gmra.mrb[0].mxu0 %v3256
        %v3386 = vpop.f32.mrb[0].mxu0
        %v3387 = vadd.f32 %v3232, %v3386
        %v3388 = vpop.f32.mrb[0].mxu0
        %3389 = vmatprep.mubr.f32.mxu0 0.0
        %3390 = vmatmul.mubr.f32.gmra.mrb[0].mxu0 %v3259
        %v3391 = vpop.f32.mrb[0].mxu0
        %v3392 = vadd.f32 %v3232, %v3391
        %v3393 = vpop.f32.mrb[0].mxu0
        %3394 = vmatprep.mubr.f32.mxu0 0.0
        %3395 = vmatmul.mubr.f32.gmra.mrb[0].mxu0 %v3262
        %v3396 = vpop.f32.mrb[0].mxu0
        %v3397 = vadd.f32 %v3232, %v3396
        %v3398 = vpop.f32.mrb[0].mxu0
        %3399 = vmatprep.mubr.f32.mxu0 0.0
        %3400 = vmatmul.mubr.f32.gmra.mrb[0].mxu0 %v3265
        %v3401 = vpop.f32.mrb[0].mxu0
        %v3402 = vadd.f32 %v3232, %v3401
        %v3403 = vpop.f32.mrb[0].mxu0
        %3404 = vmatprep.mubr.f32.mxu0 0.0
        %3405 = vmatmul.mubr.f32.gmra.mrb[0].mxu0 %v3268
        %v3406 = vpop.f32.mrb[0].mxu0
        %v3407 = vadd.f32 %v3232, %v3406
        %v3408 = vpop.f32.mrb[0].mxu0
        %3409 = vmatprep.mubr.f32.mxu0 0.0
        %3410 = vmatmul.mubr.f32.gmra.mrb[0].mxu0 %v3271
        %v3411 = vpop.f32.mrb[0].mxu0
        %v3412 = vadd.f32 %v3232, %v3411
        %v3413 = vpop.f32.mrb[0].mxu0
        %3414 = vmatprep.mubr.f32.mxu0 0.0
        %3415 = vmatmul.mubr.f32.gmra.mrb[0].mxu0 %v3274
        %v3416 = vpop.f32.mrb[0].mxu0
        %v3417 = vadd.f32 %v3232, %v3416
        %v3418 = vpop.f32.mrb[0].mxu0
        %3419 = vmatprep.mubr.f32.mxu0 0.0
        %3420 = vmatmul.mubr.f32.gmra.mrb[0].mxu0 %v3277
        %v3421 = vpop.f32.mrb[0].mxu0
        %v3422 = vadd.f32 %v3232, %v3421
        %v3423 = vpop.f32.mrb[0].mxu0
        %3424 = vmatprep.mubr.f32.mxu0 0.0
        %3425 = vmatmul.mubr.f32.gmra.mrb[0].mxu0 %v3280
        %v3426 = vpop.f32.mrb[0].mxu0
        %v3427 = vadd.f32 %v3232, %v3426
        %v3428 = vpop.f32.mrb[0].mxu0
        %3429 = vdwg.mxu0
        %v3430 = vxor.u32 %v3352, 2147483648
        %v3431 = vxor.u32 %v3357, 2147483648
        %v3432 = vxor.u32 %v3362, 2147483648
        %v3433 = vxor.u32 %v3367, 2147483648
        %v3434 = vxor.u32 %v3372, 2147483648
        %v3435 = vxor.u32 %v3377, 2147483648
        %v3436 = vxor.u32 %v3382, 2147483648
        %v3437 = vxor.u32 %v3387, 2147483648
        %v3438 = vxor.u32 %v3392, 2147483648
        %v3439 = vxor.u32 %v3397, 2147483648
        %v3440 = vxor.u32 %v3402, 2147483648
        %v3441 = vxor.u32 %v3407, 2147483648
        %v3442 = vxor.u32 %v3412, 2147483648
        %v3443 = vxor.u32 %v3417, 2147483648
        %v3444 = vxor.u32 %v3422, 2147483648
        %v3445 = vxor.u32 %v3427, 2147483648
        %v3446 = vmul.f32 %v3430, 1.442695
        %v3447 = vpow.pop %v3446
        %v3448 = vmul.f32 %v3431, 1.442695
        %v3449 = vpow.pop %v3448
        %v3450 = vmul.f32 %v3432, 1.442695
        %v3451 = vpow.pop %v3450
        %v3452 = vmul.f32 %v3433, 1.442695
        %v3453 = vpow.pop %v3452
        %v3454 = vmul.f32 %v3434, 1.442695
        %v3455 = vpow.pop %v3454
        %v3456 = vmul.f32 %v3435, 1.442695
        %v3457 = vpow.pop %v3456
        %v3458 = vmul.f32 %v3436, 1.442695
        %v3459 = vpow.pop %v3458
        %v3460 = vmul.f32 %v3437, 1.442695
        %v3461 = vpow.pop %v3460
        %v3462 = vmul.f32 %v3438, 1.442695
        %v3463 = vpow.pop %v3462
        %v3464 = vmul.f32 %v3439, 1.442695
        %v3465 = vpow.pop %v3464
        %v3466 = vmul.f32 %v3440, 1.442695
        %v3467 = vpow.pop %v3466
        %v3468 = vmul.f32 %v3441, 1.442695
        %v3469 = vpow.pop %v3468
        %v3470 = vmul.f32 %v3442, 1.442695
        %v3471 = vpow.pop %v3470
        %v3472 = vmul.f32 %v3443, 1.442695
        %v3473 = vpow.pop %v3472
        %v3474 = vmul.f32 %v3444, 1.442695
        %v3475 = vpow.pop %v3474
        %v3476 = vmul.f32 %v3445, 1.442695
        %v3477 = vpow.pop %v3476
        %v3478 = vadd.f32 %v3447, 1.0
        %v3479 = vadd.f32 %v3449, 1.0
        %v3480 = vadd.f32 %v3451, 1.0
        %v3481 = vadd.f32 %v3453, 1.0
        %v3482 = vadd.f32 %v3455, 1.0
        %v3483 = vadd.f32 %v3457, 1.0
        %v3484 = vadd.f32 %v3459, 1.0
        %v3485 = vadd.f32 %v3461, 1.0
        %v3486 = vadd.f32 %v3463, 1.0
        %v3487 = vadd.f32 %v3465, 1.0
        %v3488 = vadd.f32 %v3467, 1.0
        %v3489 = vadd.f32 %v3469, 1.0
        %v3490 = vadd.f32 %v3471, 1.0
        %v3491 = vadd.f32 %v3473, 1.0
        %v3492 = vadd.f32 %v3475, 1.0
        %v3493 = vadd.f32 %v3477, 1.0
        %v3494 = vrcp.pop %v3478
        %v3495 = vmul.f32 1.0, %v3494
        %v3496 = vrcp.pop %v3479
        %v3497 = vmul.f32 1.0, %v3496
        %v3498 = vrcp.pop %v3480
        %v3499 = vmul.f32 1.0, %v3498
        %v3500 = vrcp.pop %v3481
        %v3501 = vmul.f32 1.0, %v3500
        %v3502 = vrcp.pop %v3482
        %v3503 = vmul.f32 1.0, %v3502
        %v3504 = vrcp.pop %v3483
        %v3505 = vmul.f32 1.0, %v3504
        %v3506 = vrcp.pop %v3484
        %v3507 = vmul.f32 1.0, %v3506
        %v3508 = vrcp.pop %v3485
        %v3509 = vmul.f32 1.0, %v3508
        %v3510 = vrcp.pop %v3486
        %v3511 = vmul.f32 1.0, %v3510
        %v3512 = vrcp.pop %v3487
        %v3513 = vmul.f32 1.0, %v3512
        %v3514 = vrcp.pop %v3488
        %v3515 = vmul.f32 1.0, %v3514
        %v3516 = vrcp.pop %v3489
        %v3517 = vmul.f32 1.0, %v3516
        %v3518 = vrcp.pop %v3490
        %v3519 = vmul.f32 1.0, %v3518
        %v3520 = vrcp.pop %v3491
        %v3521 = vmul.f32 1.0, %v3520
        %v3522 = vrcp.pop %v3492
        %v3523 = vmul.f32 1.0, %v3522
        %v3524 = vrcp.pop %v3493
        %v3525 = vmul.f32 1.0, %v3524
        %3526 = vxpose.xlu0.b32.start [1/16] %v3495, 128
        %3527 = vxpose.xlu0.b32.cont [2/16] %v3497, 128
        %3528 = vxpose.xlu0.b32.cont [3/16] %v3499, 128
        %3529 = vxpose.xlu0.b32.cont [4/16] %v3501, 128
        %3530 = vxpose.xlu0.b32.cont [5/16] %v3503, 128
        %3531 = vxpose.xlu0.b32.cont [6/16] %v3505, 128
        %3532 = vxpose.xlu0.b32.cont [7/16] %v3507, 128
        %3533 = vxpose.xlu0.b32.cont [8/16] %v3509, 128
        %3534 = vxpose.xlu0.b32.cont [9/16] %v3511, 128
        %3535 = vxpose.xlu0.b32.cont [10/16] %v3513, 128
        %3536 = vxpose.xlu0.b32.cont [11/16] %v3515, 128
        %3537 = vxpose.xlu0.b32.cont [12/16] %v3517, 128
        %3538 = vxpose.xlu0.b32.cont [13/16] %v3519, 128
        %3539 = vxpose.xlu0.b32.cont [14/16] %v3521, 128
        %3540 = vxpose.xlu0.b32.cont [15/16] %v3523, 128
        %3541 = vxpose.xlu0.b32.end [16/16] %v3525, 128
        %v3542 = vpop.trf.xlu0
        %v3543 = vpop.trf.xlu0
        %v3544 = vpop.trf.xlu0
        %v3545 = vpop.trf.xlu0
        %v3546 = vpop.trf.xlu0
        %v3547 = vpop.trf.xlu0
        %v3548 = vpop.trf.xlu0
        %v3549 = vpop.trf.xlu0
        %v3550 = vpop.trf.xlu0
        %v3551 = vpop.trf.xlu0
        %v3552 = vpop.trf.xlu0
        %v3553 = vpop.trf.xlu0
        %v3554 = vpop.trf.xlu0
        %v3555 = vpop.trf.xlu0
        %v3556 = vpop.trf.xlu0
        %v3557 = vpop.trf.xlu0
        %v3558 = vlaneseq
        %v3559 = vshrl.u32 %v3558, 7
        %v3560 = vsub.s32 0, %v3559
        %v3561 = vrot.slane %v3542, %v3560
        %v3562 = vmul.f32 %v1944, %v3561
        %v3563 = vmul.f32 %v1945, %v3561
        %v3564 = vmul.f32 %v1946, %v3561
        %v3565 = vmul.f32 %v1947, %v3561
        %v3566 = vmul.f32 %v1948, %v3561
        %v3567 = vmul.f32 %v1949, %v3561
        %v3568 = vmul.f32 %v1950, %v3561
        %v3569 = vmul.f32 %v1951, %v3561
        %3570 = vst [vmem:[%s852] sm:$0xff] %v3562
        %3571 = vst [vmem:[%s852 + $0x8] sm:$0xff] %v3563
        %3572 = vst [vmem:[%s852 + $0x10] sm:$0xff] %v3564
        %3573 = vst [vmem:[%s852 + $0x18] sm:$0xff] %v3565
        %3574 = vst [vmem:[%s852 + $0x20] sm:$0xff] %v3566
        %3575 = vst [vmem:[%s852 + $0x28] sm:$0xff] %v3567
        %3576 = vst [vmem:[%s852 + $0x30] sm:$0xff] %v3568
        %3577 = vst [vmem:[%s852 + $0x38] sm:$0xff] %v3569
        %s3578 = sand.u32 %s514, 1
        %s3579 = scalar_lea.sflag [#allocation12], %s3578
        %s3580 = sand.u32 %s514, 1
        %s3581 = smul.addr %s3580, 64
        %s3582 = scalar_lea.vmem [#allocation31], %s3581
        // Predicated region
        $region157: #{tpu_custom_call.1} parent=103 // pred_check
          %p3583 = pneg %p524
        $region158: #{tpu_custom_call.1} parent=103 // pred_check_branch
          %3585 = sbr.rel (%p3583) target = $region160
        $region159: #{tpu_custom_call.1} parent=103 // pred_region
          %s3587 = ssub.s32 1024, 1024
          %3588 = vsyncadd %s3579, %s3587
          %s3589 = smul.addr %s60, 8
          %s3590 = smul.addr %s3589, 128
          %s3591 = scalar_lea.hbm %s21, %s3590
          %s3592 = sshll.u32 %s3582, 4
          %s3593 = int_to_ptr.vmem [resolvable:$true] %s3592
          %3598 = dma.vmem_to_hbm [thread:$0]  %s3593, 1024, %s3591, %s3579, 128, 128, 8
        $region160: #{tpu_custom_call.1} parent=103 // pred_fallthru
          _
      $region104: #{tpu_custom_call.1} parent=5 // pred_fallthru
        _
      %p3599 = scmp.le.s32.totalorder 2, %s55
      // Predicated region
      $region161: #{tpu_custom_call.1} parent=5 // pred_check
        %p3600 = pneg %p3599
      $region162: #{tpu_custom_call.1} parent=5 // pred_check_branch
        %3602 = sbr.rel (%p3600) target = $region164
      $region163: #{tpu_custom_call.1} parent=5 // pred_region
        %s3603 = ssub.s32 %s55, 2
        // Predicated region
        $region165: #{tpu_custom_call.1} parent=163 // pred_check
          %p3604 = pneg %p530
        $region166: #{tpu_custom_call.1} parent=163 // pred_check_branch
          %3606 = sbr.rel (%p3604) target = $region168
        $region167: #{tpu_custom_call.1} parent=163 // pred_region
          %s3607 = sand.u32 %s515, 1
          %s3608 = scalar_lea.sflag [#allocation12], %s3607
          %s3609 = sand.u32 %s515, 1
          %s3610 = smul.addr %s3609, 64
          %s3611 = scalar_lea.vmem [#allocation31], %s3610
          %3612 = dma.done %s3608, 1024
        $region168: #{tpu_custom_call.1} parent=163 // pred_fallthru
          _
      $region164: #{tpu_custom_call.1} parent=5 // pred_fallthru
        _
    $region6: #{tpu_custom_call.1} parent=1 // loop_footer
      %s59 = sadd.s32 1, %s55
    $region7: #{tpu_custom_call.1} parent=1 // loop_footer_branch
      %54 = sbr.rel target = $region3
    $region8: #{tpu_custom_call.1} parent=1 // loop_exit
      _
    %3613 = vsyncpa [#allocation11], 1
    %s3614 = scalar_lea.sflag [#allocation11], 1
    %3615 = vsyncpa %s3614, 1
    %3616 = vsyncpa [#allocation14], 1
    %3617 = vsyncpa [#allocation17], 1
    %3618 = vsyncpa [#allocation20], 1
    %3619 = vsyncpa [#allocation23], 1
    %3620 = vsyncpa [#allocation26], 1
    %3621 = vsyncpa [#allocation29], 1
    %3622 = vsyncpa [#allocation12], 1
    %s3623 = scalar_lea.sflag [#allocation12], 1
    %3624 = vsyncpa %s3623, 1

</llo_original>
